<compile_context>
chip_gen: v7x
topology: tpu7x:2x2x1
jax: 0.10.0
libtpu: 0.0.40
codegen_flags: <defaults>
</compile_context>

<pallas_src>
import functools
import math

import jax
import jax.numpy as jnp
from jax.experimental import pallas as pl
from jax.experimental.pallas import tpu as pltpu

# ----------------------------- config (small) -----------------------------
BATCH = 2
SEQ = 8            # num_patches (sequence length)
INPUT_DIM = 32
BOND_DIM = 32
NUM_HEADS = 4
NUM_LAYERS = 2
OUTPUT_DIM = 16
D_K = BOND_DIM // NUM_HEADS
LN_EPS = 1e-5


# ----------------------------- fused kernel --------------------------------
def vit_kernel(x_ref, wqkv_ref, wo_ref, bo_ref, lng_ref, lnb_ref,
               fg_ref, fb_ref, wout_ref, o_ref,
               *, num_layers, num_heads, d_k, batch, seq):
    """Whole TransformerEncoderViT forward in one kernel invocation.

    x_ref    : (B, S, D)          input activations
    wqkv_ref : (L, D, 3*Bd)       fused Q|K|V projection weights (per layer)
    wo_ref   : (L, Bd, D)         attention output projection weights
    bo_ref   : (L, 1, D)          attention output projection bias
    lng/lnb  : (L, 1, D)          per-layer LayerNorm gamma / beta
    fg/fb    : (1, D)             final LayerNorm gamma / beta
    wout_ref : (D, O)             fc_out weight (no bias)
    o_ref    : (B, O)             output
    """
    B, S = batch, seq
    D = x_ref.shape[2]
    Bd = num_heads * d_k
    inv_sqrt_dk = 1.0 / math.sqrt(d_k)

    # Flatten (B, S, D) -> (B*S, D): all projections become one 2-D matmul.
    x = x_ref[...].astype(jnp.float32).reshape(B * S, D)

    def layernorm(y, g, b):
        m = jnp.mean(y, axis=-1, keepdims=True)
        v = jnp.mean(jnp.square(y - m), axis=-1, keepdims=True)
        return (y - m) * jax.lax.rsqrt(v + LN_EPS) * g + b

    for l in range(num_layers):                       # static, unrolled
        wqkv = wqkv_ref[l].astype(jnp.float32)        # (D, 3Bd)
        wo = wo_ref[l].astype(jnp.float32)            # (Bd, D)
        bo = bo_ref[l].astype(jnp.float32)            # (1, D)
        g = lng_ref[l].astype(jnp.float32)            # (1, D)
        b = lnb_ref[l].astype(jnp.float32)            # (1, D)

        # Fused QKV projection: one MXU matmul.
        qkv = jnp.dot(x, wqkv, preferred_element_type=jnp.float32)   # (B*S, 3Bd)
        q = qkv[:, 0 * Bd:1 * Bd].reshape(B, S, Bd)
        k = qkv[:, 1 * Bd:2 * Bd].reshape(B, S, Bd)
        v = qkv[:, 2 * Bd:3 * Bd].reshape(B, S, Bd)

        # Multi-head attention: batched-over-B einsums (no explicit transposes),
        # per-head accumulation of the output projection (no concat).
        attn = jnp.zeros((B * S, D), jnp.float32)
        for h in range(num_heads):                    # static, unrolled
            lo = h * d_k
            qh = q[:, :, lo:lo + d_k]                 # (B, S, dk)
            kh = k[:, :, lo:lo + d_k]
            vh = v[:, :, lo:lo + d_k]
            s = jnp.einsum("bqd,bkd->bqk", qh, kh,
                           preferred_element_type=jnp.float32) * inv_sqrt_dk
            s = s - jnp.max(s, axis=-1, keepdims=True)
            p = jnp.exp(s)
            denom = jnp.sum(p, axis=-1, keepdims=True)
            p = p * pl.reciprocal(denom, approx=True)           # softmax over keys
            oh = jnp.einsum("bqk,bkd->bqd", p, vh,
                            preferred_element_type=jnp.float32)  # (B, S, dk)
            attn = attn + jnp.dot(oh.reshape(B * S, d_k),
                                  wo[lo:lo + d_k, :],
                                  preferred_element_type=jnp.float32)
        attn = attn + bo

        # Residual + LayerNorm.
        x = layernorm(x + attn, g, b)

    # Final LayerNorm, mean-pool over the sequence axis, fc_out (no bias).
    x = layernorm(x, fg_ref[...].astype(jnp.float32), fb_ref[...].astype(jnp.float32))
    pooled = jnp.mean(x.reshape(B, S, D), axis=1)                 # (B, D)
    out = jnp.dot(pooled, wout_ref[...].astype(jnp.float32),
                  preferred_element_type=jnp.float32)             # (B, O)
    o_ref[...] = out.astype(o_ref.dtype)


# ----------------------------- wrapper --------------------------------------
def transformer_encoder_vit(src, layer_params, final_ln_g, final_ln_b, w_fc_out):
    """src: (B, S, D). Returns (B, O)."""
    B, S, D = src.shape
    O = w_fc_out.shape[1]

    # Fuse wq/wk/wv into one (D, 3*Bd) weight and stack everything per layer.
    wqkv = jnp.stack(
        [jnp.concatenate([p["wq"], p["wk"], p["wv"]], axis=1) for p in layer_params])
    wo = jnp.stack([p["wo"] for p in layer_params])        # (L, Bd, D)
    bo = jnp.stack([p["bo"] for p in layer_params])        # (L, 1, D)
    lng = jnp.stack([p["ln_g"] for p in layer_params])     # (L, 1, D)
    lnb = jnp.stack([p["ln_b"] for p in layer_params])     # (L, 1, D)

    kern = functools.partial(
        vit_kernel, num_layers=len(layer_params), num_heads=NUM_HEADS,
        d_k=D_K, batch=B, seq=S)

    vmem = pl.BlockSpec(memory_space=pltpu.MemorySpace.VMEM)  # whole array in VMEM
    return pl.pallas_call(
        kern,
        out_shape=jax.ShapeDtypeStruct((B, O), src.dtype),
        in_specs=[vmem] * 9,
        out_specs=vmem,
    )(src, wqkv, wo, bo, lng, lnb, final_ln_g, final_ln_b, w_fc_out)


# ----------------------------- reference (pure JAX) -------------------------
def reference_forward(src, layer_params, final_ln_g, final_ln_b, w_fc_out):
    def layernorm(x, g, b):
        m = jnp.mean(x, axis=-1, keepdims=True)
        v = jnp.mean(jnp.square(x - m), axis=-1, keepdims=True)
        return (x - m) * jax.lax.rsqrt(v + LN_EPS) * g + b

    x = src.astype(jnp.float32)
    for p in layer_params:
        B, S, D = x.shape
        q = x @ p["wq"]
        k = x @ p["wk"]
        v = x @ p["wv"]
        q = q.reshape(B, S, NUM_HEADS, D_K).transpose(0, 2, 1, 3)
        k = k.reshape(B, S, NUM_HEADS, D_K).transpose(0, 2, 1, 3)
        v = v.reshape(B, S, NUM_HEADS, D_K).transpose(0, 2, 1, 3)
        scores = jnp.einsum("bhqd,bhkd->bhqk", q, k) / math.sqrt(D_K)
        scores = jax.nn.softmax(scores, axis=-1)
        out = jnp.einsum("bhqk,bhkd->bhqd", scores, v)
        out = out.transpose(0, 2, 1, 3).reshape(B, S, BOND_DIM)
        out = out @ p["wo"] + p["bo"][0]
        x = layernorm(x + out, p["ln_g"][0], p["ln_b"][0])
    x = layernorm(x, final_ln_g[0], final_ln_b[0])
    x = jnp.mean(x, axis=1)
    return x @ w_fc_out


# ----------------------------- main -----------------------------------------
if __name__ == "__main__":
    key = jax.random.PRNGKey(0)

    def nxt():
        nxt.key, sub = jax.random.split(nxt.key)
        return sub
    nxt.key = key

    # Deterministic parameter init (synthetic weights, small scale).
    layer_params = []
    for _ in range(NUM_LAYERS):
        layer_params.append({
            "wq": 0.1 * jax.random.normal(nxt(), (INPUT_DIM, BOND_DIM), jnp.float32),
            "wk": 0.1 * jax.random.normal(nxt(), (INPUT_DIM, BOND_DIM), jnp.float32),
            "wv": 0.1 * jax.random.normal(nxt(), (INPUT_DIM, BOND_DIM), jnp.float32),
            "wo": 0.1 * jax.random.normal(nxt(), (BOND_DIM, INPUT_DIM), jnp.float32),
            "bo": 0.1 * jax.random.normal(nxt(), (1, INPUT_DIM), jnp.float32),
            "ln_g": jnp.ones((1, INPUT_DIM), jnp.float32)
                    + 0.01 * jax.random.normal(nxt(), (1, INPUT_DIM), jnp.float32),
            "ln_b": 0.01 * jax.random.normal(nxt(), (1, INPUT_DIM), jnp.float32),
        })
    final_ln_g = jnp.ones((1, INPUT_DIM), jnp.float32) \
        + 0.01 * jax.random.normal(nxt(), (1, INPUT_DIM), jnp.float32)
    final_ln_b = 0.01 * jax.random.normal(nxt(), (1, INPUT_DIM), jnp.float32)
    w_fc_out = 0.1 * jax.random.normal(nxt(), (INPUT_DIM, OUTPUT_DIM), jnp.float32)

    src = jax.random.normal(nxt(), (BATCH, SEQ, INPUT_DIM), jnp.float32)

    out = transformer_encoder_vit(src, layer_params, final_ln_g, final_ln_b, w_fc_out)
    out = jax.block_until_ready(out)
    assert out.shape == (BATCH, OUTPUT_DIM), out.shape

    ref = reference_forward(src, layer_params, final_ln_g, final_ln_b, w_fc_out)
    ref = jax.block_until_ready(ref)
    assert jnp.allclose(out, ref, rtol=1e-2, atol=1e-2), (
        "max abs diff %e" % float(jnp.max(jnp.abs(out - ref))))

    print("KERNEL_OK")
</pallas_src>

<mosaic_0001>
module attributes {stable_mosaic.version = 11 : i64} {
  func.func @vit_kernel(%arg0: memref<2x8x32xf32, #tpu.memory_space<vmem>>, %arg1: memref<2x32x96xf32, #tpu.memory_space<vmem>>, %arg2: memref<2x32x32xf32, #tpu.memory_space<vmem>>, %arg3: memref<2x1x32xf32, #tpu.memory_space<vmem>>, %arg4: memref<2x1x32xf32, #tpu.memory_space<vmem>>, %arg5: memref<2x1x32xf32, #tpu.memory_space<vmem>>, %arg6: memref<1x32xf32, #tpu.memory_space<vmem>>, %arg7: memref<1x32xf32, #tpu.memory_space<vmem>>, %arg8: memref<32x16xf32, #tpu.memory_space<vmem>>, %arg9: memref<2x16xf32, #tpu.memory_space<vmem>>) attributes {dimension_semantics = [], scalar_prefetch = 0 : i64, scratch_operands = 0 : i64, tpu.core_type = #tpu.core_type<tc>} {
    %c0 = arith.constant 0 : index
    %c0_0 = arith.constant 0 : index
    %c0_1 = arith.constant 0 : index
    %0 = vector.load %arg0[%c0, %c0_0, %c0_1] : memref<2x8x32xf32, #tpu.memory_space<vmem>>, vector<2x8x32xf32>
    %1 = vector.shape_cast %0 : vector<2x8x32xf32> to vector<16x32xf32>
    %c0_2 = arith.constant 0 : index
    %c0_3 = arith.constant 0 : index
    %c0_4 = arith.constant 0 : index
    %2 = vector.load %arg1[%c0_2, %c0_3, %c0_4] : memref<2x32x96xf32, #tpu.memory_space<vmem>>, vector<1x32x96xf32>
    %3 = vector.shape_cast %2 : vector<1x32x96xf32> to vector<32x96xf32>
    %c0_5 = arith.constant 0 : index
    %c0_6 = arith.constant 0 : index
    %c0_7 = arith.constant 0 : index
    %4 = vector.load %arg2[%c0_5, %c0_6, %c0_7] : memref<2x32x32xf32, #tpu.memory_space<vmem>>, vector<1x32x32xf32>
    %5 = vector.shape_cast %4 : vector<1x32x32xf32> to vector<32x32xf32>
    %c0_8 = arith.constant 0 : index
    %c0_9 = arith.constant 0 : index
    %c0_10 = arith.constant 0 : index
    %6 = vector.load %arg3[%c0_8, %c0_9, %c0_10] : memref<2x1x32xf32, #tpu.memory_space<vmem>>, vector<1x1x32xf32>
    %7 = vector.shape_cast %6 : vector<1x1x32xf32> to vector<1x32xf32>
    %c0_11 = arith.constant 0 : index
    %c0_12 = arith.constant 0 : index
    %c0_13 = arith.constant 0 : index
    %8 = vector.load %arg4[%c0_11, %c0_12, %c0_13] : memref<2x1x32xf32, #tpu.memory_space<vmem>>, vector<1x1x32xf32>
    %9 = vector.shape_cast %8 : vector<1x1x32xf32> to vector<1x32xf32>
    %c0_14 = arith.constant 0 : index
    %c0_15 = arith.constant 0 : index
    %c0_16 = arith.constant 0 : index
    %10 = vector.load %arg5[%c0_14, %c0_15, %c0_16] : memref<2x1x32xf32, #tpu.memory_space<vmem>>, vector<1x1x32xf32>
    %11 = vector.shape_cast %10 : vector<1x1x32xf32> to vector<1x32xf32>
    %cst = arith.constant dense<0.000000e+00> : vector<16x96xf32>
    %12 = tpu.matmul %1, %3, %cst {dimension_numbers = #tpu.dot_dimension_numbers<[1], [0], [0], [1], [0, 0, 1, 1], [], []>} : vector<16x32xf32>, vector<32x96xf32>, vector<16x96xf32> -> vector<16x96xf32>
    %13 = vector.extract_strided_slice %12 {offsets = [0, 0], sizes = [16, 32], strides = [1, 1]} : vector<16x96xf32> to vector<16x32xf32>
    %14 = vector.shape_cast %13 : vector<16x32xf32> to vector<2x8x32xf32>
    %15 = vector.extract_strided_slice %12 {offsets = [0, 32], sizes = [16, 32], strides = [1, 1]} : vector<16x96xf32> to vector<16x32xf32>
    %16 = vector.shape_cast %15 : vector<16x32xf32> to vector<2x8x32xf32>
    %17 = vector.extract_strided_slice %12 {offsets = [0, 64], sizes = [16, 32], strides = [1, 1]} : vector<16x96xf32> to vector<16x32xf32>
    %18 = vector.shape_cast %17 : vector<16x32xf32> to vector<2x8x32xf32>
    %cst_17 = arith.constant 0.000000e+00 : f32
    %19 = vector.broadcast %cst_17 : f32 to vector<16x32xf32>
    %20 = vector.extract_strided_slice %14 {offsets = [0, 0, 0], sizes = [2, 8, 8], strides = [1, 1, 1]} : vector<2x8x32xf32> to vector<2x8x8xf32>
    %21 = vector.extract_strided_slice %16 {offsets = [0, 0, 0], sizes = [2, 8, 8], strides = [1, 1, 1]} : vector<2x8x32xf32> to vector<2x8x8xf32>
    %22 = vector.extract_strided_slice %18 {offsets = [0, 0, 0], sizes = [2, 8, 8], strides = [1, 1, 1]} : vector<2x8x32xf32> to vector<2x8x8xf32>
    "tpu.trace_start"() <{level = 10 : i32, message = "bqd,bkd->bqk"}> : () -> ()
    %cst_18 = arith.constant dense<0.000000e+00> : vector<2x8x8xf32>
    %23 = tpu.matmul %20, %21, %cst_18 {dimension_numbers = #tpu.dot_dimension_numbers<[2], [2], [1], [1], [0, 0, 0, 1, 1, 1], [0], [0]>} : vector<2x8x8xf32>, vector<2x8x8xf32>, vector<2x8x8xf32> -> vector<2x8x8xf32>
    "tpu.trace_stop"() : () -> ()
    %cst_19 = arith.constant 0.353553385 : f32
    %24 = vector.broadcast %cst_19 : f32 to vector<2x8x8xf32>
    %25 = arith.mulf %23, %24 : vector<2x8x8xf32>
    %cst_20 = arith.constant dense<0xFF800000> : vector<2x8xf32>
    %26 = vector.multi_reduction <maximumf>, %25, %cst_20 [2] : vector<2x8x8xf32> to vector<2x8xf32>
    %27 = vector.shape_cast %26 : vector<2x8xf32> to vector<2x8x1xf32>
    %28 = vector.broadcast %27 : vector<2x8x1xf32> to vector<2x8x8xf32>
    %29 = arith.subf %25, %28 : vector<2x8x8xf32>
    %30 = math.exp %29 : vector<2x8x8xf32>
    %cst_21 = arith.constant dense<0.000000e+00> : vector<2x8xf32>
    %31 = vector.multi_reduction <add>, %30, %cst_21 [2] : vector<2x8x8xf32> to vector<2x8xf32>
    %32 = vector.shape_cast %31 : vector<2x8xf32> to vector<2x8x1xf32>
    %33 = tpu.reciprocal %32 {approx = true} : vector<2x8x1xf32> -> vector<2x8x1xf32>
    %34 = vector.broadcast %33 : vector<2x8x1xf32> to vector<2x8x8xf32>
    %35 = arith.mulf %30, %34 : vector<2x8x8xf32>
    "tpu.trace_start"() <{level = 10 : i32, message = "bqk,bkd->bqd"}> : () -> ()
    %cst_22 = arith.constant dense<0.000000e+00> : vector<2x8x8xf32>
    %36 = tpu.matmul %35, %22, %cst_22 {dimension_numbers = #tpu.dot_dimension_numbers<[2], [1], [1], [2], [0, 0, 0, 1, 1, 2], [0], [0]>} : vector<2x8x8xf32>, vector<2x8x8xf32>, vector<2x8x8xf32> -> vector<2x8x8xf32>
    "tpu.trace_stop"() : () -> ()
    %37 = vector.shape_cast %36 : vector<2x8x8xf32> to vector<16x8xf32>
    %38 = vector.extract_strided_slice %5 {offsets = [0, 0], sizes = [8, 32], strides = [1, 1]} : vector<32x32xf32> to vector<8x32xf32>
    %cst_23 = arith.constant dense<0.000000e+00> : vector<16x32xf32>
    %39 = tpu.matmul %37, %38, %cst_23 {dimension_numbers = #tpu.dot_dimension_numbers<[1], [0], [0], [1], [0, 0, 1, 1], [], []>} : vector<16x8xf32>, vector<8x32xf32>, vector<16x32xf32> -> vector<16x32xf32>
    %40 = arith.addf %19, %39 : vector<16x32xf32>
    %41 = vector.extract_strided_slice %14 {offsets = [0, 0, 8], sizes = [2, 8, 8], strides = [1, 1, 1]} : vector<2x8x32xf32> to vector<2x8x8xf32>
    %42 = vector.extract_strided_slice %16 {offsets = [0, 0, 8], sizes = [2, 8, 8], strides = [1, 1, 1]} : vector<2x8x32xf32> to vector<2x8x8xf32>
    %43 = vector.extract_strided_slice %18 {offsets = [0, 0, 8], sizes = [2, 8, 8], strides = [1, 1, 1]} : vector<2x8x32xf32> to vector<2x8x8xf32>
    "tpu.trace_start"() <{level = 10 : i32, message = "bqd,bkd->bqk"}> : () -> ()
    %cst_24 = arith.constant dense<0.000000e+00> : vector<2x8x8xf32>
    %44 = tpu.matmul %41, %42, %cst_24 {dimension_numbers = #tpu.dot_dimension_numbers<[2], [2], [1], [1], [0, 0, 0, 1, 1, 1], [0], [0]>} : vector<2x8x8xf32>, vector<2x8x8xf32>, vector<2x8x8xf32> -> vector<2x8x8xf32>
    "tpu.trace_stop"() : () -> ()
    %cst_25 = arith.constant 0.353553385 : f32
    %45 = vector.broadcast %cst_25 : f32 to vector<2x8x8xf32>
    %46 = arith.mulf %44, %45 : vector<2x8x8xf32>
    %cst_26 = arith.constant dense<0xFF800000> : vector<2x8xf32>
    %47 = vector.multi_reduction <maximumf>, %46, %cst_26 [2] : vector<2x8x8xf32> to vector<2x8xf32>
    %48 = vector.shape_cast %47 : vector<2x8xf32> to vector<2x8x1xf32>
    %49 = vector.broadcast %48 : vector<2x8x1xf32> to vector<2x8x8xf32>
    %50 = arith.subf %46, %49 : vector<2x8x8xf32>
    %51 = math.exp %50 : vector<2x8x8xf32>
    %cst_27 = arith.constant dense<0.000000e+00> : vector<2x8xf32>
    %52 = vector.multi_reduction <add>, %51, %cst_27 [2] : vector<2x8x8xf32> to vector<2x8xf32>
    %53 = vector.shape_cast %52 : vector<2x8xf32> to vector<2x8x1xf32>
    %54 = tpu.reciprocal %53 {approx = true} : vector<2x8x1xf32> -> vector<2x8x1xf32>
    %55 = vector.broadcast %54 : vector<2x8x1xf32> to vector<2x8x8xf32>
    %56 = arith.mulf %51, %55 : vector<2x8x8xf32>
    "tpu.trace_start"() <{level = 10 : i32, message = "bqk,bkd->bqd"}> : () -> ()
    %cst_28 = arith.constant dense<0.000000e+00> : vector<2x8x8xf32>
    %57 = tpu.matmul %56, %43, %cst_28 {dimension_numbers = #tpu.dot_dimension_numbers<[2], [1], [1], [2], [0, 0, 0, 1, 1, 2], [0], [0]>} : vector<2x8x8xf32>, vector<2x8x8xf32>, vector<2x8x8xf32> -> vector<2x8x8xf32>
    "tpu.trace_stop"() : () -> ()
    %58 = vector.shape_cast %57 : vector<2x8x8xf32> to vector<16x8xf32>
    %59 = vector.extract_strided_slice %5 {offsets = [8, 0], sizes = [8, 32], strides = [1, 1]} : vector<32x32xf32> to vector<8x32xf32>
    %cst_29 = arith.constant dense<0.000000e+00> : vector<16x32xf32>
    %60 = tpu.matmul %58, %59, %cst_29 {dimension_numbers = #tpu.dot_dimension_numbers<[1], [0], [0], [1], [0, 0, 1, 1], [], []>} : vector<16x8xf32>, vector<8x32xf32>, vector<16x32xf32> -> vector<16x32xf32>
    %61 = arith.addf %40, %60 : vector<16x32xf32>
    %62 = vector.extract_strided_slice %14 {offsets = [0, 0, 16], sizes = [2, 8, 8], strides = [1, 1, 1]} : vector<2x8x32xf32> to vector<2x8x8xf32>
    %63 = vector.extract_strided_slice %16 {offsets = [0, 0, 16], sizes = [2, 8, 8], strides = [1, 1, 1]} : vector<2x8x32xf32> to vector<2x8x8xf32>
    %64 = vector.extract_strided_slice %18 {offsets = [0, 0, 16], sizes = [2, 8, 8], strides = [1, 1, 1]} : vector<2x8x32xf32> to vector<2x8x8xf32>
    "tpu.trace_start"() <{level = 10 : i32, message = "bqd,bkd->bqk"}> : () -> ()
    %cst_30 = arith.constant dense<0.000000e+00> : vector<2x8x8xf32>
    %65 = tpu.matmul %62, %63, %cst_30 {dimension_numbers = #tpu.dot_dimension_numbers<[2], [2], [1], [1], [0, 0, 0, 1, 1, 1], [0], [0]>} : vector<2x8x8xf32>, vector<2x8x8xf32>, vector<2x8x8xf32> -> vector<2x8x8xf32>
    "tpu.trace_stop"() : () -> ()
    %cst_31 = arith.constant 0.353553385 : f32
    %66 = vector.broadcast %cst_31 : f32 to vector<2x8x8xf32>
    %67 = arith.mulf %65, %66 : vector<2x8x8xf32>
    %cst_32 = arith.constant dense<0xFF800000> : vector<2x8xf32>
    %68 = vector.multi_reduction <maximumf>, %67, %cst_32 [2] : vector<2x8x8xf32> to vector<2x8xf32>
    %69 = vector.shape_cast %68 : vector<2x8xf32> to vector<2x8x1xf32>
    %70 = vector.broadcast %69 : vector<2x8x1xf32> to vector<2x8x8xf32>
    %71 = arith.subf %67, %70 : vector<2x8x8xf32>
    %72 = math.exp %71 : vector<2x8x8xf32>
    %cst_33 = arith.constant dense<0.000000e+00> : vector<2x8xf32>
    %73 = vector.multi_reduction <add>, %72, %cst_33 [2] : vector<2x8x8xf32> to vector<2x8xf32>
    %74 = vector.shape_cast %73 : vector<2x8xf32> to vector<2x8x1xf32>
    %75 = tpu.reciprocal %74 {approx = true} : vector<2x8x1xf32> -> vector<2x8x1xf32>
    %76 = vector.broadcast %75 : vector<2x8x1xf32> to vector<2x8x8xf32>
    %77 = arith.mulf %72, %76 : vector<2x8x8xf32>
    "tpu.trace_start"() <{level = 10 : i32, message = "bqk,bkd->bqd"}> : () -> ()
    %cst_34 = arith.constant dense<0.000000e+00> : vector<2x8x8xf32>
    %78 = tpu.matmul %77, %64, %cst_34 {dimension_numbers = #tpu.dot_dimension_numbers<[2], [1], [1], [2], [0, 0, 0, 1, 1, 2], [0], [0]>} : vector<2x8x8xf32>, vector<2x8x8xf32>, vector<2x8x8xf32> -> vector<2x8x8xf32>
    "tpu.trace_stop"() : () -> ()
    %79 = vector.shape_cast %78 : vector<2x8x8xf32> to vector<16x8xf32>
    %80 = vector.extract_strided_slice %5 {offsets = [16, 0], sizes = [8, 32], strides = [1, 1]} : vector<32x32xf32> to vector<8x32xf32>
    %cst_35 = arith.constant dense<0.000000e+00> : vector<16x32xf32>
    %81 = tpu.matmul %79, %80, %cst_35 {dimension_numbers = #tpu.dot_dimension_numbers<[1], [0], [0], [1], [0, 0, 1, 1], [], []>} : vector<16x8xf32>, vector<8x32xf32>, vector<16x32xf32> -> vector<16x32xf32>
    %82 = arith.addf %61, %81 : vector<16x32xf32>
    %83 = vector.extract_strided_slice %14 {offsets = [0, 0, 24], sizes = [2, 8, 8], strides = [1, 1, 1]} : vector<2x8x32xf32> to vector<2x8x8xf32>
    %84 = vector.extract_strided_slice %16 {offsets = [0, 0, 24], sizes = [2, 8, 8], strides = [1, 1, 1]} : vector<2x8x32xf32> to vector<2x8x8xf32>
    %85 = vector.extract_strided_slice %18 {offsets = [0, 0, 24], sizes = [2, 8, 8], strides = [1, 1, 1]} : vector<2x8x32xf32> to vector<2x8x8xf32>
    "tpu.trace_start"() <{level = 10 : i32, message = "bqd,bkd->bqk"}> : () -> ()
    %cst_36 = arith.constant dense<0.000000e+00> : vector<2x8x8xf32>
    %86 = tpu.matmul %83, %84, %cst_36 {dimension_numbers = #tpu.dot_dimension_numbers<[2], [2], [1], [1], [0, 0, 0, 1, 1, 1], [0], [0]>} : vector<2x8x8xf32>, vector<2x8x8xf32>, vector<2x8x8xf32> -> vector<2x8x8xf32>
    "tpu.trace_stop"() : () -> ()
    %cst_37 = arith.constant 0.353553385 : f32
    %87 = vector.broadcast %cst_37 : f32 to vector<2x8x8xf32>
    %88 = arith.mulf %86, %87 : vector<2x8x8xf32>
    %cst_38 = arith.constant dense<0xFF800000> : vector<2x8xf32>
    %89 = vector.multi_reduction <maximumf>, %88, %cst_38 [2] : vector<2x8x8xf32> to vector<2x8xf32>
    %90 = vector.shape_cast %89 : vector<2x8xf32> to vector<2x8x1xf32>
    %91 = vector.broadcast %90 : vector<2x8x1xf32> to vector<2x8x8xf32>
    %92 = arith.subf %88, %91 : vector<2x8x8xf32>
    %93 = math.exp %92 : vector<2x8x8xf32>
    %cst_39 = arith.constant dense<0.000000e+00> : vector<2x8xf32>
    %94 = vector.multi_reduction <add>, %93, %cst_39 [2] : vector<2x8x8xf32> to vector<2x8xf32>
    %95 = vector.shape_cast %94 : vector<2x8xf32> to vector<2x8x1xf32>
    %96 = tpu.reciprocal %95 {approx = true} : vector<2x8x1xf32> -> vector<2x8x1xf32>
    %97 = vector.broadcast %96 : vector<2x8x1xf32> to vector<2x8x8xf32>
    %98 = arith.mulf %93, %97 : vector<2x8x8xf32>
    "tpu.trace_start"() <{level = 10 : i32, message = "bqk,bkd->bqd"}> : () -> ()
    %cst_40 = arith.constant dense<0.000000e+00> : vector<2x8x8xf32>
    %99 = tpu.matmul %98, %85, %cst_40 {dimension_numbers = #tpu.dot_dimension_numbers<[2], [1], [1], [2], [0, 0, 0, 1, 1, 2], [0], [0]>} : vector<2x8x8xf32>, vector<2x8x8xf32>, vector<2x8x8xf32> -> vector<2x8x8xf32>
    "tpu.trace_stop"() : () -> ()
    %100 = vector.shape_cast %99 : vector<2x8x8xf32> to vector<16x8xf32>
    %101 = vector.extract_strided_slice %5 {offsets = [24, 0], sizes = [8, 32], strides = [1, 1]} : vector<32x32xf32> to vector<8x32xf32>
    %cst_41 = arith.constant dense<0.000000e+00> : vector<16x32xf32>
    %102 = tpu.matmul %100, %101, %cst_41 {dimension_numbers = #tpu.dot_dimension_numbers<[1], [0], [0], [1], [0, 0, 1, 1], [], []>} : vector<16x8xf32>, vector<8x32xf32>, vector<16x32xf32> -> vector<16x32xf32>
    %103 = arith.addf %82, %102 : vector<16x32xf32>
    %104 = vector.broadcast %7 : vector<1x32xf32> to vector<16x32xf32>
    %105 = arith.addf %103, %104 : vector<16x32xf32>
    %106 = arith.addf %1, %105 : vector<16x32xf32>
    %cst_42 = arith.constant dense<0.000000e+00> : vector<16xf32>
    %107 = vector.multi_reduction <add>, %106, %cst_42 [1] : vector<16x32xf32> to vector<16xf32>
    %108 = vector.shape_cast %107 : vector<16xf32> to vector<16x1xf32>
    %cst_43 = arith.constant 3.200000e+01 : f32
    %109 = vector.broadcast %cst_43 : f32 to vector<16x1xf32>
    %110 = arith.divf %108, %109 : vector<16x1xf32>
    %111 = vector.broadcast %110 : vector<16x1xf32> to vector<16x32xf32>
    %112 = arith.subf %106, %111 : vector<16x32xf32>
    %113 = arith.mulf %112, %112 : vector<16x32xf32>
    %cst_44 = arith.constant dense<0.000000e+00> : vector<16xf32>
    %114 = vector.multi_reduction <add>, %113, %cst_44 [1] : vector<16x32xf32> to vector<16xf32>
    %115 = vector.shape_cast %114 : vector<16xf32> to vector<16x1xf32>
    %cst_45 = arith.constant 3.200000e+01 : f32
    %116 = vector.broadcast %cst_45 : f32 to vector<16x1xf32>
    %117 = arith.divf %115, %116 : vector<16x1xf32>
    %118 = vector.broadcast %110 : vector<16x1xf32> to vector<16x32xf32>
    %119 = arith.subf %106, %118 : vector<16x32xf32>
    %cst_46 = arith.constant 9.99999974E-6 : f32
    %120 = vector.broadcast %cst_46 : f32 to vector<16x1xf32>
    %121 = arith.addf %117, %120 : vector<16x1xf32>
    %122 = math.rsqrt %121 : vector<16x1xf32>
    %123 = vector.broadcast %122 : vector<16x1xf32> to vector<16x32xf32>
    %124 = arith.mulf %119, %123 : vector<16x32xf32>
    %125 = vector.broadcast %9 : vector<1x32xf32> to vector<16x32xf32>
    %126 = arith.mulf %124, %125 : vector<16x32xf32>
    %127 = vector.broadcast %11 : vector<1x32xf32> to vector<16x32xf32>
    %128 = arith.addf %126, %127 : vector<16x32xf32>
    %c1 = arith.constant 1 : index
    %c0_47 = arith.constant 0 : index
    %c0_48 = arith.constant 0 : index
    %129 = vector.load %arg1[%c1, %c0_47, %c0_48] : memref<2x32x96xf32, #tpu.memory_space<vmem>>, vector<1x32x96xf32>
    %130 = vector.shape_cast %129 : vector<1x32x96xf32> to vector<32x96xf32>
    %c1_49 = arith.constant 1 : index
    %c0_50 = arith.constant 0 : index
    %c0_51 = arith.constant 0 : index
    %131 = vector.load %arg2[%c1_49, %c0_50, %c0_51] : memref<2x32x32xf32, #tpu.memory_space<vmem>>, vector<1x32x32xf32>
    %132 = vector.shape_cast %131 : vector<1x32x32xf32> to vector<32x32xf32>
    %c1_52 = arith.constant 1 : index
    %c0_53 = arith.constant 0 : index
    %c0_54 = arith.constant 0 : index
    %133 = vector.load %arg3[%c1_52, %c0_53, %c0_54] : memref<2x1x32xf32, #tpu.memory_space<vmem>>, vector<1x1x32xf32>
    %134 = vector.shape_cast %133 : vector<1x1x32xf32> to vector<1x32xf32>
    %c1_55 = arith.constant 1 : index
    %c0_56 = arith.constant 0 : index
    %c0_57 = arith.constant 0 : index
    %135 = vector.load %arg4[%c1_55, %c0_56, %c0_57] : memref<2x1x32xf32, #tpu.memory_space<vmem>>, vector<1x1x32xf32>
    %136 = vector.shape_cast %135 : vector<1x1x32xf32> to vector<1x32xf32>
    %c1_58 = arith.constant 1 : index
    %c0_59 = arith.constant 0 : index
    %c0_60 = arith.constant 0 : index
    %137 = vector.load %arg5[%c1_58, %c0_59, %c0_60] : memref<2x1x32xf32, #tpu.memory_space<vmem>>, vector<1x1x32xf32>
    %138 = vector.shape_cast %137 : vector<1x1x32xf32> to vector<1x32xf32>
    %cst_61 = arith.constant dense<0.000000e+00> : vector<16x96xf32>
    %139 = tpu.matmul %128, %130, %cst_61 {dimension_numbers = #tpu.dot_dimension_numbers<[1], [0], [0], [1], [0, 0, 1, 1], [], []>} : vector<16x32xf32>, vector<32x96xf32>, vector<16x96xf32> -> vector<16x96xf32>
    %140 = vector.extract_strided_slice %139 {offsets = [0, 0], sizes = [16, 32], strides = [1, 1]} : vector<16x96xf32> to vector<16x32xf32>
    %141 = vector.shape_cast %140 : vector<16x32xf32> to vector<2x8x32xf32>
    %142 = vector.extract_strided_slice %139 {offsets = [0, 32], sizes = [16, 32], strides = [1, 1]} : vector<16x96xf32> to vector<16x32xf32>
    %143 = vector.shape_cast %142 : vector<16x32xf32> to vector<2x8x32xf32>
    %144 = vector.extract_strided_slice %139 {offsets = [0, 64], sizes = [16, 32], strides = [1, 1]} : vector<16x96xf32> to vector<16x32xf32>
    %145 = vector.shape_cast %144 : vector<16x32xf32> to vector<2x8x32xf32>
    %cst_62 = arith.constant 0.000000e+00 : f32
    %146 = vector.broadcast %cst_62 : f32 to vector<16x32xf32>
    %147 = vector.extract_strided_slice %141 {offsets = [0, 0, 0], sizes = [2, 8, 8], strides = [1, 1, 1]} : vector<2x8x32xf32> to vector<2x8x8xf32>
    %148 = vector.extract_strided_slice %143 {offsets = [0, 0, 0], sizes = [2, 8, 8], strides = [1, 1, 1]} : vector<2x8x32xf32> to vector<2x8x8xf32>
    %149 = vector.extract_strided_slice %145 {offsets = [0, 0, 0], sizes = [2, 8, 8], strides = [1, 1, 1]} : vector<2x8x32xf32> to vector<2x8x8xf32>
    "tpu.trace_start"() <{level = 10 : i32, message = "bqd,bkd->bqk"}> : () -> ()
    %cst_63 = arith.constant dense<0.000000e+00> : vector<2x8x8xf32>
    %150 = tpu.matmul %147, %148, %cst_63 {dimension_numbers = #tpu.dot_dimension_numbers<[2], [2], [1], [1], [0, 0, 0, 1, 1, 1], [0], [0]>} : vector<2x8x8xf32>, vector<2x8x8xf32>, vector<2x8x8xf32> -> vector<2x8x8xf32>
    "tpu.trace_stop"() : () -> ()
    %cst_64 = arith.constant 0.353553385 : f32
    %151 = vector.broadcast %cst_64 : f32 to vector<2x8x8xf32>
    %152 = arith.mulf %150, %151 : vector<2x8x8xf32>
    %cst_65 = arith.constant dense<0xFF800000> : vector<2x8xf32>
    %153 = vector.multi_reduction <maximumf>, %152, %cst_65 [2] : vector<2x8x8xf32> to vector<2x8xf32>
    %154 = vector.shape_cast %153 : vector<2x8xf32> to vector<2x8x1xf32>
    %155 = vector.broadcast %154 : vector<2x8x1xf32> to vector<2x8x8xf32>
    %156 = arith.subf %152, %155 : vector<2x8x8xf32>
    %157 = math.exp %156 : vector<2x8x8xf32>
    %cst_66 = arith.constant dense<0.000000e+00> : vector<2x8xf32>
    %158 = vector.multi_reduction <add>, %157, %cst_66 [2] : vector<2x8x8xf32> to vector<2x8xf32>
    %159 = vector.shape_cast %158 : vector<2x8xf32> to vector<2x8x1xf32>
    %160 = tpu.reciprocal %159 {approx = true} : vector<2x8x1xf32> -> vector<2x8x1xf32>
    %161 = vector.broadcast %160 : vector<2x8x1xf32> to vector<2x8x8xf32>
    %162 = arith.mulf %157, %161 : vector<2x8x8xf32>
    "tpu.trace_start"() <{level = 10 : i32, message = "bqk,bkd->bqd"}> : () -> ()
    %cst_67 = arith.constant dense<0.000000e+00> : vector<2x8x8xf32>
    %163 = tpu.matmul %162, %149, %cst_67 {dimension_numbers = #tpu.dot_dimension_numbers<[2], [1], [1], [2], [0, 0, 0, 1, 1, 2], [0], [0]>} : vector<2x8x8xf32>, vector<2x8x8xf32>, vector<2x8x8xf32> -> vector<2x8x8xf32>
    "tpu.trace_stop"() : () -> ()
    %164 = vector.shape_cast %163 : vector<2x8x8xf32> to vector<16x8xf32>
    %165 = vector.extract_strided_slice %132 {offsets = [0, 0], sizes = [8, 32], strides = [1, 1]} : vector<32x32xf32> to vector<8x32xf32>
    %cst_68 = arith.constant dense<0.000000e+00> : vector<16x32xf32>
    %166 = tpu.matmul %164, %165, %cst_68 {dimension_numbers = #tpu.dot_dimension_numbers<[1], [0], [0], [1], [0, 0, 1, 1], [], []>} : vector<16x8xf32>, vector<8x32xf32>, vector<16x32xf32> -> vector<16x32xf32>
    %167 = arith.addf %146, %166 : vector<16x32xf32>
    %168 = vector.extract_strided_slice %141 {offsets = [0, 0, 8], sizes = [2, 8, 8], strides = [1, 1, 1]} : vector<2x8x32xf32> to vector<2x8x8xf32>
    %169 = vector.extract_strided_slice %143 {offsets = [0, 0, 8], sizes = [2, 8, 8], strides = [1, 1, 1]} : vector<2x8x32xf32> to vector<2x8x8xf32>
    %170 = vector.extract_strided_slice %145 {offsets = [0, 0, 8], sizes = [2, 8, 8], strides = [1, 1, 1]} : vector<2x8x32xf32> to vector<2x8x8xf32>
    "tpu.trace_start"() <{level = 10 : i32, message = "bqd,bkd->bqk"}> : () -> ()
    %cst_69 = arith.constant dense<0.000000e+00> : vector<2x8x8xf32>
    %171 = tpu.matmul %168, %169, %cst_69 {dimension_numbers = #tpu.dot_dimension_numbers<[2], [2], [1], [1], [0, 0, 0, 1, 1, 1], [0], [0]>} : vector<2x8x8xf32>, vector<2x8x8xf32>, vector<2x8x8xf32> -> vector<2x8x8xf32>
    "tpu.trace_stop"() : () -> ()
    %cst_70 = arith.constant 0.353553385 : f32
    %172 = vector.broadcast %cst_70 : f32 to vector<2x8x8xf32>
    %173 = arith.mulf %171, %172 : vector<2x8x8xf32>
    %cst_71 = arith.constant dense<0xFF800000> : vector<2x8xf32>
    %174 = vector.multi_reduction <maximumf>, %173, %cst_71 [2] : vector<2x8x8xf32> to vector<2x8xf32>
    %175 = vector.shape_cast %174 : vector<2x8xf32> to vector<2x8x1xf32>
    %176 = vector.broadcast %175 : vector<2x8x1xf32> to vector<2x8x8xf32>
    %177 = arith.subf %173, %176 : vector<2x8x8xf32>
    %178 = math.exp %177 : vector<2x8x8xf32>
    %cst_72 = arith.constant dense<0.000000e+00> : vector<2x8xf32>
    %179 = vector.multi_reduction <add>, %178, %cst_72 [2] : vector<2x8x8xf32> to vector<2x8xf32>
    %180 = vector.shape_cast %179 : vector<2x8xf32> to vector<2x8x1xf32>
    %181 = tpu.reciprocal %180 {approx = true} : vector<2x8x1xf32> -> vector<2x8x1xf32>
    %182 = vector.broadcast %181 : vector<2x8x1xf32> to vector<2x8x8xf32>
    %183 = arith.mulf %178, %182 : vector<2x8x8xf32>
    "tpu.trace_start"() <{level = 10 : i32, message = "bqk,bkd->bqd"}> : () -> ()
    %cst_73 = arith.constant dense<0.000000e+00> : vector<2x8x8xf32>
    %184 = tpu.matmul %183, %170, %cst_73 {dimension_numbers = #tpu.dot_dimension_numbers<[2], [1], [1], [2], [0, 0, 0, 1, 1, 2], [0], [0]>} : vector<2x8x8xf32>, vector<2x8x8xf32>, vector<2x8x8xf32> -> vector<2x8x8xf32>
    "tpu.trace_stop"() : () -> ()
    %185 = vector.shape_cast %184 : vector<2x8x8xf32> to vector<16x8xf32>
    %186 = vector.extract_strided_slice %132 {offsets = [8, 0], sizes = [8, 32], strides = [1, 1]} : vector<32x32xf32> to vector<8x32xf32>
    %cst_74 = arith.constant dense<0.000000e+00> : vector<16x32xf32>
    %187 = tpu.matmul %185, %186, %cst_74 {dimension_numbers = #tpu.dot_dimension_numbers<[1], [0], [0], [1], [0, 0, 1, 1], [], []>} : vector<16x8xf32>, vector<8x32xf32>, vector<16x32xf32> -> vector<16x32xf32>
    %188 = arith.addf %167, %187 : vector<16x32xf32>
    %189 = vector.extract_strided_slice %141 {offsets = [0, 0, 16], sizes = [2, 8, 8], strides = [1, 1, 1]} : vector<2x8x32xf32> to vector<2x8x8xf32>
    %190 = vector.extract_strided_slice %143 {offsets = [0, 0, 16], sizes = [2, 8, 8], strides = [1, 1, 1]} : vector<2x8x32xf32> to vector<2x8x8xf32>
    %191 = vector.extract_strided_slice %145 {offsets = [0, 0, 16], sizes = [2, 8, 8], strides = [1, 1, 1]} : vector<2x8x32xf32> to vector<2x8x8xf32>
    "tpu.trace_start"() <{level = 10 : i32, message = "bqd,bkd->bqk"}> : () -> ()
    %cst_75 = arith.constant dense<0.000000e+00> : vector<2x8x8xf32>
    %192 = tpu.matmul %189, %190, %cst_75 {dimension_numbers = #tpu.dot_dimension_numbers<[2], [2], [1], [1], [0, 0, 0, 1, 1, 1], [0], [0]>} : vector<2x8x8xf32>, vector<2x8x8xf32>, vector<2x8x8xf32> -> vector<2x8x8xf32>
    "tpu.trace_stop"() : () -> ()
    %cst_76 = arith.constant 0.353553385 : f32
    %193 = vector.broadcast %cst_76 : f32 to vector<2x8x8xf32>
    %194 = arith.mulf %192, %193 : vector<2x8x8xf32>
    %cst_77 = arith.constant dense<0xFF800000> : vector<2x8xf32>
    %195 = vector.multi_reduction <maximumf>, %194, %cst_77 [2] : vector<2x8x8xf32> to vector<2x8xf32>
    %196 = vector.shape_cast %195 : vector<2x8xf32> to vector<2x8x1xf32>
    %197 = vector.broadcast %196 : vector<2x8x1xf32> to vector<2x8x8xf32>
    %198 = arith.subf %194, %197 : vector<2x8x8xf32>
    %199 = math.exp %198 : vector<2x8x8xf32>
    %cst_78 = arith.constant dense<0.000000e+00> : vector<2x8xf32>
    %200 = vector.multi_reduction <add>, %199, %cst_78 [2] : vector<2x8x8xf32> to vector<2x8xf32>
    %201 = vector.shape_cast %200 : vector<2x8xf32> to vector<2x8x1xf32>
    %202 = tpu.reciprocal %201 {approx = true} : vector<2x8x1xf32> -> vector<2x8x1xf32>
    %203 = vector.broadcast %202 : vector<2x8x1xf32> to vector<2x8x8xf32>
    %204 = arith.mulf %199, %203 : vector<2x8x8xf32>
    "tpu.trace_start"() <{level = 10 : i32, message = "bqk,bkd->bqd"}> : () -> ()
    %cst_79 = arith.constant dense<0.000000e+00> : vector<2x8x8xf32>
    %205 = tpu.matmul %204, %191, %cst_79 {dimension_numbers = #tpu.dot_dimension_numbers<[2], [1], [1], [2], [0, 0, 0, 1, 1, 2], [0], [0]>} : vector<2x8x8xf32>, vector<2x8x8xf32>, vector<2x8x8xf32> -> vector<2x8x8xf32>
    "tpu.trace_stop"() : () -> ()
    %206 = vector.shape_cast %205 : vector<2x8x8xf32> to vector<16x8xf32>
    %207 = vector.extract_strided_slice %132 {offsets = [16, 0], sizes = [8, 32], strides = [1, 1]} : vector<32x32xf32> to vector<8x32xf32>
    %cst_80 = arith.constant dense<0.000000e+00> : vector<16x32xf32>
    %208 = tpu.matmul %206, %207, %cst_80 {dimension_numbers = #tpu.dot_dimension_numbers<[1], [0], [0], [1], [0, 0, 1, 1], [], []>} : vector<16x8xf32>, vector<8x32xf32>, vector<16x32xf32> -> vector<16x32xf32>
    %209 = arith.addf %188, %208 : vector<16x32xf32>
    %210 = vector.extract_strided_slice %141 {offsets = [0, 0, 24], sizes = [2, 8, 8], strides = [1, 1, 1]} : vector<2x8x32xf32> to vector<2x8x8xf32>
    %211 = vector.extract_strided_slice %143 {offsets = [0, 0, 24], sizes = [2, 8, 8], strides = [1, 1, 1]} : vector<2x8x32xf32> to vector<2x8x8xf32>
    %212 = vector.extract_strided_slice %145 {offsets = [0, 0, 24], sizes = [2, 8, 8], strides = [1, 1, 1]} : vector<2x8x32xf32> to vector<2x8x8xf32>
    "tpu.trace_start"() <{level = 10 : i32, message = "bqd,bkd->bqk"}> : () -> ()
    %cst_81 = arith.constant dense<0.000000e+00> : vector<2x8x8xf32>
    %213 = tpu.matmul %210, %211, %cst_81 {dimension_numbers = #tpu.dot_dimension_numbers<[2], [2], [1], [1], [0, 0, 0, 1, 1, 1], [0], [0]>} : vector<2x8x8xf32>, vector<2x8x8xf32>, vector<2x8x8xf32> -> vector<2x8x8xf32>
    "tpu.trace_stop"() : () -> ()
    %cst_82 = arith.constant 0.353553385 : f32
    %214 = vector.broadcast %cst_82 : f32 to vector<2x8x8xf32>
    %215 = arith.mulf %213, %214 : vector<2x8x8xf32>
    %cst_83 = arith.constant dense<0xFF800000> : vector<2x8xf32>
    %216 = vector.multi_reduction <maximumf>, %215, %cst_83 [2] : vector<2x8x8xf32> to vector<2x8xf32>
    %217 = vector.shape_cast %216 : vector<2x8xf32> to vector<2x8x1xf32>
    %218 = vector.broadcast %217 : vector<2x8x1xf32> to vector<2x8x8xf32>
    %219 = arith.subf %215, %218 : vector<2x8x8xf32>
    %220 = math.exp %219 : vector<2x8x8xf32>
    %cst_84 = arith.constant dense<0.000000e+00> : vector<2x8xf32>
    %221 = vector.multi_reduction <add>, %220, %cst_84 [2] : vector<2x8x8xf32> to vector<2x8xf32>
    %222 = vector.shape_cast %221 : vector<2x8xf32> to vector<2x8x1xf32>
    %223 = tpu.reciprocal %222 {approx = true} : vector<2x8x1xf32> -> vector<2x8x1xf32>
    %224 = vector.broadcast %223 : vector<2x8x1xf32> to vector<2x8x8xf32>
    %225 = arith.mulf %220, %224 : vector<2x8x8xf32>
    "tpu.trace_start"() <{level = 10 : i32, message = "bqk,bkd->bqd"}> : () -> ()
    %cst_85 = arith.constant dense<0.000000e+00> : vector<2x8x8xf32>
    %226 = tpu.matmul %225, %212, %cst_85 {dimension_numbers = #tpu.dot_dimension_numbers<[2], [1], [1], [2], [0, 0, 0, 1, 1, 2], [0], [0]>} : vector<2x8x8xf32>, vector<2x8x8xf32>, vector<2x8x8xf32> -> vector<2x8x8xf32>
    "tpu.trace_stop"() : () -> ()
    %227 = vector.shape_cast %226 : vector<2x8x8xf32> to vector<16x8xf32>
    %228 = vector.extract_strided_slice %132 {offsets = [24, 0], sizes = [8, 32], strides = [1, 1]} : vector<32x32xf32> to vector<8x32xf32>
    %cst_86 = arith.constant dense<0.000000e+00> : vector<16x32xf32>
    %229 = tpu.matmul %227, %228, %cst_86 {dimension_numbers = #tpu.dot_dimension_numbers<[1], [0], [0], [1], [0, 0, 1, 1], [], []>} : vector<16x8xf32>, vector<8x32xf32>, vector<16x32xf32> -> vector<16x32xf32>
    %230 = arith.addf %209, %229 : vector<16x32xf32>
    %231 = vector.broadcast %134 : vector<1x32xf32> to vector<16x32xf32>
    %232 = arith.addf %230, %231 : vector<16x32xf32>
    %233 = arith.addf %128, %232 : vector<16x32xf32>
    %cst_87 = arith.constant dense<0.000000e+00> : vector<16xf32>
    %234 = vector.multi_reduction <add>, %233, %cst_87 [1] : vector<16x32xf32> to vector<16xf32>
    %235 = vector.shape_cast %234 : vector<16xf32> to vector<16x1xf32>
    %cst_88 = arith.constant 3.200000e+01 : f32
    %236 = vector.broadcast %cst_88 : f32 to vector<16x1xf32>
    %237 = arith.divf %235, %236 : vector<16x1xf32>
    %238 = vector.broadcast %237 : vector<16x1xf32> to vector<16x32xf32>
    %239 = arith.subf %233, %238 : vector<16x32xf32>
    %240 = arith.mulf %239, %239 : vector<16x32xf32>
    %cst_89 = arith.constant dense<0.000000e+00> : vector<16xf32>
    %241 = vector.multi_reduction <add>, %240, %cst_89 [1] : vector<16x32xf32> to vector<16xf32>
    %242 = vector.shape_cast %241 : vector<16xf32> to vector<16x1xf32>
    %cst_90 = arith.constant 3.200000e+01 : f32
    %243 = vector.broadcast %cst_90 : f32 to vector<16x1xf32>
    %244 = arith.divf %242, %243 : vector<16x1xf32>
    %245 = vector.broadcast %237 : vector<16x1xf32> to vector<16x32xf32>
    %246 = arith.subf %233, %245 : vector<16x32xf32>
    %cst_91 = arith.constant 9.99999974E-6 : f32
    %247 = vector.broadcast %cst_91 : f32 to vector<16x1xf32>
    %248 = arith.addf %244, %247 : vector<16x1xf32>
    %249 = math.rsqrt %248 : vector<16x1xf32>
    %250 = vector.broadcast %249 : vector<16x1xf32> to vector<16x32xf32>
    %251 = arith.mulf %246, %250 : vector<16x32xf32>
    %252 = vector.broadcast %136 : vector<1x32xf32> to vector<16x32xf32>
    %253 = arith.mulf %251, %252 : vector<16x32xf32>
    %254 = vector.broadcast %138 : vector<1x32xf32> to vector<16x32xf32>
    %255 = arith.addf %253, %254 : vector<16x32xf32>
    %c0_92 = arith.constant 0 : index
    %c0_93 = arith.constant 0 : index
    %256 = vector.load %arg6[%c0_92, %c0_93] : memref<1x32xf32, #tpu.memory_space<vmem>>, vector<1x32xf32>
    %c0_94 = arith.constant 0 : index
    %c0_95 = arith.constant 0 : index
    %257 = vector.load %arg7[%c0_94, %c0_95] : memref<1x32xf32, #tpu.memory_space<vmem>>, vector<1x32xf32>
    %cst_96 = arith.constant dense<0.000000e+00> : vector<16xf32>
    %258 = vector.multi_reduction <add>, %255, %cst_96 [1] : vector<16x32xf32> to vector<16xf32>
    %259 = vector.shape_cast %258 : vector<16xf32> to vector<16x1xf32>
    %cst_97 = arith.constant 3.200000e+01 : f32
    %260 = vector.broadcast %cst_97 : f32 to vector<16x1xf32>
    %261 = arith.divf %259, %260 : vector<16x1xf32>
    %262 = vector.broadcast %261 : vector<16x1xf32> to vector<16x32xf32>
    %263 = arith.subf %255, %262 : vector<16x32xf32>
    %264 = arith.mulf %263, %263 : vector<16x32xf32>
    %cst_98 = arith.constant dense<0.000000e+00> : vector<16xf32>
    %265 = vector.multi_reduction <add>, %264, %cst_98 [1] : vector<16x32xf32> to vector<16xf32>
    %266 = vector.shape_cast %265 : vector<16xf32> to vector<16x1xf32>
    %cst_99 = arith.constant 3.200000e+01 : f32
    %267 = vector.broadcast %cst_99 : f32 to vector<16x1xf32>
    %268 = arith.divf %266, %267 : vector<16x1xf32>
    %269 = vector.broadcast %261 : vector<16x1xf32> to vector<16x32xf32>
    %270 = arith.subf %255, %269 : vector<16x32xf32>
    %cst_100 = arith.constant 9.99999974E-6 : f32
    %271 = vector.broadcast %cst_100 : f32 to vector<16x1xf32>
    %272 = arith.addf %268, %271 : vector<16x1xf32>
    %273 = math.rsqrt %272 : vector<16x1xf32>
    %274 = vector.broadcast %273 : vector<16x1xf32> to vector<16x32xf32>
    %275 = arith.mulf %270, %274 : vector<16x32xf32>
    %276 = vector.broadcast %256 : vector<1x32xf32> to vector<16x32xf32>
    %277 = arith.mulf %275, %276 : vector<16x32xf32>
    %278 = vector.broadcast %257 : vector<1x32xf32> to vector<16x32xf32>
    %279 = arith.addf %277, %278 : vector<16x32xf32>
    %280 = vector.shape_cast %279 : vector<16x32xf32> to vector<2x8x32xf32>
    %cst_101 = arith.constant dense<0.000000e+00> : vector<2x32xf32>
    %281 = vector.multi_reduction <add>, %280, %cst_101 [1] : vector<2x8x32xf32> to vector<2x32xf32>
    %cst_102 = arith.constant 8.000000e+00 : f32
    %282 = vector.broadcast %cst_102 : f32 to vector<2x32xf32>
    %283 = arith.divf %281, %282 : vector<2x32xf32>
    %c0_103 = arith.constant 0 : index
    %c0_104 = arith.constant 0 : index
    %284 = vector.load %arg8[%c0_103, %c0_104] : memref<32x16xf32, #tpu.memory_space<vmem>>, vector<32x16xf32>
    %cst_105 = arith.constant dense<0.000000e+00> : vector<2x16xf32>
    %285 = tpu.matmul %283, %284, %cst_105 {dimension_numbers = #tpu.dot_dimension_numbers<[1], [0], [0], [1], [0, 0, 1, 1], [], []>} : vector<2x32xf32>, vector<32x16xf32>, vector<2x16xf32> -> vector<2x16xf32>
    %c0_106 = arith.constant 0 : index
    %c0_107 = arith.constant 0 : index
    %286 = vector.load %arg9[%c0_106, %c0_107] : memref<2x16xf32, #tpu.memory_space<vmem>>, vector<2x16xf32>
    tpu.vector_store %arg9[%c0_106, %c0_107], %285 {strides = array<i32>} : memref<2x16xf32, #tpu.memory_space<vmem>>, vector<2x16xf32>,
    return
  }
}

</mosaic_0001>

<llo_original>
// kernel: tpu_custom_call.1
$region0: #{tpu_custom_call.1}
  #allocation0 [shape = 'u32[]', space=smem, size = 0x4, offset = 0x4, fixed_abs, tag = 'smem constant byte address 0x4 - core index']
  #allocation1 [shape = 'u32[144,128]{1,0:T(1,128)}', space=vmem, size = 0x12000, scoped, tag = 'internal scratch']
  %s0 = inlined_call_operand.vmem [shape: f32[2,8,32], index: 0, kind: input, shape index: {}]
  %s1 = inlined_call_operand.hbm [shape: f32[2,32,96], index: 1, kind: input, shape index: {}]
  %s2 = inlined_call_operand.hbm [shape: f32[2,32,32], index: 2, kind: input, shape index: {}]
  %s3 = inlined_call_operand.vmem [shape: f32[2,1,32], index: 3, kind: input, shape index: {}]
  %s4 = inlined_call_operand.vmem [shape: f32[2,1,32], index: 4, kind: input, shape index: {}]
  %s5 = inlined_call_operand.vmem [shape: f32[2,1,32], index: 5, kind: input, shape index: {}]
  %s6 = inlined_call_operand.vmem [shape: f32[1,32], index: 6, kind: input, shape index: {}]
  %s7 = inlined_call_operand.vmem [shape: f32[1,32], index: 7, kind: input, shape index: {}]
  %s8 = inlined_call_operand.vmem [shape: f32[32,16], index: 8, kind: input, shape index: {}]
  %s9 = inlined_call_operand.hbm [shape: f32[2,16], index: 9, kind: output, shape index: {}]
  %s10 = sld [smem:[#allocation0]]
  $region54: #{tpu_custom_call.1} parent=0
    _
  %s12 = ssub.s32 1, %s10
  %s13 = scalar_select 0, %s12, %s10
  $region1: #{tpu_custom_call.1} parent=0
    #allocation2 [shape = 'u8[32768]{0}', space=vmem, size = 0x8000, scoped, tag = 'input window, operand 1, single buffered']
    #allocation3 [shape = 's32[1]{0}', space=sflag, size = 0x4, scoped, tag = 'scoped memory for tpu_custom_call.1']
    #allocation4 [shape = 's32[1]{0}', space=sflag, size = 0x4, scoped, tag = 'scoped memory for tpu_custom_call.1']
    #allocation5 [shape = 'u8[32768]{0}', space=vmem, size = 0x8000, scoped, tag = 'input window, operand 2, single buffered']
    #allocation6 [shape = 's32[1]{0}', space=sflag, size = 0x4, scoped, tag = 'scoped memory for tpu_custom_call.1']
    #allocation7 [shape = 'u8[1024]{0}', space=vmem, size = 0x400, scoped, tag = 'output window, operand 0, single buffered']
    %14 = vsyncpa [#allocation3], 0
    %15 = vsyncpa [#allocation6], 0
    %16 = vsyncpa [#allocation4], 0
    // Predicated region
    $region2: #{tpu_custom_call.1} parent=1 // pred_check
      _
    $region3: #{tpu_custom_call.1} parent=1 // pred_check_branch
      %18 = sbr.rel (0) target = $region5
    $region4: #{tpu_custom_call.1} parent=1 // pred_region
      _
    $region5: #{tpu_custom_call.1} parent=1 // pred_fallthru
      _
    // Predicated region
    $region6: #{tpu_custom_call.1} parent=1 // pred_check
      _
    $region7: #{tpu_custom_call.1} parent=1 // pred_check_branch
      %20 = sbr.rel (0) target = $region9
    $region8: #{tpu_custom_call.1} parent=1 // pred_region
      %s22 = ssub.s32 1024, 1024
      %23 = vsyncadd [#allocation3], %s22
      %s24 = sshll.u32 [#allocation2], 4
      %s25 = int_to_ptr.vmem [resolvable:$true] %s24
      %30 = dma.hbm_to_vmem [thread:$0]  %s1, 1024, %s25, [#allocation3], 128, 128, 8
    $region9: #{tpu_custom_call.1} parent=1 // pred_fallthru
      _
    // Predicated region
    $region10: #{tpu_custom_call.1} parent=1 // pred_check
      _
    $region11: #{tpu_custom_call.1} parent=1 // pred_check_branch
      %32 = sbr.rel (0) target = $region13
    $region12: #{tpu_custom_call.1} parent=1 // pred_region
      %s34 = ssub.s32 1024, 1024
      %35 = vsyncadd [#allocation6], %s34
      %s36 = sshll.u32 [#allocation5], 4
      %s37 = int_to_ptr.vmem [resolvable:$true] %s36
      %42 = dma.hbm_to_vmem [thread:$0]  %s2, 1024, %s37, [#allocation6], 128, 128, 8
    $region13: #{tpu_custom_call.1} parent=1 // pred_fallthru
      _
    // Predicated region
    $region14: #{tpu_custom_call.1} parent=1 // pred_check
      _
    $region15: #{tpu_custom_call.1} parent=1 // pred_check_branch
      %44 = sbr.rel (0) target = $region17
    $region16: #{tpu_custom_call.1} parent=1 // pred_region
      _
    $region17: #{tpu_custom_call.1} parent=1 // pred_fallthru
      _
    // Predicated region
    $region18: #{tpu_custom_call.1} parent=1 // pred_check
      _
    $region19: #{tpu_custom_call.1} parent=1 // pred_check_branch
      %46 = sbr.rel (0) target = $region21
    $region20: #{tpu_custom_call.1} parent=1 // pred_region
      _
    $region21: #{tpu_custom_call.1} parent=1 // pred_fallthru
      _
    // Predicated region
    $region22: #{tpu_custom_call.1} parent=1 // pred_check
      _
    $region23: #{tpu_custom_call.1} parent=1 // pred_check_branch
      %48 = sbr.rel (0) target = $region25
    $region24: #{tpu_custom_call.1} parent=1 // pred_region
      _
    $region25: #{tpu_custom_call.1} parent=1 // pred_fallthru
      _
    // Predicated region
    $region26: #{tpu_custom_call.1} parent=1 // pred_check
      _
    $region27: #{tpu_custom_call.1} parent=1 // pred_check_branch
      %50 = sbr.rel (0) target = $region29
    $region28: #{tpu_custom_call.1} parent=1 // pred_region
      _
    $region29: #{tpu_custom_call.1} parent=1 // pred_fallthru
      _
    // Predicated region
    $region30: #{tpu_custom_call.1} parent=1 // pred_check
      _
    $region31: #{tpu_custom_call.1} parent=1 // pred_check_branch
      %52 = sbr.rel (0) target = $region33
    $region32: #{tpu_custom_call.1} parent=1 // pred_region
      _
    $region33: #{tpu_custom_call.1} parent=1 // pred_fallthru
      _
    // Predicated region
    $region34: #{tpu_custom_call.1} parent=1 // pred_check
      _
    $region35: #{tpu_custom_call.1} parent=1 // pred_check_branch
      %54 = sbr.rel (0) target = $region37
    $region36: #{tpu_custom_call.1} parent=1 // pred_region
      _
    $region37: #{tpu_custom_call.1} parent=1 // pred_fallthru
      _
    // Predicated region
    $region38: #{tpu_custom_call.1} parent=1 // pred_check
      _
    $region39: #{tpu_custom_call.1} parent=1 // pred_check_branch
      %56 = sbr.rel (0) target = $region41
    $region40: #{tpu_custom_call.1} parent=1 // pred_region
      %57 = dma.done [#allocation3], 1024
    $region41: #{tpu_custom_call.1} parent=1 // pred_fallthru
      _
    // Predicated region
    $region42: #{tpu_custom_call.1} parent=1 // pred_check
      _
    $region43: #{tpu_custom_call.1} parent=1 // pred_check_branch
      %59 = sbr.rel (0) target = $region45
    $region44: #{tpu_custom_call.1} parent=1 // pred_region
      %60 = dma.done [#allocation6], 1024
    $region45: #{tpu_custom_call.1} parent=1 // pred_fallthru
      _
    %v61 = vld [vmem:[%s0] sm:$0xff]
    %v62 = vld [vmem:[%s0 + $0x8] sm:$0xff]
    %v63 = vld [vmem:[#allocation2] sm:$0xff]
    %v64 = vld [vmem:[#allocation2 + $0x8] sm:$0xff]
    %v65 = vld [vmem:[#allocation2 + $0x10] sm:$0xff]
    %v66 = vld [vmem:[#allocation2 + $0x18] sm:$0xff]
    %v67 = vld [vmem:[#allocation5] sm:$0xff]
    %v68 = vld [vmem:[#allocation5 + $0x8] sm:$0xff]
    %v69 = vld [vmem:[#allocation5 + $0x10] sm:$0xff]
    %v70 = vld [vmem:[#allocation5 + $0x18] sm:$0xff]
    %v71 = vld [vmem:[%s3] sm:$0x1]
    %v72 = vld [vmem:[%s4] sm:$0x1]
    %v73 = vld [vmem:[%s5] sm:$0x1]
    %vm74 = vcmask 261120
    %v76 = vsel %vm74, %v61, 0
    %v79 = vsel %vm74, %v62, 0
    %81 = vmatprep.subr.mxu0 0.0
    %82 = vmatpush1.msra.mxu0 %v63
    %83 = vmatprep.subr.mxu0 0.0
    %84 = vmatpush1.msra.mxu0 %v64
    %85 = vmatprep.subr.mxu0 0.0
    %86 = vmatpush1.msra.mxu0 %v65
    %87 = vmatprep.subr.mxu0 0.0
    %88 = vmatpush1.msra.mxu0 %v66
    %89 = vmatprep.subr.mxu0 0.0
    %90 = vmatpush1.msra.mxu0 0.0
    %91 = vmatprep.subr.mxu0 0.0
    %92 = vmatpush1.msra.mxu0 0.0
    %93 = vmatprep.subr.mxu0 0.0
    %94 = vmatpush1.msra.mxu0 0.0
    %95 = vmatprep.subr.mxu0 0.0
    %96 = vmatpush1.msra.mxu0 0.0
    %97 = vmatprep.subr.mxu0 0.0
    %98 = vmatpush1.msra.mxu0 0.0
    %99 = vmatprep.subr.mxu0 0.0
    %100 = vmatpush1.msra.mxu0 0.0
    %101 = vmatprep.subr.mxu0 0.0
    %102 = vmatpush1.msra.mxu0 0.0
    %103 = vmatprep.subr.mxu0 0.0
    %104 = vmatpush1.msra.mxu0 0.0
    %105 = vmatprep.subr.mxu0 0.0
    %106 = vmatpush1.msra.mxu0 0.0
    %107 = vmatprep.subr.mxu0 0.0
    %108 = vmatpush1.msra.mxu0 0.0
    %109 = vmatprep.subr.mxu0 0.0
    %110 = vmatpush1.msra.mxu0 0.0
    %111 = vmatprep.subr.mxu0 0.0
    %112 = vmatpush1.msra.mxu0 0.0
    %113 = vmatprep.subr.mxu0 0.0
    %114 = vmatpush1.msra.mxu0 0.0
    %115 = vmatprep.subr.mxu0 0.0
    %116 = vmatpush1.msra.mxu0 0.0
    %117 = vmatprep.subr.mxu0 0.0
    %118 = vmatpush1.msra.mxu0 0.0
    %119 = vmatprep.subr.mxu0 0.0
    %120 = vmatpush1.msra.mxu0 0.0
    %121 = vmatprep.subr.mxu0 0.0
    %122 = vmatpush1.msra.mxu0 0.0
    %123 = vmatprep.subr.mxu0 0.0
    %124 = vmatpush1.msra.mxu0 0.0
    %125 = vmatprep.subr.mxu0 0.0
    %126 = vmatpush1.msra.mxu0 0.0
    %127 = vmatprep.subr.mxu0 0.0
    %128 = vmatpush1.msra.mxu0 0.0
    %129 = vmatprep.subr.mxu0 0.0
    %130 = vmatpush1.msra.mxu0 0.0
    %131 = vmatprep.subr.mxu0 0.0
    %132 = vmatpush1.msra.mxu0 0.0
    %133 = vmatprep.subr.mxu0 0.0
    %134 = vmatpush1.msra.mxu0 0.0
    %135 = vmatprep.subr.mxu0 0.0
    %136 = vmatpush1.msra.mxu0 0.0
    %137 = vmatprep.subr.mxu0 0.0
    %138 = vmatpush1.msra.mxu0 0.0
    %139 = vmatprep.subr.mxu0 0.0
    %140 = vmatpush1.msra.mxu0 0.0
    %141 = vmatprep.subr.mxu0 0.0
    %142 = vmatpush1.msra.mxu0 0.0
    %143 = vmatprep.subr.mxu0 0.0
    %144 = vmatpush1.msra.mxu0 0.0
    %145 = vmatprep.mubr.f32.mxu0 0.0
    %146 = vmatmul.mubr.f32.gmra.mrb[0].mxu0 %v76
    %v147 = vpop.f32.mrb[0].mxu0
    %v148 = vadd.f32 0.0, %v147
    %v149 = vpop.f32.mrb[0].mxu0
    %150 = vmatprep.mubr.f32.mxu0 0.0
    %151 = vmatmul.mubr.f32.gmra.mrb[0].mxu0 %v79
    %v152 = vpop.f32.mrb[0].mxu0
    %v153 = vadd.f32 0.0, %v152
    %v154 = vpop.f32.mrb[0].mxu0
    %155 = vdwg.mxu0
    %157 = vrot.lane.b32.xlu0 %v148, 96
    %v158 = vpop.permute.xlu0 %157
    %vm159 = vcmask 64512
    %v160 = vsel %vm159, %v148, 0
    %v162 = vsel %vm159, %v158, 0
    %164 = vmatprep.subr.mxu0 0.0
    %165 = vmatpush1.xpose.msra.mxu0 %v162
    %166 = vmatprep.subr.mxu0 0.0
    %167 = vmatpush1.xpose.msra.mxu0 0.0
    %168 = vmatprep.subr.mxu0 0.0
    %169 = vmatpush1.xpose.msra.mxu0 0.0
    %170 = vmatprep.subr.mxu0 0.0
    %171 = vmatpush1.xpose.msra.mxu0 0.0
    %172 = vmatprep.subr.mxu0 0.0
    %173 = vmatpush1.xpose.msra.mxu0 0.0
    %174 = vmatprep.subr.mxu0 0.0
    %175 = vmatpush1.xpose.msra.mxu0 0.0
    %176 = vmatprep.subr.mxu0 0.0
    %177 = vmatpush1.xpose.msra.mxu0 0.0
    %178 = vmatprep.subr.mxu0 0.0
    %179 = vmatpush1.xpose.msra.mxu0 0.0
    %180 = vmatprep.subr.mxu0 0.0
    %181 = vmatpush1.xpose.msra.mxu0 0.0
    %182 = vmatprep.subr.mxu0 0.0
    %183 = vmatpush1.xpose.msra.mxu0 0.0
    %184 = vmatprep.subr.mxu0 0.0
    %185 = vmatpush1.xpose.msra.mxu0 0.0
    %186 = vmatprep.subr.mxu0 0.0
    %187 = vmatpush1.xpose.msra.mxu0 0.0
    %188 = vmatprep.subr.mxu0 0.0
    %189 = vmatpush1.xpose.msra.mxu0 0.0
    %190 = vmatprep.subr.mxu0 0.0
    %191 = vmatpush1.xpose.msra.mxu0 0.0
    %192 = vmatprep.subr.mxu0 0.0
    %193 = vmatpush1.xpose.msra.mxu0 0.0
    %194 = vmatprep.subr.mxu0 0.0
    %195 = vmatpush1.xpose.msra.mxu0 0.0
    %196 = vmatprep.subr.mxu0 0.0
    %197 = vmatpush1.xpose.msra.mxu0 0.0
    %198 = vmatprep.subr.mxu0 0.0
    %199 = vmatpush1.xpose.msra.mxu0 0.0
    %200 = vmatprep.subr.mxu0 0.0
    %201 = vmatpush1.xpose.msra.mxu0 0.0
    %202 = vmatprep.subr.mxu0 0.0
    %203 = vmatpush1.xpose.msra.mxu0 0.0
    %204 = vmatprep.subr.mxu0 0.0
    %205 = vmatpush1.xpose.msra.mxu0 0.0
    %206 = vmatprep.subr.mxu0 0.0
    %207 = vmatpush1.xpose.msra.mxu0 0.0
    %208 = vmatprep.subr.mxu0 0.0
    %209 = vmatpush1.xpose.msra.mxu0 0.0
    %210 = vmatprep.subr.mxu0 0.0
    %211 = vmatpush1.xpose.msra.mxu0 0.0
    %212 = vmatprep.subr.mxu0 0.0
    %213 = vmatpush1.xpose.msra.mxu0 0.0
    %214 = vmatprep.subr.mxu0 0.0
    %215 = vmatpush1.xpose.msra.mxu0 0.0
    %216 = vmatprep.subr.mxu0 0.0
    %217 = vmatpush1.xpose.msra.mxu0 0.0
    %218 = vmatprep.subr.mxu0 0.0
    %219 = vmatpush1.xpose.msra.mxu0 0.0
    %220 = vmatprep.subr.mxu0 0.0
    %221 = vmatpush1.xpose.msra.mxu0 0.0
    %222 = vmatprep.subr.mxu0 0.0
    %223 = vmatpush1.xpose.msra.mxu0 0.0
    %224 = vmatprep.subr.mxu0 0.0
    %225 = vmatpush1.xpose.msra.mxu0 0.0
    %226 = vmatprep.subr.mxu0 0.0
    %227 = vmatpush1.xpose.msra.mxu0 0.0
    %228 = vmatprep.mubr.f32.mxu0 0.0
    %229 = vmatmul.mubr.f32.gmra.mrb[0].mxu0 %v160
    %v230 = vpop.f32.mrb[0].mxu0
    %v231 = vadd.f32 0.0, %v230
    %v232 = vpop.f32.mrb[0].mxu0
    %233 = vdwg.mxu0
    %235 = vrot.lane.b32.xlu0 %v153, 96
    %v236 = vpop.permute.xlu0 %235
    %v237 = vsel %vm159, %v153, 0
    %v239 = vsel %vm159, %v236, 0
    %241 = vmatprep.subr.mxu0 0.0
    %242 = vmatpush1.xpose.msra.mxu0 %v239
    %243 = vmatprep.subr.mxu0 0.0
    %244 = vmatpush1.xpose.msra.mxu0 0.0
    %245 = vmatprep.subr.mxu0 0.0
    %246 = vmatpush1.xpose.msra.mxu0 0.0
    %247 = vmatprep.subr.mxu0 0.0
    %248 = vmatpush1.xpose.msra.mxu0 0.0
    %249 = vmatprep.subr.mxu0 0.0
    %250 = vmatpush1.xpose.msra.mxu0 0.0
    %251 = vmatprep.subr.mxu0 0.0
    %252 = vmatpush1.xpose.msra.mxu0 0.0
    %253 = vmatprep.subr.mxu0 0.0
    %254 = vmatpush1.xpose.msra.mxu0 0.0
    %255 = vmatprep.subr.mxu0 0.0
    %256 = vmatpush1.xpose.msra.mxu0 0.0
    %257 = vmatprep.subr.mxu0 0.0
    %258 = vmatpush1.xpose.msra.mxu0 0.0
    %259 = vmatprep.subr.mxu0 0.0
    %260 = vmatpush1.xpose.msra.mxu0 0.0
    %261 = vmatprep.subr.mxu0 0.0
    %262 = vmatpush1.xpose.msra.mxu0 0.0
    %263 = vmatprep.subr.mxu0 0.0
    %264 = vmatpush1.xpose.msra.mxu0 0.0
    %265 = vmatprep.subr.mxu0 0.0
    %266 = vmatpush1.xpose.msra.mxu0 0.0
    %267 = vmatprep.subr.mxu0 0.0
    %268 = vmatpush1.xpose.msra.mxu0 0.0
    %269 = vmatprep.subr.mxu0 0.0
    %270 = vmatpush1.xpose.msra.mxu0 0.0
    %271 = vmatprep.subr.mxu0 0.0
    %272 = vmatpush1.xpose.msra.mxu0 0.0
    %273 = vmatprep.subr.mxu0 0.0
    %274 = vmatpush1.xpose.msra.mxu0 0.0
    %275 = vmatprep.subr.mxu0 0.0
    %276 = vmatpush1.xpose.msra.mxu0 0.0
    %277 = vmatprep.subr.mxu0 0.0
    %278 = vmatpush1.xpose.msra.mxu0 0.0
    %279 = vmatprep.subr.mxu0 0.0
    %280 = vmatpush1.xpose.msra.mxu0 0.0
    %281 = vmatprep.subr.mxu0 0.0
    %282 = vmatpush1.xpose.msra.mxu0 0.0
    %283 = vmatprep.subr.mxu0 0.0
    %284 = vmatpush1.xpose.msra.mxu0 0.0
    %285 = vmatprep.subr.mxu0 0.0
    %286 = vmatpush1.xpose.msra.mxu0 0.0
    %287 = vmatprep.subr.mxu0 0.0
    %288 = vmatpush1.xpose.msra.mxu0 0.0
    %289 = vmatprep.subr.mxu0 0.0
    %290 = vmatpush1.xpose.msra.mxu0 0.0
    %291 = vmatprep.subr.mxu0 0.0
    %292 = vmatpush1.xpose.msra.mxu0 0.0
    %293 = vmatprep.subr.mxu0 0.0
    %294 = vmatpush1.xpose.msra.mxu0 0.0
    %295 = vmatprep.subr.mxu0 0.0
    %296 = vmatpush1.xpose.msra.mxu0 0.0
    %297 = vmatprep.subr.mxu0 0.0
    %298 = vmatpush1.xpose.msra.mxu0 0.0
    %299 = vmatprep.subr.mxu0 0.0
    %300 = vmatpush1.xpose.msra.mxu0 0.0
    %301 = vmatprep.subr.mxu0 0.0
    %302 = vmatpush1.xpose.msra.mxu0 0.0
    %303 = vmatprep.subr.mxu0 0.0
    %304 = vmatpush1.xpose.msra.mxu0 0.0
    %305 = vmatprep.mubr.f32.mxu0 0.0
    %306 = vmatmul.mubr.f32.gmra.mrb[0].mxu0 %v237
    %v307 = vpop.f32.mrb[0].mxu0
    %v308 = vadd.f32 0.0, %v307
    %v309 = vpop.f32.mrb[0].mxu0
    %310 = vdwg.mxu0
    %v311 = vmul.f32 %v231, 0.35355338
    %v312 = vmul.f32 %v308, 0.35355338
    %v313 = vsel %vm159, %v311, -inf
    %314 = vmax.xlane.f32.xlu0 %v313
    %v315 = vpop.xlane.xlu0 %314
    %v316 = vsel %vm159, %v312, -inf
    %317 = vmax.xlane.f32.xlu0 %v316
    %v318 = vpop.xlane.xlu0 %317
    %v319 = vsub.f32 %v311, %v315
    %v320 = vsub.f32 %v312, %v318
    %v321 = vmul.f32 %v319, 1.442695
    %v322 = vpow.pop %v321
    %v323 = vmul.f32 %v320, 1.442695
    %v324 = vpow.pop %v323
    %v325 = vsel %vm159, %v322, 0.0
    %326 = vadd.xlane.f32.xlu0 %v325
    %v327 = vpop.xlane.xlu0 %326
    %v328 = vsel %vm159, %v324, 0.0
    %329 = vadd.xlane.f32.xlu0 %v328
    %v330 = vpop.xlane.xlu0 %329
    %v331 = vrcp.pop %v327
    %v332 = vrcp.pop %v330
    %v333 = vmul.f32 %v322, %v331
    %v334 = vmul.f32 %v324, %v332
    %335 = vrot.lane.b32.xlu0 %v148, 64
    %v336 = vpop.permute.xlu0 %335
    %v339 = vsel %vm159, %v333, 0
    %341 = vmatprep.subr.mxu0 0.0
    %342 = vmatpush1.msra.mxu0 %v336
    %343 = vmatprep.subr.mxu0 0.0
    %344 = vmatpush1.msra.mxu0 0.0
    %345 = vmatprep.subr.mxu0 0.0
    %346 = vmatpush1.msra.mxu0 0.0
    %347 = vmatprep.subr.mxu0 0.0
    %348 = vmatpush1.msra.mxu0 0.0
    %349 = vmatprep.subr.mxu0 0.0
    %350 = vmatpush1.msra.mxu0 0.0
    %351 = vmatprep.subr.mxu0 0.0
    %352 = vmatpush1.msra.mxu0 0.0
    %353 = vmatprep.subr.mxu0 0.0
    %354 = vmatpush1.msra.mxu0 0.0
    %355 = vmatprep.subr.mxu0 0.0
    %356 = vmatpush1.msra.mxu0 0.0
    %357 = vmatprep.subr.mxu0 0.0
    %358 = vmatpush1.msra.mxu0 0.0
    %359 = vmatprep.subr.mxu0 0.0
    %360 = vmatpush1.msra.mxu0 0.0
    %361 = vmatprep.subr.mxu0 0.0
    %362 = vmatpush1.msra.mxu0 0.0
    %363 = vmatprep.subr.mxu0 0.0
    %364 = vmatpush1.msra.mxu0 0.0
    %365 = vmatprep.subr.mxu0 0.0
    %366 = vmatpush1.msra.mxu0 0.0
    %367 = vmatprep.subr.mxu0 0.0
    %368 = vmatpush1.msra.mxu0 0.0
    %369 = vmatprep.subr.mxu0 0.0
    %370 = vmatpush1.msra.mxu0 0.0
    %371 = vmatprep.subr.mxu0 0.0
    %372 = vmatpush1.msra.mxu0 0.0
    %373 = vmatprep.subr.mxu0 0.0
    %374 = vmatpush1.msra.mxu0 0.0
    %375 = vmatprep.subr.mxu0 0.0
    %376 = vmatpush1.msra.mxu0 0.0
    %377 = vmatprep.subr.mxu0 0.0
    %378 = vmatpush1.msra.mxu0 0.0
    %379 = vmatprep.subr.mxu0 0.0
    %380 = vmatpush1.msra.mxu0 0.0
    %381 = vmatprep.subr.mxu0 0.0
    %382 = vmatpush1.msra.mxu0 0.0
    %383 = vmatprep.subr.mxu0 0.0
    %384 = vmatpush1.msra.mxu0 0.0
    %385 = vmatprep.subr.mxu0 0.0
    %386 = vmatpush1.msra.mxu0 0.0
    %387 = vmatprep.subr.mxu0 0.0
    %388 = vmatpush1.msra.mxu0 0.0
    %389 = vmatprep.subr.mxu0 0.0
    %390 = vmatpush1.msra.mxu0 0.0
    %391 = vmatprep.subr.mxu0 0.0
    %392 = vmatpush1.msra.mxu0 0.0
    %393 = vmatprep.subr.mxu0 0.0
    %394 = vmatpush1.msra.mxu0 0.0
    %395 = vmatprep.subr.mxu0 0.0
    %396 = vmatpush1.msra.mxu0 0.0
    %397 = vmatprep.subr.mxu0 0.0
    %398 = vmatpush1.msra.mxu0 0.0
    %399 = vmatprep.subr.mxu0 0.0
    %400 = vmatpush1.msra.mxu0 0.0
    %401 = vmatprep.subr.mxu0 0.0
    %402 = vmatpush1.msra.mxu0 0.0
    %403 = vmatprep.subr.mxu0 0.0
    %404 = vmatpush1.msra.mxu0 0.0
    %405 = vmatprep.mubr.f32.mxu0 0.0
    %406 = vmatmul.mubr.f32.gmra.mrb[0].mxu0 %v339
    %v407 = vpop.f32.mrb[0].mxu0
    %v408 = vadd.f32 0.0, %v407
    %v409 = vpop.f32.mrb[0].mxu0
    %410 = vdwg.mxu0
    %411 = vrot.lane.b32.xlu0 %v153, 64
    %v412 = vpop.permute.xlu0 %411
    %v415 = vsel %vm159, %v334, 0
    %417 = vmatprep.subr.mxu0 0.0
    %418 = vmatpush1.msra.mxu0 %v412
    %419 = vmatprep.subr.mxu0 0.0
    %420 = vmatpush1.msra.mxu0 0.0
    %421 = vmatprep.subr.mxu0 0.0
    %422 = vmatpush1.msra.mxu0 0.0
    %423 = vmatprep.subr.mxu0 0.0
    %424 = vmatpush1.msra.mxu0 0.0
    %425 = vmatprep.subr.mxu0 0.0
    %426 = vmatpush1.msra.mxu0 0.0
    %427 = vmatprep.subr.mxu0 0.0
    %428 = vmatpush1.msra.mxu0 0.0
    %429 = vmatprep.subr.mxu0 0.0
    %430 = vmatpush1.msra.mxu0 0.0
    %431 = vmatprep.subr.mxu0 0.0
    %432 = vmatpush1.msra.mxu0 0.0
    %433 = vmatprep.subr.mxu0 0.0
    %434 = vmatpush1.msra.mxu0 0.0
    %435 = vmatprep.subr.mxu0 0.0
    %436 = vmatpush1.msra.mxu0 0.0
    %437 = vmatprep.subr.mxu0 0.0
    %438 = vmatpush1.msra.mxu0 0.0
    %439 = vmatprep.subr.mxu0 0.0
    %440 = vmatpush1.msra.mxu0 0.0
    %441 = vmatprep.subr.mxu0 0.0
    %442 = vmatpush1.msra.mxu0 0.0
    %443 = vmatprep.subr.mxu0 0.0
    %444 = vmatpush1.msra.mxu0 0.0
    %445 = vmatprep.subr.mxu0 0.0
    %446 = vmatpush1.msra.mxu0 0.0
    %447 = vmatprep.subr.mxu0 0.0
    %448 = vmatpush1.msra.mxu0 0.0
    %449 = vmatprep.subr.mxu0 0.0
    %450 = vmatpush1.msra.mxu0 0.0
    %451 = vmatprep.subr.mxu0 0.0
    %452 = vmatpush1.msra.mxu0 0.0
    %453 = vmatprep.subr.mxu0 0.0
    %454 = vmatpush1.msra.mxu0 0.0
    %455 = vmatprep.subr.mxu0 0.0
    %456 = vmatpush1.msra.mxu0 0.0
    %457 = vmatprep.subr.mxu0 0.0
    %458 = vmatpush1.msra.mxu0 0.0
    %459 = vmatprep.subr.mxu0 0.0
    %460 = vmatpush1.msra.mxu0 0.0
    %461 = vmatprep.subr.mxu0 0.0
    %462 = vmatpush1.msra.mxu0 0.0
    %463 = vmatprep.subr.mxu0 0.0
    %464 = vmatpush1.msra.mxu0 0.0
    %465 = vmatprep.subr.mxu0 0.0
    %466 = vmatpush1.msra.mxu0 0.0
    %467 = vmatprep.subr.mxu0 0.0
    %468 = vmatpush1.msra.mxu0 0.0
    %469 = vmatprep.subr.mxu0 0.0
    %470 = vmatpush1.msra.mxu0 0.0
    %471 = vmatprep.subr.mxu0 0.0
    %472 = vmatpush1.msra.mxu0 0.0
    %473 = vmatprep.subr.mxu0 0.0
    %474 = vmatpush1.msra.mxu0 0.0
    %475 = vmatprep.subr.mxu0 0.0
    %476 = vmatpush1.msra.mxu0 0.0
    %477 = vmatprep.subr.mxu0 0.0
    %478 = vmatpush1.msra.mxu0 0.0
    %479 = vmatprep.subr.mxu0 0.0
    %480 = vmatpush1.msra.mxu0 0.0
    %481 = vmatprep.mubr.f32.mxu0 0.0
    %482 = vmatmul.mubr.f32.gmra.mrb[0].mxu0 %v415
    %v483 = vpop.f32.mrb[0].mxu0
    %v484 = vadd.f32 0.0, %v483
    %v485 = vpop.f32.mrb[0].mxu0
    %486 = vdwg.mxu0
    %487 = vrot.lane.b32.xlu0 %v148, 120
    %v488 = vpop.permute.xlu0 %487
    %489 = vrot.lane.b32.xlu0 %v148, 88
    %v490 = vpop.permute.xlu0 %489
    %v491 = vsel %vm159, %v488, 0
    %v493 = vsel %vm159, %v490, 0
    %495 = vmatprep.subr.mxu0 0.0
    %496 = vmatpush1.xpose.msra.mxu0 %v493
    %497 = vmatprep.subr.mxu0 0.0
    %498 = vmatpush1.xpose.msra.mxu0 0.0
    %499 = vmatprep.subr.mxu0 0.0
    %500 = vmatpush1.xpose.msra.mxu0 0.0
    %501 = vmatprep.subr.mxu0 0.0
    %502 = vmatpush1.xpose.msra.mxu0 0.0
    %503 = vmatprep.subr.mxu0 0.0
    %504 = vmatpush1.xpose.msra.mxu0 0.0
    %505 = vmatprep.subr.mxu0 0.0
    %506 = vmatpush1.xpose.msra.mxu0 0.0
    %507 = vmatprep.subr.mxu0 0.0
    %508 = vmatpush1.xpose.msra.mxu0 0.0
    %509 = vmatprep.subr.mxu0 0.0
    %510 = vmatpush1.xpose.msra.mxu0 0.0
    %511 = vmatprep.subr.mxu0 0.0
    %512 = vmatpush1.xpose.msra.mxu0 0.0
    %513 = vmatprep.subr.mxu0 0.0
    %514 = vmatpush1.xpose.msra.mxu0 0.0
    %515 = vmatprep.subr.mxu0 0.0
    %516 = vmatpush1.xpose.msra.mxu0 0.0
    %517 = vmatprep.subr.mxu0 0.0
    %518 = vmatpush1.xpose.msra.mxu0 0.0
    %519 = vmatprep.subr.mxu0 0.0
    %520 = vmatpush1.xpose.msra.mxu0 0.0
    %521 = vmatprep.subr.mxu0 0.0
    %522 = vmatpush1.xpose.msra.mxu0 0.0
    %523 = vmatprep.subr.mxu0 0.0
    %524 = vmatpush1.xpose.msra.mxu0 0.0
    %525 = vmatprep.subr.mxu0 0.0
    %526 = vmatpush1.xpose.msra.mxu0 0.0
    %527 = vmatprep.subr.mxu0 0.0
    %528 = vmatpush1.xpose.msra.mxu0 0.0
    %529 = vmatprep.subr.mxu0 0.0
    %530 = vmatpush1.xpose.msra.mxu0 0.0
    %531 = vmatprep.subr.mxu0 0.0
    %532 = vmatpush1.xpose.msra.mxu0 0.0
    %533 = vmatprep.subr.mxu0 0.0
    %534 = vmatpush1.xpose.msra.mxu0 0.0
    %535 = vmatprep.subr.mxu0 0.0
    %536 = vmatpush1.xpose.msra.mxu0 0.0
    %537 = vmatprep.subr.mxu0 0.0
    %538 = vmatpush1.xpose.msra.mxu0 0.0
    %539 = vmatprep.subr.mxu0 0.0
    %540 = vmatpush1.xpose.msra.mxu0 0.0
    %541 = vmatprep.subr.mxu0 0.0
    %542 = vmatpush1.xpose.msra.mxu0 0.0
    %543 = vmatprep.subr.mxu0 0.0
    %544 = vmatpush1.xpose.msra.mxu0 0.0
    %545 = vmatprep.subr.mxu0 0.0
    %546 = vmatpush1.xpose.msra.mxu0 0.0
    %547 = vmatprep.subr.mxu0 0.0
    %548 = vmatpush1.xpose.msra.mxu0 0.0
    %549 = vmatprep.subr.mxu0 0.0
    %550 = vmatpush1.xpose.msra.mxu0 0.0
    %551 = vmatprep.subr.mxu0 0.0
    %552 = vmatpush1.xpose.msra.mxu0 0.0
    %553 = vmatprep.subr.mxu0 0.0
    %554 = vmatpush1.xpose.msra.mxu0 0.0
    %555 = vmatprep.subr.mxu0 0.0
    %556 = vmatpush1.xpose.msra.mxu0 0.0
    %557 = vmatprep.subr.mxu0 0.0
    %558 = vmatpush1.xpose.msra.mxu0 0.0
    %559 = vmatprep.mubr.f32.mxu0 0.0
    %560 = vmatmul.mubr.f32.gmra.mrb[0].mxu0 %v491
    %v561 = vpop.f32.mrb[0].mxu0
    %v562 = vadd.f32 0.0, %v561
    %v563 = vpop.f32.mrb[0].mxu0
    %564 = vdwg.mxu0
    %565 = vrot.lane.b32.xlu0 %v153, 120
    %v566 = vpop.permute.xlu0 %565
    %567 = vrot.lane.b32.xlu0 %v153, 88
    %v568 = vpop.permute.xlu0 %567
    %v569 = vsel %vm159, %v566, 0
    %v571 = vsel %vm159, %v568, 0
    %573 = vmatprep.subr.mxu0 0.0
    %574 = vmatpush1.xpose.msra.mxu0 %v571
    %575 = vmatprep.subr.mxu0 0.0
    %576 = vmatpush1.xpose.msra.mxu0 0.0
    %577 = vmatprep.subr.mxu0 0.0
    %578 = vmatpush1.xpose.msra.mxu0 0.0
    %579 = vmatprep.subr.mxu0 0.0
    %580 = vmatpush1.xpose.msra.mxu0 0.0
    %581 = vmatprep.subr.mxu0 0.0
    %582 = vmatpush1.xpose.msra.mxu0 0.0
    %583 = vmatprep.subr.mxu0 0.0
    %584 = vmatpush1.xpose.msra.mxu0 0.0
    %585 = vmatprep.subr.mxu0 0.0
    %586 = vmatpush1.xpose.msra.mxu0 0.0
    %587 = vmatprep.subr.mxu0 0.0
    %588 = vmatpush1.xpose.msra.mxu0 0.0
    %589 = vmatprep.subr.mxu0 0.0
    %590 = vmatpush1.xpose.msra.mxu0 0.0
    %591 = vmatprep.subr.mxu0 0.0
    %592 = vmatpush1.xpose.msra.mxu0 0.0
    %593 = vmatprep.subr.mxu0 0.0
    %594 = vmatpush1.xpose.msra.mxu0 0.0
    %595 = vmatprep.subr.mxu0 0.0
    %596 = vmatpush1.xpose.msra.mxu0 0.0
    %597 = vmatprep.subr.mxu0 0.0
    %598 = vmatpush1.xpose.msra.mxu0 0.0
    %599 = vmatprep.subr.mxu0 0.0
    %600 = vmatpush1.xpose.msra.mxu0 0.0
    %601 = vmatprep.subr.mxu0 0.0
    %602 = vmatpush1.xpose.msra.mxu0 0.0
    %603 = vmatprep.subr.mxu0 0.0
    %604 = vmatpush1.xpose.msra.mxu0 0.0
    %605 = vmatprep.subr.mxu0 0.0
    %606 = vmatpush1.xpose.msra.mxu0 0.0
    %607 = vmatprep.subr.mxu0 0.0
    %608 = vmatpush1.xpose.msra.mxu0 0.0
    %609 = vmatprep.subr.mxu0 0.0
    %610 = vmatpush1.xpose.msra.mxu0 0.0
    %611 = vmatprep.subr.mxu0 0.0
    %612 = vmatpush1.xpose.msra.mxu0 0.0
    %613 = vmatprep.subr.mxu0 0.0
    %614 = vmatpush1.xpose.msra.mxu0 0.0
    %615 = vmatprep.subr.mxu0 0.0
    %616 = vmatpush1.xpose.msra.mxu0 0.0
    %617 = vmatprep.subr.mxu0 0.0
    %618 = vmatpush1.xpose.msra.mxu0 0.0
    %619 = vmatprep.subr.mxu0 0.0
    %620 = vmatpush1.xpose.msra.mxu0 0.0
    %621 = vmatprep.subr.mxu0 0.0
    %622 = vmatpush1.xpose.msra.mxu0 0.0
    %623 = vmatprep.subr.mxu0 0.0
    %624 = vmatpush1.xpose.msra.mxu0 0.0
    %625 = vmatprep.subr.mxu0 0.0
    %626 = vmatpush1.xpose.msra.mxu0 0.0
    %627 = vmatprep.subr.mxu0 0.0
    %628 = vmatpush1.xpose.msra.mxu0 0.0
    %629 = vmatprep.subr.mxu0 0.0
    %630 = vmatpush1.xpose.msra.mxu0 0.0
    %631 = vmatprep.subr.mxu0 0.0
    %632 = vmatpush1.xpose.msra.mxu0 0.0
    %633 = vmatprep.subr.mxu0 0.0
    %634 = vmatpush1.xpose.msra.mxu0 0.0
    %635 = vmatprep.subr.mxu0 0.0
    %636 = vmatpush1.xpose.msra.mxu0 0.0
    %637 = vmatprep.mubr.f32.mxu0 0.0
    %638 = vmatmul.mubr.f32.gmra.mrb[0].mxu0 %v569
    %v639 = vpop.f32.mrb[0].mxu0
    %v640 = vadd.f32 0.0, %v639
    %v641 = vpop.f32.mrb[0].mxu0
    %642 = vdwg.mxu0
    %v643 = vmul.f32 %v562, 0.35355338
    %v644 = vmul.f32 %v640, 0.35355338
    %v645 = vsel %vm159, %v643, -inf
    %646 = vmax.xlane.f32.xlu0 %v645
    %v647 = vpop.xlane.xlu0 %646
    %v648 = vsel %vm159, %v644, -inf
    %649 = vmax.xlane.f32.xlu0 %v648
    %v650 = vpop.xlane.xlu0 %649
    %v651 = vsub.f32 %v643, %v647
    %v652 = vsub.f32 %v644, %v650
    %v653 = vmul.f32 %v651, 1.442695
    %v654 = vpow.pop %v653
    %v655 = vmul.f32 %v652, 1.442695
    %v656 = vpow.pop %v655
    %v657 = vsel %vm159, %v654, 0.0
    %658 = vadd.xlane.f32.xlu0 %v657
    %v659 = vpop.xlane.xlu0 %658
    %v660 = vsel %vm159, %v656, 0.0
    %661 = vadd.xlane.f32.xlu0 %v660
    %v662 = vpop.xlane.xlu0 %661
    %v663 = vrcp.pop %v659
    %v664 = vrcp.pop %v662
    %v665 = vmul.f32 %v654, %v663
    %v666 = vmul.f32 %v656, %v664
    %667 = vrot.lane.b32.xlu0 %v148, 56
    %v668 = vpop.permute.xlu0 %667
    %v671 = vsel %vm159, %v665, 0
    %673 = vmatprep.subr.mxu0 0.0
    %674 = vmatpush1.msra.mxu0 %v668
    %675 = vmatprep.subr.mxu0 0.0
    %676 = vmatpush1.msra.mxu0 0.0
    %677 = vmatprep.subr.mxu0 0.0
    %678 = vmatpush1.msra.mxu0 0.0
    %679 = vmatprep.subr.mxu0 0.0
    %680 = vmatpush1.msra.mxu0 0.0
    %681 = vmatprep.subr.mxu0 0.0
    %682 = vmatpush1.msra.mxu0 0.0
    %683 = vmatprep.subr.mxu0 0.0
    %684 = vmatpush1.msra.mxu0 0.0
    %685 = vmatprep.subr.mxu0 0.0
    %686 = vmatpush1.msra.mxu0 0.0
    %687 = vmatprep.subr.mxu0 0.0
    %688 = vmatpush1.msra.mxu0 0.0
    %689 = vmatprep.subr.mxu0 0.0
    %690 = vmatpush1.msra.mxu0 0.0
    %691 = vmatprep.subr.mxu0 0.0
    %692 = vmatpush1.msra.mxu0 0.0
    %693 = vmatprep.subr.mxu0 0.0
    %694 = vmatpush1.msra.mxu0 0.0
    %695 = vmatprep.subr.mxu0 0.0
    %696 = vmatpush1.msra.mxu0 0.0
    %697 = vmatprep.subr.mxu0 0.0
    %698 = vmatpush1.msra.mxu0 0.0
    %699 = vmatprep.subr.mxu0 0.0
    %700 = vmatpush1.msra.mxu0 0.0
    %701 = vmatprep.subr.mxu0 0.0
    %702 = vmatpush1.msra.mxu0 0.0
    %703 = vmatprep.subr.mxu0 0.0
    %704 = vmatpush1.msra.mxu0 0.0
    %705 = vmatprep.subr.mxu0 0.0
    %706 = vmatpush1.msra.mxu0 0.0
    %707 = vmatprep.subr.mxu0 0.0
    %708 = vmatpush1.msra.mxu0 0.0
    %709 = vmatprep.subr.mxu0 0.0
    %710 = vmatpush1.msra.mxu0 0.0
    %711 = vmatprep.subr.mxu0 0.0
    %712 = vmatpush1.msra.mxu0 0.0
    %713 = vmatprep.subr.mxu0 0.0
    %714 = vmatpush1.msra.mxu0 0.0
    %715 = vmatprep.subr.mxu0 0.0
    %716 = vmatpush1.msra.mxu0 0.0
    %717 = vmatprep.subr.mxu0 0.0
    %718 = vmatpush1.msra.mxu0 0.0
    %719 = vmatprep.subr.mxu0 0.0
    %720 = vmatpush1.msra.mxu0 0.0
    %721 = vmatprep.subr.mxu0 0.0
    %722 = vmatpush1.msra.mxu0 0.0
    %723 = vmatprep.subr.mxu0 0.0
    %724 = vmatpush1.msra.mxu0 0.0
    %725 = vmatprep.subr.mxu0 0.0
    %726 = vmatpush1.msra.mxu0 0.0
    %727 = vmatprep.subr.mxu0 0.0
    %728 = vmatpush1.msra.mxu0 0.0
    %729 = vmatprep.subr.mxu0 0.0
    %730 = vmatpush1.msra.mxu0 0.0
    %731 = vmatprep.subr.mxu0 0.0
    %732 = vmatpush1.msra.mxu0 0.0
    %733 = vmatprep.subr.mxu0 0.0
    %734 = vmatpush1.msra.mxu0 0.0
    %735 = vmatprep.subr.mxu0 0.0
    %736 = vmatpush1.msra.mxu0 0.0
    %737 = vmatprep.mubr.f32.mxu0 0.0
    %738 = vmatmul.mubr.f32.gmra.mrb[0].mxu0 %v671
    %v739 = vpop.f32.mrb[0].mxu0
    %v740 = vadd.f32 0.0, %v739
    %v741 = vpop.f32.mrb[0].mxu0
    %742 = vdwg.mxu0
    %743 = vrot.lane.b32.xlu0 %v153, 56
    %v744 = vpop.permute.xlu0 %743
    %v747 = vsel %vm159, %v666, 0
    %749 = vmatprep.subr.mxu0 0.0
    %750 = vmatpush1.msra.mxu0 %v744
    %751 = vmatprep.subr.mxu0 0.0
    %752 = vmatpush1.msra.mxu0 0.0
    %753 = vmatprep.subr.mxu0 0.0
    %754 = vmatpush1.msra.mxu0 0.0
    %755 = vmatprep.subr.mxu0 0.0
    %756 = vmatpush1.msra.mxu0 0.0
    %757 = vmatprep.subr.mxu0 0.0
    %758 = vmatpush1.msra.mxu0 0.0
    %759 = vmatprep.subr.mxu0 0.0
    %760 = vmatpush1.msra.mxu0 0.0
    %761 = vmatprep.subr.mxu0 0.0
    %762 = vmatpush1.msra.mxu0 0.0
    %763 = vmatprep.subr.mxu0 0.0
    %764 = vmatpush1.msra.mxu0 0.0
    %765 = vmatprep.subr.mxu0 0.0
    %766 = vmatpush1.msra.mxu0 0.0
    %767 = vmatprep.subr.mxu0 0.0
    %768 = vmatpush1.msra.mxu0 0.0
    %769 = vmatprep.subr.mxu0 0.0
    %770 = vmatpush1.msra.mxu0 0.0
    %771 = vmatprep.subr.mxu0 0.0
    %772 = vmatpush1.msra.mxu0 0.0
    %773 = vmatprep.subr.mxu0 0.0
    %774 = vmatpush1.msra.mxu0 0.0
    %775 = vmatprep.subr.mxu0 0.0
    %776 = vmatpush1.msra.mxu0 0.0
    %777 = vmatprep.subr.mxu0 0.0
    %778 = vmatpush1.msra.mxu0 0.0
    %779 = vmatprep.subr.mxu0 0.0
    %780 = vmatpush1.msra.mxu0 0.0
    %781 = vmatprep.subr.mxu0 0.0
    %782 = vmatpush1.msra.mxu0 0.0
    %783 = vmatprep.subr.mxu0 0.0
    %784 = vmatpush1.msra.mxu0 0.0
    %785 = vmatprep.subr.mxu0 0.0
    %786 = vmatpush1.msra.mxu0 0.0
    %787 = vmatprep.subr.mxu0 0.0
    %788 = vmatpush1.msra.mxu0 0.0
    %789 = vmatprep.subr.mxu0 0.0
    %790 = vmatpush1.msra.mxu0 0.0
    %791 = vmatprep.subr.mxu0 0.0
    %792 = vmatpush1.msra.mxu0 0.0
    %793 = vmatprep.subr.mxu0 0.0
    %794 = vmatpush1.msra.mxu0 0.0
    %795 = vmatprep.subr.mxu0 0.0
    %796 = vmatpush1.msra.mxu0 0.0
    %797 = vmatprep.subr.mxu0 0.0
    %798 = vmatpush1.msra.mxu0 0.0
    %799 = vmatprep.subr.mxu0 0.0
    %800 = vmatpush1.msra.mxu0 0.0
    %801 = vmatprep.subr.mxu0 0.0
    %802 = vmatpush1.msra.mxu0 0.0
    %803 = vmatprep.subr.mxu0 0.0
    %804 = vmatpush1.msra.mxu0 0.0
    %805 = vmatprep.subr.mxu0 0.0
    %806 = vmatpush1.msra.mxu0 0.0
    %807 = vmatprep.subr.mxu0 0.0
    %808 = vmatpush1.msra.mxu0 0.0
    %809 = vmatprep.subr.mxu0 0.0
    %810 = vmatpush1.msra.mxu0 0.0
    %811 = vmatprep.subr.mxu0 0.0
    %812 = vmatpush1.msra.mxu0 0.0
    %813 = vmatprep.mubr.f32.mxu0 0.0
    %814 = vmatmul.mubr.f32.gmra.mrb[0].mxu0 %v747
    %v815 = vpop.f32.mrb[0].mxu0
    %v816 = vadd.f32 0.0, %v815
    %v817 = vpop.f32.mrb[0].mxu0
    %818 = vdwg.mxu0
    %v820 = vsel %vm159, %v740, 0
    %v823 = vsel %vm159, %v816, 0
    %825 = vmatprep.subr.mxu0 0.0
    %826 = vmatpush1.msra.mxu0 %v68
    %827 = vmatprep.subr.mxu0 0.0
    %828 = vmatpush1.msra.mxu0 0.0
    %829 = vmatprep.subr.mxu0 0.0
    %830 = vmatpush1.msra.mxu0 0.0
    %831 = vmatprep.subr.mxu0 0.0
    %832 = vmatpush1.msra.mxu0 0.0
    %833 = vmatprep.subr.mxu0 0.0
    %834 = vmatpush1.msra.mxu0 0.0
    %835 = vmatprep.subr.mxu0 0.0
    %836 = vmatpush1.msra.mxu0 0.0
    %837 = vmatprep.subr.mxu0 0.0
    %838 = vmatpush1.msra.mxu0 0.0
    %839 = vmatprep.subr.mxu0 0.0
    %840 = vmatpush1.msra.mxu0 0.0
    %841 = vmatprep.subr.mxu0 0.0
    %842 = vmatpush1.msra.mxu0 0.0
    %843 = vmatprep.subr.mxu0 0.0
    %844 = vmatpush1.msra.mxu0 0.0
    %845 = vmatprep.subr.mxu0 0.0
    %846 = vmatpush1.msra.mxu0 0.0
    %847 = vmatprep.subr.mxu0 0.0
    %848 = vmatpush1.msra.mxu0 0.0
    %849 = vmatprep.subr.mxu0 0.0
    %850 = vmatpush1.msra.mxu0 0.0
    %851 = vmatprep.subr.mxu0 0.0
    %852 = vmatpush1.msra.mxu0 0.0
    %853 = vmatprep.subr.mxu0 0.0
    %854 = vmatpush1.msra.mxu0 0.0
    %855 = vmatprep.subr.mxu0 0.0
    %856 = vmatpush1.msra.mxu0 0.0
    %857 = vmatprep.subr.mxu0 0.0
    %858 = vmatpush1.msra.mxu0 0.0
    %859 = vmatprep.subr.mxu0 0.0
    %860 = vmatpush1.msra.mxu0 0.0
    %861 = vmatprep.subr.mxu0 0.0
    %862 = vmatpush1.msra.mxu0 0.0
    %863 = vmatprep.subr.mxu0 0.0
    %864 = vmatpush1.msra.mxu0 0.0
    %865 = vmatprep.subr.mxu0 0.0
    %866 = vmatpush1.msra.mxu0 0.0
    %867 = vmatprep.subr.mxu0 0.0
    %868 = vmatpush1.msra.mxu0 0.0
    %869 = vmatprep.subr.mxu0 0.0
    %870 = vmatpush1.msra.mxu0 0.0
    %871 = vmatprep.subr.mxu0 0.0
    %872 = vmatpush1.msra.mxu0 0.0
    %873 = vmatprep.subr.mxu0 0.0
    %874 = vmatpush1.msra.mxu0 0.0
    %875 = vmatprep.subr.mxu0 0.0
    %876 = vmatpush1.msra.mxu0 0.0
    %877 = vmatprep.subr.mxu0 0.0
    %878 = vmatpush1.msra.mxu0 0.0
    %879 = vmatprep.subr.mxu0 0.0
    %880 = vmatpush1.msra.mxu0 0.0
    %881 = vmatprep.subr.mxu0 0.0
    %882 = vmatpush1.msra.mxu0 0.0
    %883 = vmatprep.subr.mxu0 0.0
    %884 = vmatpush1.msra.mxu0 0.0
    %885 = vmatprep.subr.mxu0 0.0
    %886 = vmatpush1.msra.mxu0 0.0
    %887 = vmatprep.subr.mxu0 0.0
    %888 = vmatpush1.msra.mxu0 0.0
    %889 = vmatprep.mubr.f32.mxu0 0.0
    %890 = vmatmul.mubr.f32.gmra.mrb[0].mxu0 %v820
    %v891 = vpop.f32.mrb[0].mxu0
    %v892 = vadd.f32 0.0, %v891
    %v893 = vpop.f32.mrb[0].mxu0
    %894 = vmatprep.mubr.f32.mxu0 0.0
    %895 = vmatmul.mubr.f32.gmra.mrb[0].mxu0 %v823
    %v896 = vpop.f32.mrb[0].mxu0
    %v897 = vadd.f32 0.0, %v896
    %v898 = vpop.f32.mrb[0].mxu0
    %899 = vdwg.mxu0
    %v901 = vsel %vm159, %v408, 0
    %v904 = vsel %vm159, %v484, 0
    %906 = vmatprep.subr.mxu0 0.0
    %907 = vmatpush1.msra.mxu0 %v67
    %908 = vmatprep.subr.mxu0 0.0
    %909 = vmatpush1.msra.mxu0 0.0
    %910 = vmatprep.subr.mxu0 0.0
    %911 = vmatpush1.msra.mxu0 0.0
    %912 = vmatprep.subr.mxu0 0.0
    %913 = vmatpush1.msra.mxu0 0.0
    %914 = vmatprep.subr.mxu0 0.0
    %915 = vmatpush1.msra.mxu0 0.0
    %916 = vmatprep.subr.mxu0 0.0
    %917 = vmatpush1.msra.mxu0 0.0
    %918 = vmatprep.subr.mxu0 0.0
    %919 = vmatpush1.msra.mxu0 0.0
    %920 = vmatprep.subr.mxu0 0.0
    %921 = vmatpush1.msra.mxu0 0.0
    %922 = vmatprep.subr.mxu0 0.0
    %923 = vmatpush1.msra.mxu0 0.0
    %924 = vmatprep.subr.mxu0 0.0
    %925 = vmatpush1.msra.mxu0 0.0
    %926 = vmatprep.subr.mxu0 0.0
    %927 = vmatpush1.msra.mxu0 0.0
    %928 = vmatprep.subr.mxu0 0.0
    %929 = vmatpush1.msra.mxu0 0.0
    %930 = vmatprep.subr.mxu0 0.0
    %931 = vmatpush1.msra.mxu0 0.0
    %932 = vmatprep.subr.mxu0 0.0
    %933 = vmatpush1.msra.mxu0 0.0
    %934 = vmatprep.subr.mxu0 0.0
    %935 = vmatpush1.msra.mxu0 0.0
    %936 = vmatprep.subr.mxu0 0.0
    %937 = vmatpush1.msra.mxu0 0.0
    %938 = vmatprep.subr.mxu0 0.0
    %939 = vmatpush1.msra.mxu0 0.0
    %940 = vmatprep.subr.mxu0 0.0
    %941 = vmatpush1.msra.mxu0 0.0
    %942 = vmatprep.subr.mxu0 0.0
    %943 = vmatpush1.msra.mxu0 0.0
    %944 = vmatprep.subr.mxu0 0.0
    %945 = vmatpush1.msra.mxu0 0.0
    %946 = vmatprep.subr.mxu0 0.0
    %947 = vmatpush1.msra.mxu0 0.0
    %948 = vmatprep.subr.mxu0 0.0
    %949 = vmatpush1.msra.mxu0 0.0
    %950 = vmatprep.subr.mxu0 0.0
    %951 = vmatpush1.msra.mxu0 0.0
    %952 = vmatprep.subr.mxu0 0.0
    %953 = vmatpush1.msra.mxu0 0.0
    %954 = vmatprep.subr.mxu0 0.0
    %955 = vmatpush1.msra.mxu0 0.0
    %956 = vmatprep.subr.mxu0 0.0
    %957 = vmatpush1.msra.mxu0 0.0
    %958 = vmatprep.subr.mxu0 0.0
    %959 = vmatpush1.msra.mxu0 0.0
    %960 = vmatprep.subr.mxu0 0.0
    %961 = vmatpush1.msra.mxu0 0.0
    %962 = vmatprep.subr.mxu0 0.0
    %963 = vmatpush1.msra.mxu0 0.0
    %964 = vmatprep.subr.mxu0 0.0
    %965 = vmatpush1.msra.mxu0 0.0
    %966 = vmatprep.subr.mxu0 0.0
    %967 = vmatpush1.msra.mxu0 0.0
    %968 = vmatprep.subr.mxu0 0.0
    %969 = vmatpush1.msra.mxu0 0.0
    %970 = vmatprep.mubr.f32.mxu0 0.0
    %971 = vmatmul.mubr.f32.gmra.mrb[0].mxu0 %v901
    %v972 = vpop.f32.mrb[0].mxu0
    %v973 = vadd.f32 %v892, %v972
    %v974 = vpop.f32.mrb[0].mxu0
    %975 = vmatprep.mubr.f32.mxu0 0.0
    %976 = vmatmul.mubr.f32.gmra.mrb[0].mxu0 %v904
    %v977 = vpop.f32.mrb[0].mxu0
    %v978 = vadd.f32 %v897, %v977
    %v979 = vpop.f32.mrb[0].mxu0
    %980 = vdwg.mxu0
    %981 = vrot.lane.b32.xlu0 %v148, 112
    %v982 = vpop.permute.xlu0 %981
    %983 = vrot.lane.b32.xlu0 %v148, 80
    %v984 = vpop.permute.xlu0 %983
    %v985 = vsel %vm159, %v982, 0
    %v987 = vsel %vm159, %v984, 0
    %989 = vmatprep.subr.mxu0 0.0
    %990 = vmatpush1.xpose.msra.mxu0 %v987
    %991 = vmatprep.subr.mxu0 0.0
    %992 = vmatpush1.xpose.msra.mxu0 0.0
    %993 = vmatprep.subr.mxu0 0.0
    %994 = vmatpush1.xpose.msra.mxu0 0.0
    %995 = vmatprep.subr.mxu0 0.0
    %996 = vmatpush1.xpose.msra.mxu0 0.0
    %997 = vmatprep.subr.mxu0 0.0
    %998 = vmatpush1.xpose.msra.mxu0 0.0
    %999 = vmatprep.subr.mxu0 0.0
    %1000 = vmatpush1.xpose.msra.mxu0 0.0
    %1001 = vmatprep.subr.mxu0 0.0
    %1002 = vmatpush1.xpose.msra.mxu0 0.0
    %1003 = vmatprep.subr.mxu0 0.0
    %1004 = vmatpush1.xpose.msra.mxu0 0.0
    %1005 = vmatprep.subr.mxu0 0.0
    %1006 = vmatpush1.xpose.msra.mxu0 0.0
    %1007 = vmatprep.subr.mxu0 0.0
    %1008 = vmatpush1.xpose.msra.mxu0 0.0
    %1009 = vmatprep.subr.mxu0 0.0
    %1010 = vmatpush1.xpose.msra.mxu0 0.0
    %1011 = vmatprep.subr.mxu0 0.0
    %1012 = vmatpush1.xpose.msra.mxu0 0.0
    %1013 = vmatprep.subr.mxu0 0.0
    %1014 = vmatpush1.xpose.msra.mxu0 0.0
    %1015 = vmatprep.subr.mxu0 0.0
    %1016 = vmatpush1.xpose.msra.mxu0 0.0
    %1017 = vmatprep.subr.mxu0 0.0
    %1018 = vmatpush1.xpose.msra.mxu0 0.0
    %1019 = vmatprep.subr.mxu0 0.0
    %1020 = vmatpush1.xpose.msra.mxu0 0.0
    %1021 = vmatprep.subr.mxu0 0.0
    %1022 = vmatpush1.xpose.msra.mxu0 0.0
    %1023 = vmatprep.subr.mxu0 0.0
    %1024 = vmatpush1.xpose.msra.mxu0 0.0
    %1025 = vmatprep.subr.mxu0 0.0
    %1026 = vmatpush1.xpose.msra.mxu0 0.0
    %1027 = vmatprep.subr.mxu0 0.0
    %1028 = vmatpush1.xpose.msra.mxu0 0.0
    %1029 = vmatprep.subr.mxu0 0.0
    %1030 = vmatpush1.xpose.msra.mxu0 0.0
    %1031 = vmatprep.subr.mxu0 0.0
    %1032 = vmatpush1.xpose.msra.mxu0 0.0
    %1033 = vmatprep.subr.mxu0 0.0
    %1034 = vmatpush1.xpose.msra.mxu0 0.0
    %1035 = vmatprep.subr.mxu0 0.0
    %1036 = vmatpush1.xpose.msra.mxu0 0.0
    %1037 = vmatprep.subr.mxu0 0.0
    %1038 = vmatpush1.xpose.msra.mxu0 0.0
    %1039 = vmatprep.subr.mxu0 0.0
    %1040 = vmatpush1.xpose.msra.mxu0 0.0
    %1041 = vmatprep.subr.mxu0 0.0
    %1042 = vmatpush1.xpose.msra.mxu0 0.0
    %1043 = vmatprep.subr.mxu0 0.0
    %1044 = vmatpush1.xpose.msra.mxu0 0.0
    %1045 = vmatprep.subr.mxu0 0.0
    %1046 = vmatpush1.xpose.msra.mxu0 0.0
    %1047 = vmatprep.subr.mxu0 0.0
    %1048 = vmatpush1.xpose.msra.mxu0 0.0
    %1049 = vmatprep.subr.mxu0 0.0
    %1050 = vmatpush1.xpose.msra.mxu0 0.0
    %1051 = vmatprep.subr.mxu0 0.0
    %1052 = vmatpush1.xpose.msra.mxu0 0.0
    %1053 = vmatprep.mubr.f32.mxu0 0.0
    %1054 = vmatmul.mubr.f32.gmra.mrb[0].mxu0 %v985
    %v1055 = vpop.f32.mrb[0].mxu0
    %v1056 = vadd.f32 0.0, %v1055
    %v1057 = vpop.f32.mrb[0].mxu0
    %1058 = vdwg.mxu0
    %1059 = vrot.lane.b32.xlu0 %v153, 112
    %v1060 = vpop.permute.xlu0 %1059
    %1061 = vrot.lane.b32.xlu0 %v153, 80
    %v1062 = vpop.permute.xlu0 %1061
    %v1063 = vsel %vm159, %v1060, 0
    %v1065 = vsel %vm159, %v1062, 0
    %1067 = vmatprep.subr.mxu0 0.0
    %1068 = vmatpush1.xpose.msra.mxu0 %v1065
    %1069 = vmatprep.subr.mxu0 0.0
    %1070 = vmatpush1.xpose.msra.mxu0 0.0
    %1071 = vmatprep.subr.mxu0 0.0
    %1072 = vmatpush1.xpose.msra.mxu0 0.0
    %1073 = vmatprep.subr.mxu0 0.0
    %1074 = vmatpush1.xpose.msra.mxu0 0.0
    %1075 = vmatprep.subr.mxu0 0.0
    %1076 = vmatpush1.xpose.msra.mxu0 0.0
    %1077 = vmatprep.subr.mxu0 0.0
    %1078 = vmatpush1.xpose.msra.mxu0 0.0
    %1079 = vmatprep.subr.mxu0 0.0
    %1080 = vmatpush1.xpose.msra.mxu0 0.0
    %1081 = vmatprep.subr.mxu0 0.0
    %1082 = vmatpush1.xpose.msra.mxu0 0.0
    %1083 = vmatprep.subr.mxu0 0.0
    %1084 = vmatpush1.xpose.msra.mxu0 0.0
    %1085 = vmatprep.subr.mxu0 0.0
    %1086 = vmatpush1.xpose.msra.mxu0 0.0
    %1087 = vmatprep.subr.mxu0 0.0
    %1088 = vmatpush1.xpose.msra.mxu0 0.0
    %1089 = vmatprep.subr.mxu0 0.0
    %1090 = vmatpush1.xpose.msra.mxu0 0.0
    %1091 = vmatprep.subr.mxu0 0.0
    %1092 = vmatpush1.xpose.msra.mxu0 0.0
    %1093 = vmatprep.subr.mxu0 0.0
    %1094 = vmatpush1.xpose.msra.mxu0 0.0
    %1095 = vmatprep.subr.mxu0 0.0
    %1096 = vmatpush1.xpose.msra.mxu0 0.0
    %1097 = vmatprep.subr.mxu0 0.0
    %1098 = vmatpush1.xpose.msra.mxu0 0.0
    %1099 = vmatprep.subr.mxu0 0.0
    %1100 = vmatpush1.xpose.msra.mxu0 0.0
    %1101 = vmatprep.subr.mxu0 0.0
    %1102 = vmatpush1.xpose.msra.mxu0 0.0
    %1103 = vmatprep.subr.mxu0 0.0
    %1104 = vmatpush1.xpose.msra.mxu0 0.0
    %1105 = vmatprep.subr.mxu0 0.0
    %1106 = vmatpush1.xpose.msra.mxu0 0.0
    %1107 = vmatprep.subr.mxu0 0.0
    %1108 = vmatpush1.xpose.msra.mxu0 0.0
    %1109 = vmatprep.subr.mxu0 0.0
    %1110 = vmatpush1.xpose.msra.mxu0 0.0
    %1111 = vmatprep.subr.mxu0 0.0
    %1112 = vmatpush1.xpose.msra.mxu0 0.0
    %1113 = vmatprep.subr.mxu0 0.0
    %1114 = vmatpush1.xpose.msra.mxu0 0.0
    %1115 = vmatprep.subr.mxu0 0.0
    %1116 = vmatpush1.xpose.msra.mxu0 0.0
    %1117 = vmatprep.subr.mxu0 0.0
    %1118 = vmatpush1.xpose.msra.mxu0 0.0
    %1119 = vmatprep.subr.mxu0 0.0
    %1120 = vmatpush1.xpose.msra.mxu0 0.0
    %1121 = vmatprep.subr.mxu0 0.0
    %1122 = vmatpush1.xpose.msra.mxu0 0.0
    %1123 = vmatprep.subr.mxu0 0.0
    %1124 = vmatpush1.xpose.msra.mxu0 0.0
    %1125 = vmatprep.subr.mxu0 0.0
    %1126 = vmatpush1.xpose.msra.mxu0 0.0
    %1127 = vmatprep.subr.mxu0 0.0
    %1128 = vmatpush1.xpose.msra.mxu0 0.0
    %1129 = vmatprep.subr.mxu0 0.0
    %1130 = vmatpush1.xpose.msra.mxu0 0.0
    %1131 = vmatprep.mubr.f32.mxu0 0.0
    %1132 = vmatmul.mubr.f32.gmra.mrb[0].mxu0 %v1063
    %v1133 = vpop.f32.mrb[0].mxu0
    %v1134 = vadd.f32 0.0, %v1133
    %v1135 = vpop.f32.mrb[0].mxu0
    %1136 = vdwg.mxu0
    %v1137 = vmul.f32 %v1056, 0.35355338
    %v1138 = vmul.f32 %v1134, 0.35355338
    %v1139 = vsel %vm159, %v1137, -inf
    %1140 = vmax.xlane.f32.xlu0 %v1139
    %v1141 = vpop.xlane.xlu0 %1140
    %v1142 = vsel %vm159, %v1138, -inf
    %1143 = vmax.xlane.f32.xlu0 %v1142
    %v1144 = vpop.xlane.xlu0 %1143
    %v1145 = vsub.f32 %v1137, %v1141
    %v1146 = vsub.f32 %v1138, %v1144
    %v1147 = vmul.f32 %v1145, 1.442695
    %v1148 = vpow.pop %v1147
    %v1149 = vmul.f32 %v1146, 1.442695
    %v1150 = vpow.pop %v1149
    %v1151 = vsel %vm159, %v1148, 0.0
    %1152 = vadd.xlane.f32.xlu0 %v1151
    %v1153 = vpop.xlane.xlu0 %1152
    %v1154 = vsel %vm159, %v1150, 0.0
    %1155 = vadd.xlane.f32.xlu0 %v1154
    %v1156 = vpop.xlane.xlu0 %1155
    %v1157 = vrcp.pop %v1153
    %v1158 = vrcp.pop %v1156
    %v1159 = vmul.f32 %v1148, %v1157
    %v1160 = vmul.f32 %v1150, %v1158
    %1161 = vrot.lane.b32.xlu0 %v148, 48
    %v1162 = vpop.permute.xlu0 %1161
    %v1165 = vsel %vm159, %v1159, 0
    %1167 = vmatprep.subr.mxu0 0.0
    %1168 = vmatpush1.msra.mxu0 %v1162
    %1169 = vmatprep.subr.mxu0 0.0
    %1170 = vmatpush1.msra.mxu0 0.0
    %1171 = vmatprep.subr.mxu0 0.0
    %1172 = vmatpush1.msra.mxu0 0.0
    %1173 = vmatprep.subr.mxu0 0.0
    %1174 = vmatpush1.msra.mxu0 0.0
    %1175 = vmatprep.subr.mxu0 0.0
    %1176 = vmatpush1.msra.mxu0 0.0
    %1177 = vmatprep.subr.mxu0 0.0
    %1178 = vmatpush1.msra.mxu0 0.0
    %1179 = vmatprep.subr.mxu0 0.0
    %1180 = vmatpush1.msra.mxu0 0.0
    %1181 = vmatprep.subr.mxu0 0.0
    %1182 = vmatpush1.msra.mxu0 0.0
    %1183 = vmatprep.subr.mxu0 0.0
    %1184 = vmatpush1.msra.mxu0 0.0
    %1185 = vmatprep.subr.mxu0 0.0
    %1186 = vmatpush1.msra.mxu0 0.0
    %1187 = vmatprep.subr.mxu0 0.0
    %1188 = vmatpush1.msra.mxu0 0.0
    %1189 = vmatprep.subr.mxu0 0.0
    %1190 = vmatpush1.msra.mxu0 0.0
    %1191 = vmatprep.subr.mxu0 0.0
    %1192 = vmatpush1.msra.mxu0 0.0
    %1193 = vmatprep.subr.mxu0 0.0
    %1194 = vmatpush1.msra.mxu0 0.0
    %1195 = vmatprep.subr.mxu0 0.0
    %1196 = vmatpush1.msra.mxu0 0.0
    %1197 = vmatprep.subr.mxu0 0.0
    %1198 = vmatpush1.msra.mxu0 0.0
    %1199 = vmatprep.subr.mxu0 0.0
    %1200 = vmatpush1.msra.mxu0 0.0
    %1201 = vmatprep.subr.mxu0 0.0
    %1202 = vmatpush1.msra.mxu0 0.0
    %1203 = vmatprep.subr.mxu0 0.0
    %1204 = vmatpush1.msra.mxu0 0.0
    %1205 = vmatprep.subr.mxu0 0.0
    %1206 = vmatpush1.msra.mxu0 0.0
    %1207 = vmatprep.subr.mxu0 0.0
    %1208 = vmatpush1.msra.mxu0 0.0
    %1209 = vmatprep.subr.mxu0 0.0
    %1210 = vmatpush1.msra.mxu0 0.0
    %1211 = vmatprep.subr.mxu0 0.0
    %1212 = vmatpush1.msra.mxu0 0.0
    %1213 = vmatprep.subr.mxu0 0.0
    %1214 = vmatpush1.msra.mxu0 0.0
    %1215 = vmatprep.subr.mxu0 0.0
    %1216 = vmatpush1.msra.mxu0 0.0
    %1217 = vmatprep.subr.mxu0 0.0
    %1218 = vmatpush1.msra.mxu0 0.0
    %1219 = vmatprep.subr.mxu0 0.0
    %1220 = vmatpush1.msra.mxu0 0.0
    %1221 = vmatprep.subr.mxu0 0.0
    %1222 = vmatpush1.msra.mxu0 0.0
    %1223 = vmatprep.subr.mxu0 0.0
    %1224 = vmatpush1.msra.mxu0 0.0
    %1225 = vmatprep.subr.mxu0 0.0
    %1226 = vmatpush1.msra.mxu0 0.0
    %1227 = vmatprep.subr.mxu0 0.0
    %1228 = vmatpush1.msra.mxu0 0.0
    %1229 = vmatprep.subr.mxu0 0.0
    %1230 = vmatpush1.msra.mxu0 0.0
    %1231 = vmatprep.mubr.f32.mxu0 0.0
    %1232 = vmatmul.mubr.f32.gmra.mrb[0].mxu0 %v1165
    %v1233 = vpop.f32.mrb[0].mxu0
    %v1234 = vadd.f32 0.0, %v1233
    %v1235 = vpop.f32.mrb[0].mxu0
    %1236 = vdwg.mxu0
    %1237 = vrot.lane.b32.xlu0 %v153, 48
    %v1238 = vpop.permute.xlu0 %1237
    %v1241 = vsel %vm159, %v1160, 0
    %1243 = vmatprep.subr.mxu0 0.0
    %1244 = vmatpush1.msra.mxu0 %v1238
    %1245 = vmatprep.subr.mxu0 0.0
    %1246 = vmatpush1.msra.mxu0 0.0
    %1247 = vmatprep.subr.mxu0 0.0
    %1248 = vmatpush1.msra.mxu0 0.0
    %1249 = vmatprep.subr.mxu0 0.0
    %1250 = vmatpush1.msra.mxu0 0.0
    %1251 = vmatprep.subr.mxu0 0.0
    %1252 = vmatpush1.msra.mxu0 0.0
    %1253 = vmatprep.subr.mxu0 0.0
    %1254 = vmatpush1.msra.mxu0 0.0
    %1255 = vmatprep.subr.mxu0 0.0
    %1256 = vmatpush1.msra.mxu0 0.0
    %1257 = vmatprep.subr.mxu0 0.0
    %1258 = vmatpush1.msra.mxu0 0.0
    %1259 = vmatprep.subr.mxu0 0.0
    %1260 = vmatpush1.msra.mxu0 0.0
    %1261 = vmatprep.subr.mxu0 0.0
    %1262 = vmatpush1.msra.mxu0 0.0
    %1263 = vmatprep.subr.mxu0 0.0
    %1264 = vmatpush1.msra.mxu0 0.0
    %1265 = vmatprep.subr.mxu0 0.0
    %1266 = vmatpush1.msra.mxu0 0.0
    %1267 = vmatprep.subr.mxu0 0.0
    %1268 = vmatpush1.msra.mxu0 0.0
    %1269 = vmatprep.subr.mxu0 0.0
    %1270 = vmatpush1.msra.mxu0 0.0
    %1271 = vmatprep.subr.mxu0 0.0
    %1272 = vmatpush1.msra.mxu0 0.0
    %1273 = vmatprep.subr.mxu0 0.0
    %1274 = vmatpush1.msra.mxu0 0.0
    %1275 = vmatprep.subr.mxu0 0.0
    %1276 = vmatpush1.msra.mxu0 0.0
    %1277 = vmatprep.subr.mxu0 0.0
    %1278 = vmatpush1.msra.mxu0 0.0
    %1279 = vmatprep.subr.mxu0 0.0
    %1280 = vmatpush1.msra.mxu0 0.0
    %1281 = vmatprep.subr.mxu0 0.0
    %1282 = vmatpush1.msra.mxu0 0.0
    %1283 = vmatprep.subr.mxu0 0.0
    %1284 = vmatpush1.msra.mxu0 0.0
    %1285 = vmatprep.subr.mxu0 0.0
    %1286 = vmatpush1.msra.mxu0 0.0
    %1287 = vmatprep.subr.mxu0 0.0
    %1288 = vmatpush1.msra.mxu0 0.0
    %1289 = vmatprep.subr.mxu0 0.0
    %1290 = vmatpush1.msra.mxu0 0.0
    %1291 = vmatprep.subr.mxu0 0.0
    %1292 = vmatpush1.msra.mxu0 0.0
    %1293 = vmatprep.subr.mxu0 0.0
    %1294 = vmatpush1.msra.mxu0 0.0
    %1295 = vmatprep.subr.mxu0 0.0
    %1296 = vmatpush1.msra.mxu0 0.0
    %1297 = vmatprep.subr.mxu0 0.0
    %1298 = vmatpush1.msra.mxu0 0.0
    %1299 = vmatprep.subr.mxu0 0.0
    %1300 = vmatpush1.msra.mxu0 0.0
    %1301 = vmatprep.subr.mxu0 0.0
    %1302 = vmatpush1.msra.mxu0 0.0
    %1303 = vmatprep.subr.mxu0 0.0
    %1304 = vmatpush1.msra.mxu0 0.0
    %1305 = vmatprep.subr.mxu0 0.0
    %1306 = vmatpush1.msra.mxu0 0.0
    %1307 = vmatprep.mubr.f32.mxu0 0.0
    %1308 = vmatmul.mubr.f32.gmra.mrb[0].mxu0 %v1241
    %v1309 = vpop.f32.mrb[0].mxu0
    %v1310 = vadd.f32 0.0, %v1309
    %v1311 = vpop.f32.mrb[0].mxu0
    %1312 = vdwg.mxu0
    %v1314 = vsel %vm159, %v1234, 0
    %v1317 = vsel %vm159, %v1310, 0
    %1319 = vmatprep.subr.mxu0 0.0
    %1320 = vmatpush1.msra.mxu0 %v69
    %1321 = vmatprep.subr.mxu0 0.0
    %1322 = vmatpush1.msra.mxu0 0.0
    %1323 = vmatprep.subr.mxu0 0.0
    %1324 = vmatpush1.msra.mxu0 0.0
    %1325 = vmatprep.subr.mxu0 0.0
    %1326 = vmatpush1.msra.mxu0 0.0
    %1327 = vmatprep.subr.mxu0 0.0
    %1328 = vmatpush1.msra.mxu0 0.0
    %1329 = vmatprep.subr.mxu0 0.0
    %1330 = vmatpush1.msra.mxu0 0.0
    %1331 = vmatprep.subr.mxu0 0.0
    %1332 = vmatpush1.msra.mxu0 0.0
    %1333 = vmatprep.subr.mxu0 0.0
    %1334 = vmatpush1.msra.mxu0 0.0
    %1335 = vmatprep.subr.mxu0 0.0
    %1336 = vmatpush1.msra.mxu0 0.0
    %1337 = vmatprep.subr.mxu0 0.0
    %1338 = vmatpush1.msra.mxu0 0.0
    %1339 = vmatprep.subr.mxu0 0.0
    %1340 = vmatpush1.msra.mxu0 0.0
    %1341 = vmatprep.subr.mxu0 0.0
    %1342 = vmatpush1.msra.mxu0 0.0
    %1343 = vmatprep.subr.mxu0 0.0
    %1344 = vmatpush1.msra.mxu0 0.0
    %1345 = vmatprep.subr.mxu0 0.0
    %1346 = vmatpush1.msra.mxu0 0.0
    %1347 = vmatprep.subr.mxu0 0.0
    %1348 = vmatpush1.msra.mxu0 0.0
    %1349 = vmatprep.subr.mxu0 0.0
    %1350 = vmatpush1.msra.mxu0 0.0
    %1351 = vmatprep.subr.mxu0 0.0
    %1352 = vmatpush1.msra.mxu0 0.0
    %1353 = vmatprep.subr.mxu0 0.0
    %1354 = vmatpush1.msra.mxu0 0.0
    %1355 = vmatprep.subr.mxu0 0.0
    %1356 = vmatpush1.msra.mxu0 0.0
    %1357 = vmatprep.subr.mxu0 0.0
    %1358 = vmatpush1.msra.mxu0 0.0
    %1359 = vmatprep.subr.mxu0 0.0
    %1360 = vmatpush1.msra.mxu0 0.0
    %1361 = vmatprep.subr.mxu0 0.0
    %1362 = vmatpush1.msra.mxu0 0.0
    %1363 = vmatprep.subr.mxu0 0.0
    %1364 = vmatpush1.msra.mxu0 0.0
    %1365 = vmatprep.subr.mxu0 0.0
    %1366 = vmatpush1.msra.mxu0 0.0
    %1367 = vmatprep.subr.mxu0 0.0
    %1368 = vmatpush1.msra.mxu0 0.0
    %1369 = vmatprep.subr.mxu0 0.0
    %1370 = vmatpush1.msra.mxu0 0.0
    %1371 = vmatprep.subr.mxu0 0.0
    %1372 = vmatpush1.msra.mxu0 0.0
    %1373 = vmatprep.subr.mxu0 0.0
    %1374 = vmatpush1.msra.mxu0 0.0
    %1375 = vmatprep.subr.mxu0 0.0
    %1376 = vmatpush1.msra.mxu0 0.0
    %1377 = vmatprep.subr.mxu0 0.0
    %1378 = vmatpush1.msra.mxu0 0.0
    %1379 = vmatprep.subr.mxu0 0.0
    %1380 = vmatpush1.msra.mxu0 0.0
    %1381 = vmatprep.subr.mxu0 0.0
    %1382 = vmatpush1.msra.mxu0 0.0
    %1383 = vmatprep.mubr.f32.mxu0 0.0
    %1384 = vmatmul.mubr.f32.gmra.mrb[0].mxu0 %v1314
    %v1385 = vpop.f32.mrb[0].mxu0
    %v1386 = vadd.f32 0.0, %v1385
    %v1387 = vpop.f32.mrb[0].mxu0
    %1388 = vmatprep.mubr.f32.mxu0 0.0
    %1389 = vmatmul.mubr.f32.gmra.mrb[0].mxu0 %v1317
    %v1390 = vpop.f32.mrb[0].mxu0
    %v1391 = vadd.f32 0.0, %v1390
    %v1392 = vpop.f32.mrb[0].mxu0
    %1393 = vdwg.mxu0
    %v1394 = vadd.f32 %v973, %v1386
    %v1395 = vadd.f32 %v978, %v1391
    %1396 = vrot.lane.b32.xlu0 %v148, 104
    %v1397 = vpop.permute.xlu0 %1396
    %1398 = vrot.lane.b32.xlu0 %v148, 72
    %v1399 = vpop.permute.xlu0 %1398
    %v1400 = vsel %vm159, %v1397, 0
    %v1402 = vsel %vm159, %v1399, 0
    %1404 = vmatprep.subr.mxu0 0.0
    %1405 = vmatpush1.xpose.msra.mxu0 %v1402
    %1406 = vmatprep.subr.mxu0 0.0
    %1407 = vmatpush1.xpose.msra.mxu0 0.0
    %1408 = vmatprep.subr.mxu0 0.0
    %1409 = vmatpush1.xpose.msra.mxu0 0.0
    %1410 = vmatprep.subr.mxu0 0.0
    %1411 = vmatpush1.xpose.msra.mxu0 0.0
    %1412 = vmatprep.subr.mxu0 0.0
    %1413 = vmatpush1.xpose.msra.mxu0 0.0
    %1414 = vmatprep.subr.mxu0 0.0
    %1415 = vmatpush1.xpose.msra.mxu0 0.0
    %1416 = vmatprep.subr.mxu0 0.0
    %1417 = vmatpush1.xpose.msra.mxu0 0.0
    %1418 = vmatprep.subr.mxu0 0.0
    %1419 = vmatpush1.xpose.msra.mxu0 0.0
    %1420 = vmatprep.subr.mxu0 0.0
    %1421 = vmatpush1.xpose.msra.mxu0 0.0
    %1422 = vmatprep.subr.mxu0 0.0
    %1423 = vmatpush1.xpose.msra.mxu0 0.0
    %1424 = vmatprep.subr.mxu0 0.0
    %1425 = vmatpush1.xpose.msra.mxu0 0.0
    %1426 = vmatprep.subr.mxu0 0.0
    %1427 = vmatpush1.xpose.msra.mxu0 0.0
    %1428 = vmatprep.subr.mxu0 0.0
    %1429 = vmatpush1.xpose.msra.mxu0 0.0
    %1430 = vmatprep.subr.mxu0 0.0
    %1431 = vmatpush1.xpose.msra.mxu0 0.0
    %1432 = vmatprep.subr.mxu0 0.0
    %1433 = vmatpush1.xpose.msra.mxu0 0.0
    %1434 = vmatprep.subr.mxu0 0.0
    %1435 = vmatpush1.xpose.msra.mxu0 0.0
    %1436 = vmatprep.subr.mxu0 0.0
    %1437 = vmatpush1.xpose.msra.mxu0 0.0
    %1438 = vmatprep.subr.mxu0 0.0
    %1439 = vmatpush1.xpose.msra.mxu0 0.0
    %1440 = vmatprep.subr.mxu0 0.0
    %1441 = vmatpush1.xpose.msra.mxu0 0.0
    %1442 = vmatprep.subr.mxu0 0.0
    %1443 = vmatpush1.xpose.msra.mxu0 0.0
    %1444 = vmatprep.subr.mxu0 0.0
    %1445 = vmatpush1.xpose.msra.mxu0 0.0
    %1446 = vmatprep.subr.mxu0 0.0
    %1447 = vmatpush1.xpose.msra.mxu0 0.0
    %1448 = vmatprep.subr.mxu0 0.0
    %1449 = vmatpush1.xpose.msra.mxu0 0.0
    %1450 = vmatprep.subr.mxu0 0.0
    %1451 = vmatpush1.xpose.msra.mxu0 0.0
    %1452 = vmatprep.subr.mxu0 0.0
    %1453 = vmatpush1.xpose.msra.mxu0 0.0
    %1454 = vmatprep.subr.mxu0 0.0
    %1455 = vmatpush1.xpose.msra.mxu0 0.0
    %1456 = vmatprep.subr.mxu0 0.0
    %1457 = vmatpush1.xpose.msra.mxu0 0.0
    %1458 = vmatprep.subr.mxu0 0.0
    %1459 = vmatpush1.xpose.msra.mxu0 0.0
    %1460 = vmatprep.subr.mxu0 0.0
    %1461 = vmatpush1.xpose.msra.mxu0 0.0
    %1462 = vmatprep.subr.mxu0 0.0
    %1463 = vmatpush1.xpose.msra.mxu0 0.0
    %1464 = vmatprep.subr.mxu0 0.0
    %1465 = vmatpush1.xpose.msra.mxu0 0.0
    %1466 = vmatprep.subr.mxu0 0.0
    %1467 = vmatpush1.xpose.msra.mxu0 0.0
    %1468 = vmatprep.mubr.f32.mxu0 0.0
    %1469 = vmatmul.mubr.f32.gmra.mrb[0].mxu0 %v1400
    %v1470 = vpop.f32.mrb[0].mxu0
    %v1471 = vadd.f32 0.0, %v1470
    %v1472 = vpop.f32.mrb[0].mxu0
    %1473 = vdwg.mxu0
    %1474 = vrot.lane.b32.xlu0 %v153, 104
    %v1475 = vpop.permute.xlu0 %1474
    %1476 = vrot.lane.b32.xlu0 %v153, 72
    %v1477 = vpop.permute.xlu0 %1476
    %v1478 = vsel %vm159, %v1475, 0
    %v1480 = vsel %vm159, %v1477, 0
    %1482 = vmatprep.subr.mxu0 0.0
    %1483 = vmatpush1.xpose.msra.mxu0 %v1480
    %1484 = vmatprep.subr.mxu0 0.0
    %1485 = vmatpush1.xpose.msra.mxu0 0.0
    %1486 = vmatprep.subr.mxu0 0.0
    %1487 = vmatpush1.xpose.msra.mxu0 0.0
    %1488 = vmatprep.subr.mxu0 0.0
    %1489 = vmatpush1.xpose.msra.mxu0 0.0
    %1490 = vmatprep.subr.mxu0 0.0
    %1491 = vmatpush1.xpose.msra.mxu0 0.0
    %1492 = vmatprep.subr.mxu0 0.0
    %1493 = vmatpush1.xpose.msra.mxu0 0.0
    %1494 = vmatprep.subr.mxu0 0.0
    %1495 = vmatpush1.xpose.msra.mxu0 0.0
    %1496 = vmatprep.subr.mxu0 0.0
    %1497 = vmatpush1.xpose.msra.mxu0 0.0
    %1498 = vmatprep.subr.mxu0 0.0
    %1499 = vmatpush1.xpose.msra.mxu0 0.0
    %1500 = vmatprep.subr.mxu0 0.0
    %1501 = vmatpush1.xpose.msra.mxu0 0.0
    %1502 = vmatprep.subr.mxu0 0.0
    %1503 = vmatpush1.xpose.msra.mxu0 0.0
    %1504 = vmatprep.subr.mxu0 0.0
    %1505 = vmatpush1.xpose.msra.mxu0 0.0
    %1506 = vmatprep.subr.mxu0 0.0
    %1507 = vmatpush1.xpose.msra.mxu0 0.0
    %1508 = vmatprep.subr.mxu0 0.0
    %1509 = vmatpush1.xpose.msra.mxu0 0.0
    %1510 = vmatprep.subr.mxu0 0.0
    %1511 = vmatpush1.xpose.msra.mxu0 0.0
    %1512 = vmatprep.subr.mxu0 0.0
    %1513 = vmatpush1.xpose.msra.mxu0 0.0
    %1514 = vmatprep.subr.mxu0 0.0
    %1515 = vmatpush1.xpose.msra.mxu0 0.0
    %1516 = vmatprep.subr.mxu0 0.0
    %1517 = vmatpush1.xpose.msra.mxu0 0.0
    %1518 = vmatprep.subr.mxu0 0.0
    %1519 = vmatpush1.xpose.msra.mxu0 0.0
    %1520 = vmatprep.subr.mxu0 0.0
    %1521 = vmatpush1.xpose.msra.mxu0 0.0
    %1522 = vmatprep.subr.mxu0 0.0
    %1523 = vmatpush1.xpose.msra.mxu0 0.0
    %1524 = vmatprep.subr.mxu0 0.0
    %1525 = vmatpush1.xpose.msra.mxu0 0.0
    %1526 = vmatprep.subr.mxu0 0.0
    %1527 = vmatpush1.xpose.msra.mxu0 0.0
    %1528 = vmatprep.subr.mxu0 0.0
    %1529 = vmatpush1.xpose.msra.mxu0 0.0
    %1530 = vmatprep.subr.mxu0 0.0
    %1531 = vmatpush1.xpose.msra.mxu0 0.0
    %1532 = vmatprep.subr.mxu0 0.0
    %1533 = vmatpush1.xpose.msra.mxu0 0.0
    %1534 = vmatprep.subr.mxu0 0.0
    %1535 = vmatpush1.xpose.msra.mxu0 0.0
    %1536 = vmatprep.subr.mxu0 0.0
    %1537 = vmatpush1.xpose.msra.mxu0 0.0
    %1538 = vmatprep.subr.mxu0 0.0
    %1539 = vmatpush1.xpose.msra.mxu0 0.0
    %1540 = vmatprep.subr.mxu0 0.0
    %1541 = vmatpush1.xpose.msra.mxu0 0.0
    %1542 = vmatprep.subr.mxu0 0.0
    %1543 = vmatpush1.xpose.msra.mxu0 0.0
    %1544 = vmatprep.subr.mxu0 0.0
    %1545 = vmatpush1.xpose.msra.mxu0 0.0
    %1546 = vmatprep.mubr.f32.mxu0 0.0
    %1547 = vmatmul.mubr.f32.gmra.mrb[0].mxu0 %v1478
    %v1548 = vpop.f32.mrb[0].mxu0
    %v1549 = vadd.f32 0.0, %v1548
    %v1550 = vpop.f32.mrb[0].mxu0
    %1551 = vdwg.mxu0
    %v1552 = vmul.f32 %v1471, 0.35355338
    %v1553 = vmul.f32 %v1549, 0.35355338
    %v1554 = vsel %vm159, %v1552, -inf
    %1555 = vmax.xlane.f32.xlu0 %v1554
    %v1556 = vpop.xlane.xlu0 %1555
    %v1557 = vsel %vm159, %v1553, -inf
    %1558 = vmax.xlane.f32.xlu0 %v1557
    %v1559 = vpop.xlane.xlu0 %1558
    %v1560 = vsub.f32 %v1552, %v1556
    %v1561 = vsub.f32 %v1553, %v1559
    %v1562 = vmul.f32 %v1560, 1.442695
    %v1563 = vpow.pop %v1562
    %v1564 = vmul.f32 %v1561, 1.442695
    %v1565 = vpow.pop %v1564
    %v1566 = vsel %vm159, %v1563, 0.0
    %1567 = vadd.xlane.f32.xlu0 %v1566
    %v1568 = vpop.xlane.xlu0 %1567
    %v1569 = vsel %vm159, %v1565, 0.0
    %1570 = vadd.xlane.f32.xlu0 %v1569
    %v1571 = vpop.xlane.xlu0 %1570
    %v1572 = vrcp.pop %v1568
    %v1573 = vrcp.pop %v1571
    %v1574 = vmul.f32 %v1563, %v1572
    %v1575 = vmul.f32 %v1565, %v1573
    %1576 = vrot.lane.b32.xlu0 %v148, 40
    %v1577 = vpop.permute.xlu0 %1576
    %v1580 = vsel %vm159, %v1574, 0
    %1582 = vmatprep.subr.mxu0 0.0
    %1583 = vmatpush1.msra.mxu0 %v1577
    %1584 = vmatprep.subr.mxu0 0.0
    %1585 = vmatpush1.msra.mxu0 0.0
    %1586 = vmatprep.subr.mxu0 0.0
    %1587 = vmatpush1.msra.mxu0 0.0
    %1588 = vmatprep.subr.mxu0 0.0
    %1589 = vmatpush1.msra.mxu0 0.0
    %1590 = vmatprep.subr.mxu0 0.0
    %1591 = vmatpush1.msra.mxu0 0.0
    %1592 = vmatprep.subr.mxu0 0.0
    %1593 = vmatpush1.msra.mxu0 0.0
    %1594 = vmatprep.subr.mxu0 0.0
    %1595 = vmatpush1.msra.mxu0 0.0
    %1596 = vmatprep.subr.mxu0 0.0
    %1597 = vmatpush1.msra.mxu0 0.0
    %1598 = vmatprep.subr.mxu0 0.0
    %1599 = vmatpush1.msra.mxu0 0.0
    %1600 = vmatprep.subr.mxu0 0.0
    %1601 = vmatpush1.msra.mxu0 0.0
    %1602 = vmatprep.subr.mxu0 0.0
    %1603 = vmatpush1.msra.mxu0 0.0
    %1604 = vmatprep.subr.mxu0 0.0
    %1605 = vmatpush1.msra.mxu0 0.0
    %1606 = vmatprep.subr.mxu0 0.0
    %1607 = vmatpush1.msra.mxu0 0.0
    %1608 = vmatprep.subr.mxu0 0.0
    %1609 = vmatpush1.msra.mxu0 0.0
    %1610 = vmatprep.subr.mxu0 0.0
    %1611 = vmatpush1.msra.mxu0 0.0
    %1612 = vmatprep.subr.mxu0 0.0
    %1613 = vmatpush1.msra.mxu0 0.0
    %1614 = vmatprep.subr.mxu0 0.0
    %1615 = vmatpush1.msra.mxu0 0.0
    %1616 = vmatprep.subr.mxu0 0.0
    %1617 = vmatpush1.msra.mxu0 0.0
    %1618 = vmatprep.subr.mxu0 0.0
    %1619 = vmatpush1.msra.mxu0 0.0
    %1620 = vmatprep.subr.mxu0 0.0
    %1621 = vmatpush1.msra.mxu0 0.0
    %1622 = vmatprep.subr.mxu0 0.0
    %1623 = vmatpush1.msra.mxu0 0.0
    %1624 = vmatprep.subr.mxu0 0.0
    %1625 = vmatpush1.msra.mxu0 0.0
    %1626 = vmatprep.subr.mxu0 0.0
    %1627 = vmatpush1.msra.mxu0 0.0
    %1628 = vmatprep.subr.mxu0 0.0
    %1629 = vmatpush1.msra.mxu0 0.0
    %1630 = vmatprep.subr.mxu0 0.0
    %1631 = vmatpush1.msra.mxu0 0.0
    %1632 = vmatprep.subr.mxu0 0.0
    %1633 = vmatpush1.msra.mxu0 0.0
    %1634 = vmatprep.subr.mxu0 0.0
    %1635 = vmatpush1.msra.mxu0 0.0
    %1636 = vmatprep.subr.mxu0 0.0
    %1637 = vmatpush1.msra.mxu0 0.0
    %1638 = vmatprep.subr.mxu0 0.0
    %1639 = vmatpush1.msra.mxu0 0.0
    %1640 = vmatprep.subr.mxu0 0.0
    %1641 = vmatpush1.msra.mxu0 0.0
    %1642 = vmatprep.subr.mxu0 0.0
    %1643 = vmatpush1.msra.mxu0 0.0
    %1644 = vmatprep.subr.mxu0 0.0
    %1645 = vmatpush1.msra.mxu0 0.0
    %1646 = vmatprep.mubr.f32.mxu0 0.0
    %1647 = vmatmul.mubr.f32.gmra.mrb[0].mxu0 %v1580
    %v1648 = vpop.f32.mrb[0].mxu0
    %v1649 = vadd.f32 0.0, %v1648
    %v1650 = vpop.f32.mrb[0].mxu0
    %1651 = vdwg.mxu0
    %1652 = vrot.lane.b32.xlu0 %v153, 40
    %v1653 = vpop.permute.xlu0 %1652
    %v1656 = vsel %vm159, %v1575, 0
    %1658 = vmatprep.subr.mxu0 0.0
    %1659 = vmatpush1.msra.mxu0 %v1653
    %1660 = vmatprep.subr.mxu0 0.0
    %1661 = vmatpush1.msra.mxu0 0.0
    %1662 = vmatprep.subr.mxu0 0.0
    %1663 = vmatpush1.msra.mxu0 0.0
    %1664 = vmatprep.subr.mxu0 0.0
    %1665 = vmatpush1.msra.mxu0 0.0
    %1666 = vmatprep.subr.mxu0 0.0
    %1667 = vmatpush1.msra.mxu0 0.0
    %1668 = vmatprep.subr.mxu0 0.0
    %1669 = vmatpush1.msra.mxu0 0.0
    %1670 = vmatprep.subr.mxu0 0.0
    %1671 = vmatpush1.msra.mxu0 0.0
    %1672 = vmatprep.subr.mxu0 0.0
    %1673 = vmatpush1.msra.mxu0 0.0
    %1674 = vmatprep.subr.mxu0 0.0
    %1675 = vmatpush1.msra.mxu0 0.0
    %1676 = vmatprep.subr.mxu0 0.0
    %1677 = vmatpush1.msra.mxu0 0.0
    %1678 = vmatprep.subr.mxu0 0.0
    %1679 = vmatpush1.msra.mxu0 0.0
    %1680 = vmatprep.subr.mxu0 0.0
    %1681 = vmatpush1.msra.mxu0 0.0
    %1682 = vmatprep.subr.mxu0 0.0
    %1683 = vmatpush1.msra.mxu0 0.0
    %1684 = vmatprep.subr.mxu0 0.0
    %1685 = vmatpush1.msra.mxu0 0.0
    %1686 = vmatprep.subr.mxu0 0.0
    %1687 = vmatpush1.msra.mxu0 0.0
    %1688 = vmatprep.subr.mxu0 0.0
    %1689 = vmatpush1.msra.mxu0 0.0
    %1690 = vmatprep.subr.mxu0 0.0
    %1691 = vmatpush1.msra.mxu0 0.0
    %1692 = vmatprep.subr.mxu0 0.0
    %1693 = vmatpush1.msra.mxu0 0.0
    %1694 = vmatprep.subr.mxu0 0.0
    %1695 = vmatpush1.msra.mxu0 0.0
    %1696 = vmatprep.subr.mxu0 0.0
    %1697 = vmatpush1.msra.mxu0 0.0
    %1698 = vmatprep.subr.mxu0 0.0
    %1699 = vmatpush1.msra.mxu0 0.0
    %1700 = vmatprep.subr.mxu0 0.0
    %1701 = vmatpush1.msra.mxu0 0.0
    %1702 = vmatprep.subr.mxu0 0.0
    %1703 = vmatpush1.msra.mxu0 0.0
    %1704 = vmatprep.subr.mxu0 0.0
    %1705 = vmatpush1.msra.mxu0 0.0
    %1706 = vmatprep.subr.mxu0 0.0
    %1707 = vmatpush1.msra.mxu0 0.0
    %1708 = vmatprep.subr.mxu0 0.0
    %1709 = vmatpush1.msra.mxu0 0.0
    %1710 = vmatprep.subr.mxu0 0.0
    %1711 = vmatpush1.msra.mxu0 0.0
    %1712 = vmatprep.subr.mxu0 0.0
    %1713 = vmatpush1.msra.mxu0 0.0
    %1714 = vmatprep.subr.mxu0 0.0
    %1715 = vmatpush1.msra.mxu0 0.0
    %1716 = vmatprep.subr.mxu0 0.0
    %1717 = vmatpush1.msra.mxu0 0.0
    %1718 = vmatprep.subr.mxu0 0.0
    %1719 = vmatpush1.msra.mxu0 0.0
    %1720 = vmatprep.subr.mxu0 0.0
    %1721 = vmatpush1.msra.mxu0 0.0
    %1722 = vmatprep.mubr.f32.mxu0 0.0
    %1723 = vmatmul.mubr.f32.gmra.mrb[0].mxu0 %v1656
    %v1724 = vpop.f32.mrb[0].mxu0
    %v1725 = vadd.f32 0.0, %v1724
    %v1726 = vpop.f32.mrb[0].mxu0
    %1727 = vdwg.mxu0
    %v1729 = vsel %vm159, %v1649, 0
    %v1732 = vsel %vm159, %v1725, 0
    %1734 = vmatprep.subr.mxu0 0.0
    %1735 = vmatpush1.msra.mxu0 %v70
    %1736 = vmatprep.subr.mxu0 0.0
    %1737 = vmatpush1.msra.mxu0 0.0
    %1738 = vmatprep.subr.mxu0 0.0
    %1739 = vmatpush1.msra.mxu0 0.0
    %1740 = vmatprep.subr.mxu0 0.0
    %1741 = vmatpush1.msra.mxu0 0.0
    %1742 = vmatprep.subr.mxu0 0.0
    %1743 = vmatpush1.msra.mxu0 0.0
    %1744 = vmatprep.subr.mxu0 0.0
    %1745 = vmatpush1.msra.mxu0 0.0
    %1746 = vmatprep.subr.mxu0 0.0
    %1747 = vmatpush1.msra.mxu0 0.0
    %1748 = vmatprep.subr.mxu0 0.0
    %1749 = vmatpush1.msra.mxu0 0.0
    %1750 = vmatprep.subr.mxu0 0.0
    %1751 = vmatpush1.msra.mxu0 0.0
    %1752 = vmatprep.subr.mxu0 0.0
    %1753 = vmatpush1.msra.mxu0 0.0
    %1754 = vmatprep.subr.mxu0 0.0
    %1755 = vmatpush1.msra.mxu0 0.0
    %1756 = vmatprep.subr.mxu0 0.0
    %1757 = vmatpush1.msra.mxu0 0.0
    %1758 = vmatprep.subr.mxu0 0.0
    %1759 = vmatpush1.msra.mxu0 0.0
    %1760 = vmatprep.subr.mxu0 0.0
    %1761 = vmatpush1.msra.mxu0 0.0
    %1762 = vmatprep.subr.mxu0 0.0
    %1763 = vmatpush1.msra.mxu0 0.0
    %1764 = vmatprep.subr.mxu0 0.0
    %1765 = vmatpush1.msra.mxu0 0.0
    %1766 = vmatprep.subr.mxu0 0.0
    %1767 = vmatpush1.msra.mxu0 0.0
    %1768 = vmatprep.subr.mxu0 0.0
    %1769 = vmatpush1.msra.mxu0 0.0
    %1770 = vmatprep.subr.mxu0 0.0
    %1771 = vmatpush1.msra.mxu0 0.0
    %1772 = vmatprep.subr.mxu0 0.0
    %1773 = vmatpush1.msra.mxu0 0.0
    %1774 = vmatprep.subr.mxu0 0.0
    %1775 = vmatpush1.msra.mxu0 0.0
    %1776 = vmatprep.subr.mxu0 0.0
    %1777 = vmatpush1.msra.mxu0 0.0
    %1778 = vmatprep.subr.mxu0 0.0
    %1779 = vmatpush1.msra.mxu0 0.0
    %1780 = vmatprep.subr.mxu0 0.0
    %1781 = vmatpush1.msra.mxu0 0.0
    %1782 = vmatprep.subr.mxu0 0.0
    %1783 = vmatpush1.msra.mxu0 0.0
    %1784 = vmatprep.subr.mxu0 0.0
    %1785 = vmatpush1.msra.mxu0 0.0
    %1786 = vmatprep.subr.mxu0 0.0
    %1787 = vmatpush1.msra.mxu0 0.0
    %1788 = vmatprep.subr.mxu0 0.0
    %1789 = vmatpush1.msra.mxu0 0.0
    %1790 = vmatprep.subr.mxu0 0.0
    %1791 = vmatpush1.msra.mxu0 0.0
    %1792 = vmatprep.subr.mxu0 0.0
    %1793 = vmatpush1.msra.mxu0 0.0
    %1794 = vmatprep.subr.mxu0 0.0
    %1795 = vmatpush1.msra.mxu0 0.0
    %1796 = vmatprep.subr.mxu0 0.0
    %1797 = vmatpush1.msra.mxu0 0.0
    %1798 = vmatprep.mubr.f32.mxu0 0.0
    %1799 = vmatmul.mubr.f32.gmra.mrb[0].mxu0 %v1729
    %v1800 = vpop.f32.mrb[0].mxu0
    %v1801 = vadd.f32 0.0, %v1800
    %v1802 = vpop.f32.mrb[0].mxu0
    %1803 = vmatprep.mubr.f32.mxu0 0.0
    %1804 = vmatmul.mubr.f32.gmra.mrb[0].mxu0 %v1732
    %v1805 = vpop.f32.mrb[0].mxu0
    %v1806 = vadd.f32 0.0, %v1805
    %v1807 = vpop.f32.mrb[0].mxu0
    %1808 = vdwg.mxu0
    %v1809 = vadd.f32 %v1394, %v1801
    %v1810 = vadd.f32 %v1395, %v1806
    %v1812 = vlaneseq
    %v1813 = vshrl.u32 %v1812, 7
    %v1814 = vsub.s32 0, %v1813
    %v1815 = vrot.slane %v71, %v1814
    %v1817 = vadd.f32 %v1809, %v1815
    %v1818 = vadd.f32 %v1810, %v1815
    %v1819 = vadd.f32 %v61, %v1817
    %v1820 = vadd.f32 %v62, %v1818
    %v1821 = vsel %vm74, %v1819, 0.0
    %1822 = vadd.xlane.f32.xlu0 %v1821
    %v1823 = vpop.xlane.xlu0 %1822
    %v1824 = vsel %vm74, %v1820, 0.0
    %1825 = vadd.xlane.f32.xlu0 %v1824
    %v1826 = vpop.xlane.xlu0 %1825
    %v1827 = vrcp.pop 32.0
    %v1828 = vmul.f32 %v1823, %v1827
    %v1829 = vmul.f32 %v1826, %v1827
    %v1830 = vsub.f32 %v1819, %v1828
    %v1831 = vsub.f32 %v1820, %v1829
    %v1832 = vmul.f32 %v1830, %v1830
    %v1833 = vmul.f32 %v1831, %v1831
    %v1834 = vsel %vm74, %v1832, 0.0
    %1835 = vadd.xlane.f32.xlu0 %v1834
    %v1836 = vpop.xlane.xlu0 %1835
    %v1837 = vsel %vm74, %v1833, 0.0
    %1838 = vadd.xlane.f32.xlu0 %v1837
    %v1839 = vpop.xlane.xlu0 %1838
    %v1840 = vmul.f32 %v1836, %v1827
    %v1841 = vmul.f32 %v1839, %v1827
    %v1842 = vadd.f32 %v1840, 1e-05
    %v1843 = vadd.f32 %v1841, 1e-05
    %v1844 = vrsqrt.pop %v1842
    %v1845 = vrsqrt.pop %v1843
    %v1846 = vmul.f32 %v1830, %v1844
    %v1847 = vmul.f32 %v1831, %v1845
    %v1849 = vlaneseq
    %v1850 = vshrl.u32 %v1849, 7
    %v1851 = vsub.s32 0, %v1850
    %v1852 = vrot.slane %v72, %v1851
    %v1854 = vmul.f32 %v1846, %v1852
    %v1855 = vmul.f32 %v1847, %v1852
    %v1857 = vlaneseq
    %v1858 = vshrl.u32 %v1857, 7
    %v1859 = vsub.s32 0, %v1858
    %v1860 = vrot.slane %v73, %v1859
    %v1862 = vadd.f32 %v1854, %v1860
    %v1863 = vadd.f32 %v1855, %v1860
    %s1864 = scalar_lea.vmem [#allocation2], 32
    %v1865 = vld [vmem:[%s1864] sm:$0xff]
    %v1866 = vld [vmem:[%s1864 + $0x8] sm:$0xff]
    %v1867 = vld [vmem:[%s1864 + $0x10] sm:$0xff]
    %v1868 = vld [vmem:[%s1864 + $0x18] sm:$0xff]
    %s1869 = scalar_lea.vmem [#allocation5], 32
    %v1870 = vld [vmem:[%s1869] sm:$0xff]
    %v1871 = vld [vmem:[%s1869 + $0x8] sm:$0xff]
    %v1872 = vld [vmem:[%s1869 + $0x10] sm:$0xff]
    %v1873 = vld [vmem:[%s1869 + $0x18] sm:$0xff]
    %s1874 = scalar_lea.vmem %s3, 1
    %v1875 = vld [vmem:[%s1874] sm:$0x1]
    %s1876 = scalar_lea.vmem %s4, 1
    %v1877 = vld [vmem:[%s1876] sm:$0x1]
    %s1878 = scalar_lea.vmem %s5, 1
    %v1879 = vld [vmem:[%s1878] sm:$0x1]
    %v1881 = vsel %vm74, %v1862, 0
    %v1884 = vsel %vm74, %v1863, 0
    %1886 = vmatprep.subr.mxu0 0.0
    %1887 = vmatpush1.msra.mxu0 %v1865
    %1888 = vmatprep.subr.mxu0 0.0
    %1889 = vmatpush1.msra.mxu0 %v1866
    %1890 = vmatprep.subr.mxu0 0.0
    %1891 = vmatpush1.msra.mxu0 %v1867
    %1892 = vmatprep.subr.mxu0 0.0
    %1893 = vmatpush1.msra.mxu0 %v1868
    %1894 = vmatprep.subr.mxu0 0.0
    %1895 = vmatpush1.msra.mxu0 0.0
    %1896 = vmatprep.subr.mxu0 0.0
    %1897 = vmatpush1.msra.mxu0 0.0
    %1898 = vmatprep.subr.mxu0 0.0
    %1899 = vmatpush1.msra.mxu0 0.0
    %1900 = vmatprep.subr.mxu0 0.0
    %1901 = vmatpush1.msra.mxu0 0.0
    %1902 = vmatprep.subr.mxu0 0.0
    %1903 = vmatpush1.msra.mxu0 0.0
    %1904 = vmatprep.subr.mxu0 0.0
    %1905 = vmatpush1.msra.mxu0 0.0
    %1906 = vmatprep.subr.mxu0 0.0
    %1907 = vmatpush1.msra.mxu0 0.0
    %1908 = vmatprep.subr.mxu0 0.0
    %1909 = vmatpush1.msra.mxu0 0.0
    %1910 = vmatprep.subr.mxu0 0.0
    %1911 = vmatpush1.msra.mxu0 0.0
    %1912 = vmatprep.subr.mxu0 0.0
    %1913 = vmatpush1.msra.mxu0 0.0
    %1914 = vmatprep.subr.mxu0 0.0
    %1915 = vmatpush1.msra.mxu0 0.0
    %1916 = vmatprep.subr.mxu0 0.0
    %1917 = vmatpush1.msra.mxu0 0.0
    %1918 = vmatprep.subr.mxu0 0.0
    %1919 = vmatpush1.msra.mxu0 0.0
    %1920 = vmatprep.subr.mxu0 0.0
    %1921 = vmatpush1.msra.mxu0 0.0
    %1922 = vmatprep.subr.mxu0 0.0
    %1923 = vmatpush1.msra.mxu0 0.0
    %1924 = vmatprep.subr.mxu0 0.0
    %1925 = vmatpush1.msra.mxu0 0.0
    %1926 = vmatprep.subr.mxu0 0.0
    %1927 = vmatpush1.msra.mxu0 0.0
    %1928 = vmatprep.subr.mxu0 0.0
    %1929 = vmatpush1.msra.mxu0 0.0
    %1930 = vmatprep.subr.mxu0 0.0
    %1931 = vmatpush1.msra.mxu0 0.0
    %1932 = vmatprep.subr.mxu0 0.0
    %1933 = vmatpush1.msra.mxu0 0.0
    %1934 = vmatprep.subr.mxu0 0.0
    %1935 = vmatpush1.msra.mxu0 0.0
    %1936 = vmatprep.subr.mxu0 0.0
    %1937 = vmatpush1.msra.mxu0 0.0
    %1938 = vmatprep.subr.mxu0 0.0
    %1939 = vmatpush1.msra.mxu0 0.0
    %1940 = vmatprep.subr.mxu0 0.0
    %1941 = vmatpush1.msra.mxu0 0.0
    %1942 = vmatprep.subr.mxu0 0.0
    %1943 = vmatpush1.msra.mxu0 0.0
    %1944 = vmatprep.subr.mxu0 0.0
    %1945 = vmatpush1.msra.mxu0 0.0
    %1946 = vmatprep.subr.mxu0 0.0
    %1947 = vmatpush1.msra.mxu0 0.0
    %1948 = vmatprep.subr.mxu0 0.0
    %1949 = vmatpush1.msra.mxu0 0.0
    %1950 = vmatprep.mubr.f32.mxu0 0.0
    %1951 = vmatmul.mubr.f32.gmra.mrb[0].mxu0 %v1881
    %v1952 = vpop.f32.mrb[0].mxu0
    %v1953 = vadd.f32 0.0, %v1952
    %v1954 = vpop.f32.mrb[0].mxu0
    %1955 = vmatprep.mubr.f32.mxu0 0.0
    %1956 = vmatmul.mubr.f32.gmra.mrb[0].mxu0 %v1884
    %v1957 = vpop.f32.mrb[0].mxu0
    %v1958 = vadd.f32 0.0, %v1957
    %v1959 = vpop.f32.mrb[0].mxu0
    %1960 = vdwg.mxu0
    %1962 = vrot.lane.b32.xlu0 %v1953, 96
    %v1963 = vpop.permute.xlu0 %1962
    %v1964 = vsel %vm159, %v1953, 0
    %v1966 = vsel %vm159, %v1963, 0
    %1968 = vmatprep.subr.mxu0 0.0
    %1969 = vmatpush1.xpose.msra.mxu0 %v1966
    %1970 = vmatprep.subr.mxu0 0.0
    %1971 = vmatpush1.xpose.msra.mxu0 0.0
    %1972 = vmatprep.subr.mxu0 0.0
    %1973 = vmatpush1.xpose.msra.mxu0 0.0
    %1974 = vmatprep.subr.mxu0 0.0
    %1975 = vmatpush1.xpose.msra.mxu0 0.0
    %1976 = vmatprep.subr.mxu0 0.0
    %1977 = vmatpush1.xpose.msra.mxu0 0.0
    %1978 = vmatprep.subr.mxu0 0.0
    %1979 = vmatpush1.xpose.msra.mxu0 0.0
    %1980 = vmatprep.subr.mxu0 0.0
    %1981 = vmatpush1.xpose.msra.mxu0 0.0
    %1982 = vmatprep.subr.mxu0 0.0
    %1983 = vmatpush1.xpose.msra.mxu0 0.0
    %1984 = vmatprep.subr.mxu0 0.0
    %1985 = vmatpush1.xpose.msra.mxu0 0.0
    %1986 = vmatprep.subr.mxu0 0.0
    %1987 = vmatpush1.xpose.msra.mxu0 0.0
    %1988 = vmatprep.subr.mxu0 0.0
    %1989 = vmatpush1.xpose.msra.mxu0 0.0
    %1990 = vmatprep.subr.mxu0 0.0
    %1991 = vmatpush1.xpose.msra.mxu0 0.0
    %1992 = vmatprep.subr.mxu0 0.0
    %1993 = vmatpush1.xpose.msra.mxu0 0.0
    %1994 = vmatprep.subr.mxu0 0.0
    %1995 = vmatpush1.xpose.msra.mxu0 0.0
    %1996 = vmatprep.subr.mxu0 0.0
    %1997 = vmatpush1.xpose.msra.mxu0 0.0
    %1998 = vmatprep.subr.mxu0 0.0
    %1999 = vmatpush1.xpose.msra.mxu0 0.0
    %2000 = vmatprep.subr.mxu0 0.0
    %2001 = vmatpush1.xpose.msra.mxu0 0.0
    %2002 = vmatprep.subr.mxu0 0.0
    %2003 = vmatpush1.xpose.msra.mxu0 0.0
    %2004 = vmatprep.subr.mxu0 0.0
    %2005 = vmatpush1.xpose.msra.mxu0 0.0
    %2006 = vmatprep.subr.mxu0 0.0
    %2007 = vmatpush1.xpose.msra.mxu0 0.0
    %2008 = vmatprep.subr.mxu0 0.0
    %2009 = vmatpush1.xpose.msra.mxu0 0.0
    %2010 = vmatprep.subr.mxu0 0.0
    %2011 = vmatpush1.xpose.msra.mxu0 0.0
    %2012 = vmatprep.subr.mxu0 0.0
    %2013 = vmatpush1.xpose.msra.mxu0 0.0
    %2014 = vmatprep.subr.mxu0 0.0
    %2015 = vmatpush1.xpose.msra.mxu0 0.0
    %2016 = vmatprep.subr.mxu0 0.0
    %2017 = vmatpush1.xpose.msra.mxu0 0.0
    %2018 = vmatprep.subr.mxu0 0.0
    %2019 = vmatpush1.xpose.msra.mxu0 0.0
    %2020 = vmatprep.subr.mxu0 0.0
    %2021 = vmatpush1.xpose.msra.mxu0 0.0
    %2022 = vmatprep.subr.mxu0 0.0
    %2023 = vmatpush1.xpose.msra.mxu0 0.0
    %2024 = vmatprep.subr.mxu0 0.0
    %2025 = vmatpush1.xpose.msra.mxu0 0.0
    %2026 = vmatprep.subr.mxu0 0.0
    %2027 = vmatpush1.xpose.msra.mxu0 0.0
    %2028 = vmatprep.subr.mxu0 0.0
    %2029 = vmatpush1.xpose.msra.mxu0 0.0
    %2030 = vmatprep.subr.mxu0 0.0
    %2031 = vmatpush1.xpose.msra.mxu0 0.0
    %2032 = vmatprep.mubr.f32.mxu0 0.0
    %2033 = vmatmul.mubr.f32.gmra.mrb[0].mxu0 %v1964
    %v2034 = vpop.f32.mrb[0].mxu0
    %v2035 = vadd.f32 0.0, %v2034
    %v2036 = vpop.f32.mrb[0].mxu0
    %2037 = vdwg.mxu0
    %2039 = vrot.lane.b32.xlu0 %v1958, 96
    %v2040 = vpop.permute.xlu0 %2039
    %v2041 = vsel %vm159, %v1958, 0
    %v2043 = vsel %vm159, %v2040, 0
    %2045 = vmatprep.subr.mxu0 0.0
    %2046 = vmatpush1.xpose.msra.mxu0 %v2043
    %2047 = vmatprep.subr.mxu0 0.0
    %2048 = vmatpush1.xpose.msra.mxu0 0.0
    %2049 = vmatprep.subr.mxu0 0.0
    %2050 = vmatpush1.xpose.msra.mxu0 0.0
    %2051 = vmatprep.subr.mxu0 0.0
    %2052 = vmatpush1.xpose.msra.mxu0 0.0
    %2053 = vmatprep.subr.mxu0 0.0
    %2054 = vmatpush1.xpose.msra.mxu0 0.0
    %2055 = vmatprep.subr.mxu0 0.0
    %2056 = vmatpush1.xpose.msra.mxu0 0.0
    %2057 = vmatprep.subr.mxu0 0.0
    %2058 = vmatpush1.xpose.msra.mxu0 0.0
    %2059 = vmatprep.subr.mxu0 0.0
    %2060 = vmatpush1.xpose.msra.mxu0 0.0
    %2061 = vmatprep.subr.mxu0 0.0
    %2062 = vmatpush1.xpose.msra.mxu0 0.0
    %2063 = vmatprep.subr.mxu0 0.0
    %2064 = vmatpush1.xpose.msra.mxu0 0.0
    %2065 = vmatprep.subr.mxu0 0.0
    %2066 = vmatpush1.xpose.msra.mxu0 0.0
    %2067 = vmatprep.subr.mxu0 0.0
    %2068 = vmatpush1.xpose.msra.mxu0 0.0
    %2069 = vmatprep.subr.mxu0 0.0
    %2070 = vmatpush1.xpose.msra.mxu0 0.0
    %2071 = vmatprep.subr.mxu0 0.0
    %2072 = vmatpush1.xpose.msra.mxu0 0.0
    %2073 = vmatprep.subr.mxu0 0.0
    %2074 = vmatpush1.xpose.msra.mxu0 0.0
    %2075 = vmatprep.subr.mxu0 0.0
    %2076 = vmatpush1.xpose.msra.mxu0 0.0
    %2077 = vmatprep.subr.mxu0 0.0
    %2078 = vmatpush1.xpose.msra.mxu0 0.0
    %2079 = vmatprep.subr.mxu0 0.0
    %2080 = vmatpush1.xpose.msra.mxu0 0.0
    %2081 = vmatprep.subr.mxu0 0.0
    %2082 = vmatpush1.xpose.msra.mxu0 0.0
    %2083 = vmatprep.subr.mxu0 0.0
    %2084 = vmatpush1.xpose.msra.mxu0 0.0
    %2085 = vmatprep.subr.mxu0 0.0
    %2086 = vmatpush1.xpose.msra.mxu0 0.0
    %2087 = vmatprep.subr.mxu0 0.0
    %2088 = vmatpush1.xpose.msra.mxu0 0.0
    %2089 = vmatprep.subr.mxu0 0.0
    %2090 = vmatpush1.xpose.msra.mxu0 0.0
    %2091 = vmatprep.subr.mxu0 0.0
    %2092 = vmatpush1.xpose.msra.mxu0 0.0
    %2093 = vmatprep.subr.mxu0 0.0
    %2094 = vmatpush1.xpose.msra.mxu0 0.0
    %2095 = vmatprep.subr.mxu0 0.0
    %2096 = vmatpush1.xpose.msra.mxu0 0.0
    %2097 = vmatprep.subr.mxu0 0.0
    %2098 = vmatpush1.xpose.msra.mxu0 0.0
    %2099 = vmatprep.subr.mxu0 0.0
    %2100 = vmatpush1.xpose.msra.mxu0 0.0
    %2101 = vmatprep.subr.mxu0 0.0
    %2102 = vmatpush1.xpose.msra.mxu0 0.0
    %2103 = vmatprep.subr.mxu0 0.0
    %2104 = vmatpush1.xpose.msra.mxu0 0.0
    %2105 = vmatprep.subr.mxu0 0.0
    %2106 = vmatpush1.xpose.msra.mxu0 0.0
    %2107 = vmatprep.subr.mxu0 0.0
    %2108 = vmatpush1.xpose.msra.mxu0 0.0
    %2109 = vmatprep.mubr.f32.mxu0 0.0
    %2110 = vmatmul.mubr.f32.gmra.mrb[0].mxu0 %v2041
    %v2111 = vpop.f32.mrb[0].mxu0
    %v2112 = vadd.f32 0.0, %v2111
    %v2113 = vpop.f32.mrb[0].mxu0
    %2114 = vdwg.mxu0
    %v2115 = vmul.f32 %v2035, 0.35355338
    %v2116 = vmul.f32 %v2112, 0.35355338
    %v2117 = vsel %vm159, %v2115, -inf
    %2118 = vmax.xlane.f32.xlu0 %v2117
    %v2119 = vpop.xlane.xlu0 %2118
    %v2120 = vsel %vm159, %v2116, -inf
    %2121 = vmax.xlane.f32.xlu0 %v2120
    %v2122 = vpop.xlane.xlu0 %2121
    %v2123 = vsub.f32 %v2115, %v2119
    %v2124 = vsub.f32 %v2116, %v2122
    %v2125 = vmul.f32 %v2123, 1.442695
    %v2126 = vpow.pop %v2125
    %v2127 = vmul.f32 %v2124, 1.442695
    %v2128 = vpow.pop %v2127
    %v2129 = vsel %vm159, %v2126, 0.0
    %2130 = vadd.xlane.f32.xlu0 %v2129
    %v2131 = vpop.xlane.xlu0 %2130
    %v2132 = vsel %vm159, %v2128, 0.0
    %2133 = vadd.xlane.f32.xlu0 %v2132
    %v2134 = vpop.xlane.xlu0 %2133
    %v2135 = vrcp.pop %v2131
    %v2136 = vrcp.pop %v2134
    %v2137 = vmul.f32 %v2126, %v2135
    %v2138 = vmul.f32 %v2128, %v2136
    %2139 = vrot.lane.b32.xlu0 %v1953, 64
    %v2140 = vpop.permute.xlu0 %2139
    %v2143 = vsel %vm159, %v2137, 0
    %2145 = vmatprep.subr.mxu0 0.0
    %2146 = vmatpush1.msra.mxu0 %v2140
    %2147 = vmatprep.subr.mxu0 0.0
    %2148 = vmatpush1.msra.mxu0 0.0
    %2149 = vmatprep.subr.mxu0 0.0
    %2150 = vmatpush1.msra.mxu0 0.0
    %2151 = vmatprep.subr.mxu0 0.0
    %2152 = vmatpush1.msra.mxu0 0.0
    %2153 = vmatprep.subr.mxu0 0.0
    %2154 = vmatpush1.msra.mxu0 0.0
    %2155 = vmatprep.subr.mxu0 0.0
    %2156 = vmatpush1.msra.mxu0 0.0
    %2157 = vmatprep.subr.mxu0 0.0
    %2158 = vmatpush1.msra.mxu0 0.0
    %2159 = vmatprep.subr.mxu0 0.0
    %2160 = vmatpush1.msra.mxu0 0.0
    %2161 = vmatprep.subr.mxu0 0.0
    %2162 = vmatpush1.msra.mxu0 0.0
    %2163 = vmatprep.subr.mxu0 0.0
    %2164 = vmatpush1.msra.mxu0 0.0
    %2165 = vmatprep.subr.mxu0 0.0
    %2166 = vmatpush1.msra.mxu0 0.0
    %2167 = vmatprep.subr.mxu0 0.0
    %2168 = vmatpush1.msra.mxu0 0.0
    %2169 = vmatprep.subr.mxu0 0.0
    %2170 = vmatpush1.msra.mxu0 0.0
    %2171 = vmatprep.subr.mxu0 0.0
    %2172 = vmatpush1.msra.mxu0 0.0
    %2173 = vmatprep.subr.mxu0 0.0
    %2174 = vmatpush1.msra.mxu0 0.0
    %2175 = vmatprep.subr.mxu0 0.0
    %2176 = vmatpush1.msra.mxu0 0.0
    %2177 = vmatprep.subr.mxu0 0.0
    %2178 = vmatpush1.msra.mxu0 0.0
    %2179 = vmatprep.subr.mxu0 0.0
    %2180 = vmatpush1.msra.mxu0 0.0
    %2181 = vmatprep.subr.mxu0 0.0
    %2182 = vmatpush1.msra.mxu0 0.0
    %2183 = vmatprep.subr.mxu0 0.0
    %2184 = vmatpush1.msra.mxu0 0.0
    %2185 = vmatprep.subr.mxu0 0.0
    %2186 = vmatpush1.msra.mxu0 0.0
    %2187 = vmatprep.subr.mxu0 0.0
    %2188 = vmatpush1.msra.mxu0 0.0
    %2189 = vmatprep.subr.mxu0 0.0
    %2190 = vmatpush1.msra.mxu0 0.0
    %2191 = vmatprep.subr.mxu0 0.0
    %2192 = vmatpush1.msra.mxu0 0.0
    %2193 = vmatprep.subr.mxu0 0.0
    %2194 = vmatpush1.msra.mxu0 0.0
    %2195 = vmatprep.subr.mxu0 0.0
    %2196 = vmatpush1.msra.mxu0 0.0
    %2197 = vmatprep.subr.mxu0 0.0
    %2198 = vmatpush1.msra.mxu0 0.0
    %2199 = vmatprep.subr.mxu0 0.0
    %2200 = vmatpush1.msra.mxu0 0.0
    %2201 = vmatprep.subr.mxu0 0.0
    %2202 = vmatpush1.msra.mxu0 0.0
    %2203 = vmatprep.subr.mxu0 0.0
    %2204 = vmatpush1.msra.mxu0 0.0
    %2205 = vmatprep.subr.mxu0 0.0
    %2206 = vmatpush1.msra.mxu0 0.0
    %2207 = vmatprep.subr.mxu0 0.0
    %2208 = vmatpush1.msra.mxu0 0.0
    %2209 = vmatprep.mubr.f32.mxu0 0.0
    %2210 = vmatmul.mubr.f32.gmra.mrb[0].mxu0 %v2143
    %v2211 = vpop.f32.mrb[0].mxu0
    %v2212 = vadd.f32 0.0, %v2211
    %v2213 = vpop.f32.mrb[0].mxu0
    %2214 = vdwg.mxu0
    %2215 = vrot.lane.b32.xlu0 %v1958, 64
    %v2216 = vpop.permute.xlu0 %2215
    %v2219 = vsel %vm159, %v2138, 0
    %2221 = vmatprep.subr.mxu0 0.0
    %2222 = vmatpush1.msra.mxu0 %v2216
    %2223 = vmatprep.subr.mxu0 0.0
    %2224 = vmatpush1.msra.mxu0 0.0
    %2225 = vmatprep.subr.mxu0 0.0
    %2226 = vmatpush1.msra.mxu0 0.0
    %2227 = vmatprep.subr.mxu0 0.0
    %2228 = vmatpush1.msra.mxu0 0.0
    %2229 = vmatprep.subr.mxu0 0.0
    %2230 = vmatpush1.msra.mxu0 0.0
    %2231 = vmatprep.subr.mxu0 0.0
    %2232 = vmatpush1.msra.mxu0 0.0
    %2233 = vmatprep.subr.mxu0 0.0
    %2234 = vmatpush1.msra.mxu0 0.0
    %2235 = vmatprep.subr.mxu0 0.0
    %2236 = vmatpush1.msra.mxu0 0.0
    %2237 = vmatprep.subr.mxu0 0.0
    %2238 = vmatpush1.msra.mxu0 0.0
    %2239 = vmatprep.subr.mxu0 0.0
    %2240 = vmatpush1.msra.mxu0 0.0
    %2241 = vmatprep.subr.mxu0 0.0
    %2242 = vmatpush1.msra.mxu0 0.0
    %2243 = vmatprep.subr.mxu0 0.0
    %2244 = vmatpush1.msra.mxu0 0.0
    %2245 = vmatprep.subr.mxu0 0.0
    %2246 = vmatpush1.msra.mxu0 0.0
    %2247 = vmatprep.subr.mxu0 0.0
    %2248 = vmatpush1.msra.mxu0 0.0
    %2249 = vmatprep.subr.mxu0 0.0
    %2250 = vmatpush1.msra.mxu0 0.0
    %2251 = vmatprep.subr.mxu0 0.0
    %2252 = vmatpush1.msra.mxu0 0.0
    %2253 = vmatprep.subr.mxu0 0.0
    %2254 = vmatpush1.msra.mxu0 0.0
    %2255 = vmatprep.subr.mxu0 0.0
    %2256 = vmatpush1.msra.mxu0 0.0
    %2257 = vmatprep.subr.mxu0 0.0
    %2258 = vmatpush1.msra.mxu0 0.0
    %2259 = vmatprep.subr.mxu0 0.0
    %2260 = vmatpush1.msra.mxu0 0.0
    %2261 = vmatprep.subr.mxu0 0.0
    %2262 = vmatpush1.msra.mxu0 0.0
    %2263 = vmatprep.subr.mxu0 0.0
    %2264 = vmatpush1.msra.mxu0 0.0
    %2265 = vmatprep.subr.mxu0 0.0
    %2266 = vmatpush1.msra.mxu0 0.0
    %2267 = vmatprep.subr.mxu0 0.0
    %2268 = vmatpush1.msra.mxu0 0.0
    %2269 = vmatprep.subr.mxu0 0.0
    %2270 = vmatpush1.msra.mxu0 0.0
    %2271 = vmatprep.subr.mxu0 0.0
    %2272 = vmatpush1.msra.mxu0 0.0
    %2273 = vmatprep.subr.mxu0 0.0
    %2274 = vmatpush1.msra.mxu0 0.0
    %2275 = vmatprep.subr.mxu0 0.0
    %2276 = vmatpush1.msra.mxu0 0.0
    %2277 = vmatprep.subr.mxu0 0.0
    %2278 = vmatpush1.msra.mxu0 0.0
    %2279 = vmatprep.subr.mxu0 0.0
    %2280 = vmatpush1.msra.mxu0 0.0
    %2281 = vmatprep.subr.mxu0 0.0
    %2282 = vmatpush1.msra.mxu0 0.0
    %2283 = vmatprep.subr.mxu0 0.0
    %2284 = vmatpush1.msra.mxu0 0.0
    %2285 = vmatprep.mubr.f32.mxu0 0.0
    %2286 = vmatmul.mubr.f32.gmra.mrb[0].mxu0 %v2219
    %v2287 = vpop.f32.mrb[0].mxu0
    %v2288 = vadd.f32 0.0, %v2287
    %v2289 = vpop.f32.mrb[0].mxu0
    %2290 = vdwg.mxu0
    %2291 = vrot.lane.b32.xlu0 %v1953, 120
    %v2292 = vpop.permute.xlu0 %2291
    %2293 = vrot.lane.b32.xlu0 %v1953, 88
    %v2294 = vpop.permute.xlu0 %2293
    %v2295 = vsel %vm159, %v2292, 0
    %v2297 = vsel %vm159, %v2294, 0
    %2299 = vmatprep.subr.mxu0 0.0
    %2300 = vmatpush1.xpose.msra.mxu0 %v2297
    %2301 = vmatprep.subr.mxu0 0.0
    %2302 = vmatpush1.xpose.msra.mxu0 0.0
    %2303 = vmatprep.subr.mxu0 0.0
    %2304 = vmatpush1.xpose.msra.mxu0 0.0
    %2305 = vmatprep.subr.mxu0 0.0
    %2306 = vmatpush1.xpose.msra.mxu0 0.0
    %2307 = vmatprep.subr.mxu0 0.0
    %2308 = vmatpush1.xpose.msra.mxu0 0.0
    %2309 = vmatprep.subr.mxu0 0.0
    %2310 = vmatpush1.xpose.msra.mxu0 0.0
    %2311 = vmatprep.subr.mxu0 0.0
    %2312 = vmatpush1.xpose.msra.mxu0 0.0
    %2313 = vmatprep.subr.mxu0 0.0
    %2314 = vmatpush1.xpose.msra.mxu0 0.0
    %2315 = vmatprep.subr.mxu0 0.0
    %2316 = vmatpush1.xpose.msra.mxu0 0.0
    %2317 = vmatprep.subr.mxu0 0.0
    %2318 = vmatpush1.xpose.msra.mxu0 0.0
    %2319 = vmatprep.subr.mxu0 0.0
    %2320 = vmatpush1.xpose.msra.mxu0 0.0
    %2321 = vmatprep.subr.mxu0 0.0
    %2322 = vmatpush1.xpose.msra.mxu0 0.0
    %2323 = vmatprep.subr.mxu0 0.0
    %2324 = vmatpush1.xpose.msra.mxu0 0.0
    %2325 = vmatprep.subr.mxu0 0.0
    %2326 = vmatpush1.xpose.msra.mxu0 0.0
    %2327 = vmatprep.subr.mxu0 0.0
    %2328 = vmatpush1.xpose.msra.mxu0 0.0
    %2329 = vmatprep.subr.mxu0 0.0
    %2330 = vmatpush1.xpose.msra.mxu0 0.0
    %2331 = vmatprep.subr.mxu0 0.0
    %2332 = vmatpush1.xpose.msra.mxu0 0.0
    %2333 = vmatprep.subr.mxu0 0.0
    %2334 = vmatpush1.xpose.msra.mxu0 0.0
    %2335 = vmatprep.subr.mxu0 0.0
    %2336 = vmatpush1.xpose.msra.mxu0 0.0
    %2337 = vmatprep.subr.mxu0 0.0
    %2338 = vmatpush1.xpose.msra.mxu0 0.0
    %2339 = vmatprep.subr.mxu0 0.0
    %2340 = vmatpush1.xpose.msra.mxu0 0.0
    %2341 = vmatprep.subr.mxu0 0.0
    %2342 = vmatpush1.xpose.msra.mxu0 0.0
    %2343 = vmatprep.subr.mxu0 0.0
    %2344 = vmatpush1.xpose.msra.mxu0 0.0
    %2345 = vmatprep.subr.mxu0 0.0
    %2346 = vmatpush1.xpose.msra.mxu0 0.0
    %2347 = vmatprep.subr.mxu0 0.0
    %2348 = vmatpush1.xpose.msra.mxu0 0.0
    %2349 = vmatprep.subr.mxu0 0.0
    %2350 = vmatpush1.xpose.msra.mxu0 0.0
    %2351 = vmatprep.subr.mxu0 0.0
    %2352 = vmatpush1.xpose.msra.mxu0 0.0
    %2353 = vmatprep.subr.mxu0 0.0
    %2354 = vmatpush1.xpose.msra.mxu0 0.0
    %2355 = vmatprep.subr.mxu0 0.0
    %2356 = vmatpush1.xpose.msra.mxu0 0.0
    %2357 = vmatprep.subr.mxu0 0.0
    %2358 = vmatpush1.xpose.msra.mxu0 0.0
    %2359 = vmatprep.subr.mxu0 0.0
    %2360 = vmatpush1.xpose.msra.mxu0 0.0
    %2361 = vmatprep.subr.mxu0 0.0
    %2362 = vmatpush1.xpose.msra.mxu0 0.0
    %2363 = vmatprep.mubr.f32.mxu0 0.0
    %2364 = vmatmul.mubr.f32.gmra.mrb[0].mxu0 %v2295
    %v2365 = vpop.f32.mrb[0].mxu0
    %v2366 = vadd.f32 0.0, %v2365
    %v2367 = vpop.f32.mrb[0].mxu0
    %2368 = vdwg.mxu0
    %2369 = vrot.lane.b32.xlu0 %v1958, 120
    %v2370 = vpop.permute.xlu0 %2369
    %2371 = vrot.lane.b32.xlu0 %v1958, 88
    %v2372 = vpop.permute.xlu0 %2371
    %v2373 = vsel %vm159, %v2370, 0
    %v2375 = vsel %vm159, %v2372, 0
    %2377 = vmatprep.subr.mxu0 0.0
    %2378 = vmatpush1.xpose.msra.mxu0 %v2375
    %2379 = vmatprep.subr.mxu0 0.0
    %2380 = vmatpush1.xpose.msra.mxu0 0.0
    %2381 = vmatprep.subr.mxu0 0.0
    %2382 = vmatpush1.xpose.msra.mxu0 0.0
    %2383 = vmatprep.subr.mxu0 0.0
    %2384 = vmatpush1.xpose.msra.mxu0 0.0
    %2385 = vmatprep.subr.mxu0 0.0
    %2386 = vmatpush1.xpose.msra.mxu0 0.0
    %2387 = vmatprep.subr.mxu0 0.0
    %2388 = vmatpush1.xpose.msra.mxu0 0.0
    %2389 = vmatprep.subr.mxu0 0.0
    %2390 = vmatpush1.xpose.msra.mxu0 0.0
    %2391 = vmatprep.subr.mxu0 0.0
    %2392 = vmatpush1.xpose.msra.mxu0 0.0
    %2393 = vmatprep.subr.mxu0 0.0
    %2394 = vmatpush1.xpose.msra.mxu0 0.0
    %2395 = vmatprep.subr.mxu0 0.0
    %2396 = vmatpush1.xpose.msra.mxu0 0.0
    %2397 = vmatprep.subr.mxu0 0.0
    %2398 = vmatpush1.xpose.msra.mxu0 0.0
    %2399 = vmatprep.subr.mxu0 0.0
    %2400 = vmatpush1.xpose.msra.mxu0 0.0
    %2401 = vmatprep.subr.mxu0 0.0
    %2402 = vmatpush1.xpose.msra.mxu0 0.0
    %2403 = vmatprep.subr.mxu0 0.0
    %2404 = vmatpush1.xpose.msra.mxu0 0.0
    %2405 = vmatprep.subr.mxu0 0.0
    %2406 = vmatpush1.xpose.msra.mxu0 0.0
    %2407 = vmatprep.subr.mxu0 0.0
    %2408 = vmatpush1.xpose.msra.mxu0 0.0
    %2409 = vmatprep.subr.mxu0 0.0
    %2410 = vmatpush1.xpose.msra.mxu0 0.0
    %2411 = vmatprep.subr.mxu0 0.0
    %2412 = vmatpush1.xpose.msra.mxu0 0.0
    %2413 = vmatprep.subr.mxu0 0.0
    %2414 = vmatpush1.xpose.msra.mxu0 0.0
    %2415 = vmatprep.subr.mxu0 0.0
    %2416 = vmatpush1.xpose.msra.mxu0 0.0
    %2417 = vmatprep.subr.mxu0 0.0
    %2418 = vmatpush1.xpose.msra.mxu0 0.0
    %2419 = vmatprep.subr.mxu0 0.0
    %2420 = vmatpush1.xpose.msra.mxu0 0.0
    %2421 = vmatprep.subr.mxu0 0.0
    %2422 = vmatpush1.xpose.msra.mxu0 0.0
    %2423 = vmatprep.subr.mxu0 0.0
    %2424 = vmatpush1.xpose.msra.mxu0 0.0
    %2425 = vmatprep.subr.mxu0 0.0
    %2426 = vmatpush1.xpose.msra.mxu0 0.0
    %2427 = vmatprep.subr.mxu0 0.0
    %2428 = vmatpush1.xpose.msra.mxu0 0.0
    %2429 = vmatprep.subr.mxu0 0.0
    %2430 = vmatpush1.xpose.msra.mxu0 0.0
    %2431 = vmatprep.subr.mxu0 0.0
    %2432 = vmatpush1.xpose.msra.mxu0 0.0
    %2433 = vmatprep.subr.mxu0 0.0
    %2434 = vmatpush1.xpose.msra.mxu0 0.0
    %2435 = vmatprep.subr.mxu0 0.0
    %2436 = vmatpush1.xpose.msra.mxu0 0.0
    %2437 = vmatprep.subr.mxu0 0.0
    %2438 = vmatpush1.xpose.msra.mxu0 0.0
    %2439 = vmatprep.subr.mxu0 0.0
    %2440 = vmatpush1.xpose.msra.mxu0 0.0
    %2441 = vmatprep.mubr.f32.mxu0 0.0
    %2442 = vmatmul.mubr.f32.gmra.mrb[0].mxu0 %v2373
    %v2443 = vpop.f32.mrb[0].mxu0
    %v2444 = vadd.f32 0.0, %v2443
    %v2445 = vpop.f32.mrb[0].mxu0
    %2446 = vdwg.mxu0
    %v2447 = vmul.f32 %v2366, 0.35355338
    %v2448 = vmul.f32 %v2444, 0.35355338
    %v2449 = vsel %vm159, %v2447, -inf
    %2450 = vmax.xlane.f32.xlu0 %v2449
    %v2451 = vpop.xlane.xlu0 %2450
    %v2452 = vsel %vm159, %v2448, -inf
    %2453 = vmax.xlane.f32.xlu0 %v2452
    %v2454 = vpop.xlane.xlu0 %2453
    %v2455 = vsub.f32 %v2447, %v2451
    %v2456 = vsub.f32 %v2448, %v2454
    %v2457 = vmul.f32 %v2455, 1.442695
    %v2458 = vpow.pop %v2457
    %v2459 = vmul.f32 %v2456, 1.442695
    %v2460 = vpow.pop %v2459
    %v2461 = vsel %vm159, %v2458, 0.0
    %2462 = vadd.xlane.f32.xlu0 %v2461
    %v2463 = vpop.xlane.xlu0 %2462
    %v2464 = vsel %vm159, %v2460, 0.0
    %2465 = vadd.xlane.f32.xlu0 %v2464
    %v2466 = vpop.xlane.xlu0 %2465
    %v2467 = vrcp.pop %v2463
    %v2468 = vrcp.pop %v2466
    %v2469 = vmul.f32 %v2458, %v2467
    %v2470 = vmul.f32 %v2460, %v2468
    %2471 = vrot.lane.b32.xlu0 %v1953, 56
    %v2472 = vpop.permute.xlu0 %2471
    %v2475 = vsel %vm159, %v2469, 0
    %2477 = vmatprep.subr.mxu0 0.0
    %2478 = vmatpush1.msra.mxu0 %v2472
    %2479 = vmatprep.subr.mxu0 0.0
    %2480 = vmatpush1.msra.mxu0 0.0
    %2481 = vmatprep.subr.mxu0 0.0
    %2482 = vmatpush1.msra.mxu0 0.0
    %2483 = vmatprep.subr.mxu0 0.0
    %2484 = vmatpush1.msra.mxu0 0.0
    %2485 = vmatprep.subr.mxu0 0.0
    %2486 = vmatpush1.msra.mxu0 0.0
    %2487 = vmatprep.subr.mxu0 0.0
    %2488 = vmatpush1.msra.mxu0 0.0
    %2489 = vmatprep.subr.mxu0 0.0
    %2490 = vmatpush1.msra.mxu0 0.0
    %2491 = vmatprep.subr.mxu0 0.0
    %2492 = vmatpush1.msra.mxu0 0.0
    %2493 = vmatprep.subr.mxu0 0.0
    %2494 = vmatpush1.msra.mxu0 0.0
    %2495 = vmatprep.subr.mxu0 0.0
    %2496 = vmatpush1.msra.mxu0 0.0
    %2497 = vmatprep.subr.mxu0 0.0
    %2498 = vmatpush1.msra.mxu0 0.0
    %2499 = vmatprep.subr.mxu0 0.0
    %2500 = vmatpush1.msra.mxu0 0.0
    %2501 = vmatprep.subr.mxu0 0.0
    %2502 = vmatpush1.msra.mxu0 0.0
    %2503 = vmatprep.subr.mxu0 0.0
    %2504 = vmatpush1.msra.mxu0 0.0
    %2505 = vmatprep.subr.mxu0 0.0
    %2506 = vmatpush1.msra.mxu0 0.0
    %2507 = vmatprep.subr.mxu0 0.0
    %2508 = vmatpush1.msra.mxu0 0.0
    %2509 = vmatprep.subr.mxu0 0.0
    %2510 = vmatpush1.msra.mxu0 0.0
    %2511 = vmatprep.subr.mxu0 0.0
    %2512 = vmatpush1.msra.mxu0 0.0
    %2513 = vmatprep.subr.mxu0 0.0
    %2514 = vmatpush1.msra.mxu0 0.0
    %2515 = vmatprep.subr.mxu0 0.0
    %2516 = vmatpush1.msra.mxu0 0.0
    %2517 = vmatprep.subr.mxu0 0.0
    %2518 = vmatpush1.msra.mxu0 0.0
    %2519 = vmatprep.subr.mxu0 0.0
    %2520 = vmatpush1.msra.mxu0 0.0
    %2521 = vmatprep.subr.mxu0 0.0
    %2522 = vmatpush1.msra.mxu0 0.0
    %2523 = vmatprep.subr.mxu0 0.0
    %2524 = vmatpush1.msra.mxu0 0.0
    %2525 = vmatprep.subr.mxu0 0.0
    %2526 = vmatpush1.msra.mxu0 0.0
    %2527 = vmatprep.subr.mxu0 0.0
    %2528 = vmatpush1.msra.mxu0 0.0
    %2529 = vmatprep.subr.mxu0 0.0
    %2530 = vmatpush1.msra.mxu0 0.0
    %2531 = vmatprep.subr.mxu0 0.0
    %2532 = vmatpush1.msra.mxu0 0.0
    %2533 = vmatprep.subr.mxu0 0.0
    %2534 = vmatpush1.msra.mxu0 0.0
    %2535 = vmatprep.subr.mxu0 0.0
    %2536 = vmatpush1.msra.mxu0 0.0
    %2537 = vmatprep.subr.mxu0 0.0
    %2538 = vmatpush1.msra.mxu0 0.0
    %2539 = vmatprep.subr.mxu0 0.0
    %2540 = vmatpush1.msra.mxu0 0.0
    %2541 = vmatprep.mubr.f32.mxu0 0.0
    %2542 = vmatmul.mubr.f32.gmra.mrb[0].mxu0 %v2475
    %v2543 = vpop.f32.mrb[0].mxu0
    %v2544 = vadd.f32 0.0, %v2543
    %v2545 = vpop.f32.mrb[0].mxu0
    %2546 = vdwg.mxu0
    %2547 = vrot.lane.b32.xlu0 %v1958, 56
    %v2548 = vpop.permute.xlu0 %2547
    %v2551 = vsel %vm159, %v2470, 0
    %2553 = vmatprep.subr.mxu0 0.0
    %2554 = vmatpush1.msra.mxu0 %v2548
    %2555 = vmatprep.subr.mxu0 0.0
    %2556 = vmatpush1.msra.mxu0 0.0
    %2557 = vmatprep.subr.mxu0 0.0
    %2558 = vmatpush1.msra.mxu0 0.0
    %2559 = vmatprep.subr.mxu0 0.0
    %2560 = vmatpush1.msra.mxu0 0.0
    %2561 = vmatprep.subr.mxu0 0.0
    %2562 = vmatpush1.msra.mxu0 0.0
    %2563 = vmatprep.subr.mxu0 0.0
    %2564 = vmatpush1.msra.mxu0 0.0
    %2565 = vmatprep.subr.mxu0 0.0
    %2566 = vmatpush1.msra.mxu0 0.0
    %2567 = vmatprep.subr.mxu0 0.0
    %2568 = vmatpush1.msra.mxu0 0.0
    %2569 = vmatprep.subr.mxu0 0.0
    %2570 = vmatpush1.msra.mxu0 0.0
    %2571 = vmatprep.subr.mxu0 0.0
    %2572 = vmatpush1.msra.mxu0 0.0
    %2573 = vmatprep.subr.mxu0 0.0
    %2574 = vmatpush1.msra.mxu0 0.0
    %2575 = vmatprep.subr.mxu0 0.0
    %2576 = vmatpush1.msra.mxu0 0.0
    %2577 = vmatprep.subr.mxu0 0.0
    %2578 = vmatpush1.msra.mxu0 0.0
    %2579 = vmatprep.subr.mxu0 0.0
    %2580 = vmatpush1.msra.mxu0 0.0
    %2581 = vmatprep.subr.mxu0 0.0
    %2582 = vmatpush1.msra.mxu0 0.0
    %2583 = vmatprep.subr.mxu0 0.0
    %2584 = vmatpush1.msra.mxu0 0.0
    %2585 = vmatprep.subr.mxu0 0.0
    %2586 = vmatpush1.msra.mxu0 0.0
    %2587 = vmatprep.subr.mxu0 0.0
    %2588 = vmatpush1.msra.mxu0 0.0
    %2589 = vmatprep.subr.mxu0 0.0
    %2590 = vmatpush1.msra.mxu0 0.0
    %2591 = vmatprep.subr.mxu0 0.0
    %2592 = vmatpush1.msra.mxu0 0.0
    %2593 = vmatprep.subr.mxu0 0.0
    %2594 = vmatpush1.msra.mxu0 0.0
    %2595 = vmatprep.subr.mxu0 0.0
    %2596 = vmatpush1.msra.mxu0 0.0
    %2597 = vmatprep.subr.mxu0 0.0
    %2598 = vmatpush1.msra.mxu0 0.0
    %2599 = vmatprep.subr.mxu0 0.0
    %2600 = vmatpush1.msra.mxu0 0.0
    %2601 = vmatprep.subr.mxu0 0.0
    %2602 = vmatpush1.msra.mxu0 0.0
    %2603 = vmatprep.subr.mxu0 0.0
    %2604 = vmatpush1.msra.mxu0 0.0
    %2605 = vmatprep.subr.mxu0 0.0
    %2606 = vmatpush1.msra.mxu0 0.0
    %2607 = vmatprep.subr.mxu0 0.0
    %2608 = vmatpush1.msra.mxu0 0.0
    %2609 = vmatprep.subr.mxu0 0.0
    %2610 = vmatpush1.msra.mxu0 0.0
    %2611 = vmatprep.subr.mxu0 0.0
    %2612 = vmatpush1.msra.mxu0 0.0
    %2613 = vmatprep.subr.mxu0 0.0
    %2614 = vmatpush1.msra.mxu0 0.0
    %2615 = vmatprep.subr.mxu0 0.0
    %2616 = vmatpush1.msra.mxu0 0.0
    %2617 = vmatprep.mubr.f32.mxu0 0.0
    %2618 = vmatmul.mubr.f32.gmra.mrb[0].mxu0 %v2551
    %v2619 = vpop.f32.mrb[0].mxu0
    %v2620 = vadd.f32 0.0, %v2619
    %v2621 = vpop.f32.mrb[0].mxu0
    %2622 = vdwg.mxu0
    %v2624 = vsel %vm159, %v2544, 0
    %v2627 = vsel %vm159, %v2620, 0
    %2629 = vmatprep.subr.mxu0 0.0
    %2630 = vmatpush1.msra.mxu0 %v1871
    %2631 = vmatprep.subr.mxu0 0.0
    %2632 = vmatpush1.msra.mxu0 0.0
    %2633 = vmatprep.subr.mxu0 0.0
    %2634 = vmatpush1.msra.mxu0 0.0
    %2635 = vmatprep.subr.mxu0 0.0
    %2636 = vmatpush1.msra.mxu0 0.0
    %2637 = vmatprep.subr.mxu0 0.0
    %2638 = vmatpush1.msra.mxu0 0.0
    %2639 = vmatprep.subr.mxu0 0.0
    %2640 = vmatpush1.msra.mxu0 0.0
    %2641 = vmatprep.subr.mxu0 0.0
    %2642 = vmatpush1.msra.mxu0 0.0
    %2643 = vmatprep.subr.mxu0 0.0
    %2644 = vmatpush1.msra.mxu0 0.0
    %2645 = vmatprep.subr.mxu0 0.0
    %2646 = vmatpush1.msra.mxu0 0.0
    %2647 = vmatprep.subr.mxu0 0.0
    %2648 = vmatpush1.msra.mxu0 0.0
    %2649 = vmatprep.subr.mxu0 0.0
    %2650 = vmatpush1.msra.mxu0 0.0
    %2651 = vmatprep.subr.mxu0 0.0
    %2652 = vmatpush1.msra.mxu0 0.0
    %2653 = vmatprep.subr.mxu0 0.0
    %2654 = vmatpush1.msra.mxu0 0.0
    %2655 = vmatprep.subr.mxu0 0.0
    %2656 = vmatpush1.msra.mxu0 0.0
    %2657 = vmatprep.subr.mxu0 0.0
    %2658 = vmatpush1.msra.mxu0 0.0
    %2659 = vmatprep.subr.mxu0 0.0
    %2660 = vmatpush1.msra.mxu0 0.0
    %2661 = vmatprep.subr.mxu0 0.0
    %2662 = vmatpush1.msra.mxu0 0.0
    %2663 = vmatprep.subr.mxu0 0.0
    %2664 = vmatpush1.msra.mxu0 0.0
    %2665 = vmatprep.subr.mxu0 0.0
    %2666 = vmatpush1.msra.mxu0 0.0
    %2667 = vmatprep.subr.mxu0 0.0
    %2668 = vmatpush1.msra.mxu0 0.0
    %2669 = vmatprep.subr.mxu0 0.0
    %2670 = vmatpush1.msra.mxu0 0.0
    %2671 = vmatprep.subr.mxu0 0.0
    %2672 = vmatpush1.msra.mxu0 0.0
    %2673 = vmatprep.subr.mxu0 0.0
    %2674 = vmatpush1.msra.mxu0 0.0
    %2675 = vmatprep.subr.mxu0 0.0
    %2676 = vmatpush1.msra.mxu0 0.0
    %2677 = vmatprep.subr.mxu0 0.0
    %2678 = vmatpush1.msra.mxu0 0.0
    %2679 = vmatprep.subr.mxu0 0.0
    %2680 = vmatpush1.msra.mxu0 0.0
    %2681 = vmatprep.subr.mxu0 0.0
    %2682 = vmatpush1.msra.mxu0 0.0
    %2683 = vmatprep.subr.mxu0 0.0
    %2684 = vmatpush1.msra.mxu0 0.0
    %2685 = vmatprep.subr.mxu0 0.0
    %2686 = vmatpush1.msra.mxu0 0.0
    %2687 = vmatprep.subr.mxu0 0.0
    %2688 = vmatpush1.msra.mxu0 0.0
    %2689 = vmatprep.subr.mxu0 0.0
    %2690 = vmatpush1.msra.mxu0 0.0
    %2691 = vmatprep.subr.mxu0 0.0
    %2692 = vmatpush1.msra.mxu0 0.0
    %2693 = vmatprep.mubr.f32.mxu0 0.0
    %2694 = vmatmul.mubr.f32.gmra.mrb[0].mxu0 %v2624
    %v2695 = vpop.f32.mrb[0].mxu0
    %v2696 = vadd.f32 0.0, %v2695
    %v2697 = vpop.f32.mrb[0].mxu0
    %2698 = vmatprep.mubr.f32.mxu0 0.0
    %2699 = vmatmul.mubr.f32.gmra.mrb[0].mxu0 %v2627
    %v2700 = vpop.f32.mrb[0].mxu0
    %v2701 = vadd.f32 0.0, %v2700
    %v2702 = vpop.f32.mrb[0].mxu0
    %2703 = vdwg.mxu0
    %v2705 = vsel %vm159, %v2212, 0
    %v2708 = vsel %vm159, %v2288, 0
    %2710 = vmatprep.subr.mxu0 0.0
    %2711 = vmatpush1.msra.mxu0 %v1870
    %2712 = vmatprep.subr.mxu0 0.0
    %2713 = vmatpush1.msra.mxu0 0.0
    %2714 = vmatprep.subr.mxu0 0.0
    %2715 = vmatpush1.msra.mxu0 0.0
    %2716 = vmatprep.subr.mxu0 0.0
    %2717 = vmatpush1.msra.mxu0 0.0
    %2718 = vmatprep.subr.mxu0 0.0
    %2719 = vmatpush1.msra.mxu0 0.0
    %2720 = vmatprep.subr.mxu0 0.0
    %2721 = vmatpush1.msra.mxu0 0.0
    %2722 = vmatprep.subr.mxu0 0.0
    %2723 = vmatpush1.msra.mxu0 0.0
    %2724 = vmatprep.subr.mxu0 0.0
    %2725 = vmatpush1.msra.mxu0 0.0
    %2726 = vmatprep.subr.mxu0 0.0
    %2727 = vmatpush1.msra.mxu0 0.0
    %2728 = vmatprep.subr.mxu0 0.0
    %2729 = vmatpush1.msra.mxu0 0.0
    %2730 = vmatprep.subr.mxu0 0.0
    %2731 = vmatpush1.msra.mxu0 0.0
    %2732 = vmatprep.subr.mxu0 0.0
    %2733 = vmatpush1.msra.mxu0 0.0
    %2734 = vmatprep.subr.mxu0 0.0
    %2735 = vmatpush1.msra.mxu0 0.0
    %2736 = vmatprep.subr.mxu0 0.0
    %2737 = vmatpush1.msra.mxu0 0.0
    %2738 = vmatprep.subr.mxu0 0.0
    %2739 = vmatpush1.msra.mxu0 0.0
    %2740 = vmatprep.subr.mxu0 0.0
    %2741 = vmatpush1.msra.mxu0 0.0
    %2742 = vmatprep.subr.mxu0 0.0
    %2743 = vmatpush1.msra.mxu0 0.0
    %2744 = vmatprep.subr.mxu0 0.0
    %2745 = vmatpush1.msra.mxu0 0.0
    %2746 = vmatprep.subr.mxu0 0.0
    %2747 = vmatpush1.msra.mxu0 0.0
    %2748 = vmatprep.subr.mxu0 0.0
    %2749 = vmatpush1.msra.mxu0 0.0
    %2750 = vmatprep.subr.mxu0 0.0
    %2751 = vmatpush1.msra.mxu0 0.0
    %2752 = vmatprep.subr.mxu0 0.0
    %2753 = vmatpush1.msra.mxu0 0.0
    %2754 = vmatprep.subr.mxu0 0.0
    %2755 = vmatpush1.msra.mxu0 0.0
    %2756 = vmatprep.subr.mxu0 0.0
    %2757 = vmatpush1.msra.mxu0 0.0
    %2758 = vmatprep.subr.mxu0 0.0
    %2759 = vmatpush1.msra.mxu0 0.0
    %2760 = vmatprep.subr.mxu0 0.0
    %2761 = vmatpush1.msra.mxu0 0.0
    %2762 = vmatprep.subr.mxu0 0.0
    %2763 = vmatpush1.msra.mxu0 0.0
    %2764 = vmatprep.subr.mxu0 0.0
    %2765 = vmatpush1.msra.mxu0 0.0
    %2766 = vmatprep.subr.mxu0 0.0
    %2767 = vmatpush1.msra.mxu0 0.0
    %2768 = vmatprep.subr.mxu0 0.0
    %2769 = vmatpush1.msra.mxu0 0.0
    %2770 = vmatprep.subr.mxu0 0.0
    %2771 = vmatpush1.msra.mxu0 0.0
    %2772 = vmatprep.subr.mxu0 0.0
    %2773 = vmatpush1.msra.mxu0 0.0
    %2774 = vmatprep.mubr.f32.mxu0 0.0
    %2775 = vmatmul.mubr.f32.gmra.mrb[0].mxu0 %v2705
    %v2776 = vpop.f32.mrb[0].mxu0
    %v2777 = vadd.f32 %v2696, %v2776
    %v2778 = vpop.f32.mrb[0].mxu0
    %2779 = vmatprep.mubr.f32.mxu0 0.0
    %2780 = vmatmul.mubr.f32.gmra.mrb[0].mxu0 %v2708
    %v2781 = vpop.f32.mrb[0].mxu0
    %v2782 = vadd.f32 %v2701, %v2781
    %v2783 = vpop.f32.mrb[0].mxu0
    %2784 = vdwg.mxu0
    %2785 = vrot.lane.b32.xlu0 %v1953, 112
    %v2786 = vpop.permute.xlu0 %2785
    %2787 = vrot.lane.b32.xlu0 %v1953, 80
    %v2788 = vpop.permute.xlu0 %2787
    %v2789 = vsel %vm159, %v2786, 0
    %v2791 = vsel %vm159, %v2788, 0
    %2793 = vmatprep.subr.mxu0 0.0
    %2794 = vmatpush1.xpose.msra.mxu0 %v2791
    %2795 = vmatprep.subr.mxu0 0.0
    %2796 = vmatpush1.xpose.msra.mxu0 0.0
    %2797 = vmatprep.subr.mxu0 0.0
    %2798 = vmatpush1.xpose.msra.mxu0 0.0
    %2799 = vmatprep.subr.mxu0 0.0
    %2800 = vmatpush1.xpose.msra.mxu0 0.0
    %2801 = vmatprep.subr.mxu0 0.0
    %2802 = vmatpush1.xpose.msra.mxu0 0.0
    %2803 = vmatprep.subr.mxu0 0.0
    %2804 = vmatpush1.xpose.msra.mxu0 0.0
    %2805 = vmatprep.subr.mxu0 0.0
    %2806 = vmatpush1.xpose.msra.mxu0 0.0
    %2807 = vmatprep.subr.mxu0 0.0
    %2808 = vmatpush1.xpose.msra.mxu0 0.0
    %2809 = vmatprep.subr.mxu0 0.0
    %2810 = vmatpush1.xpose.msra.mxu0 0.0
    %2811 = vmatprep.subr.mxu0 0.0
    %2812 = vmatpush1.xpose.msra.mxu0 0.0
    %2813 = vmatprep.subr.mxu0 0.0
    %2814 = vmatpush1.xpose.msra.mxu0 0.0
    %2815 = vmatprep.subr.mxu0 0.0
    %2816 = vmatpush1.xpose.msra.mxu0 0.0
    %2817 = vmatprep.subr.mxu0 0.0
    %2818 = vmatpush1.xpose.msra.mxu0 0.0
    %2819 = vmatprep.subr.mxu0 0.0
    %2820 = vmatpush1.xpose.msra.mxu0 0.0
    %2821 = vmatprep.subr.mxu0 0.0
    %2822 = vmatpush1.xpose.msra.mxu0 0.0
    %2823 = vmatprep.subr.mxu0 0.0
    %2824 = vmatpush1.xpose.msra.mxu0 0.0
    %2825 = vmatprep.subr.mxu0 0.0
    %2826 = vmatpush1.xpose.msra.mxu0 0.0
    %2827 = vmatprep.subr.mxu0 0.0
    %2828 = vmatpush1.xpose.msra.mxu0 0.0
    %2829 = vmatprep.subr.mxu0 0.0
    %2830 = vmatpush1.xpose.msra.mxu0 0.0
    %2831 = vmatprep.subr.mxu0 0.0
    %2832 = vmatpush1.xpose.msra.mxu0 0.0
    %2833 = vmatprep.subr.mxu0 0.0
    %2834 = vmatpush1.xpose.msra.mxu0 0.0
    %2835 = vmatprep.subr.mxu0 0.0
    %2836 = vmatpush1.xpose.msra.mxu0 0.0
    %2837 = vmatprep.subr.mxu0 0.0
    %2838 = vmatpush1.xpose.msra.mxu0 0.0
    %2839 = vmatprep.subr.mxu0 0.0
    %2840 = vmatpush1.xpose.msra.mxu0 0.0
    %2841 = vmatprep.subr.mxu0 0.0
    %2842 = vmatpush1.xpose.msra.mxu0 0.0
    %2843 = vmatprep.subr.mxu0 0.0
    %2844 = vmatpush1.xpose.msra.mxu0 0.0
    %2845 = vmatprep.subr.mxu0 0.0
    %2846 = vmatpush1.xpose.msra.mxu0 0.0
    %2847 = vmatprep.subr.mxu0 0.0
    %2848 = vmatpush1.xpose.msra.mxu0 0.0
    %2849 = vmatprep.subr.mxu0 0.0
    %2850 = vmatpush1.xpose.msra.mxu0 0.0
    %2851 = vmatprep.subr.mxu0 0.0
    %2852 = vmatpush1.xpose.msra.mxu0 0.0
    %2853 = vmatprep.subr.mxu0 0.0
    %2854 = vmatpush1.xpose.msra.mxu0 0.0
    %2855 = vmatprep.subr.mxu0 0.0
    %2856 = vmatpush1.xpose.msra.mxu0 0.0
    %2857 = vmatprep.mubr.f32.mxu0 0.0
    %2858 = vmatmul.mubr.f32.gmra.mrb[0].mxu0 %v2789
    %v2859 = vpop.f32.mrb[0].mxu0
    %v2860 = vadd.f32 0.0, %v2859
    %v2861 = vpop.f32.mrb[0].mxu0
    %2862 = vdwg.mxu0
    %2863 = vrot.lane.b32.xlu0 %v1958, 112
    %v2864 = vpop.permute.xlu0 %2863
    %2865 = vrot.lane.b32.xlu0 %v1958, 80
    %v2866 = vpop.permute.xlu0 %2865
    %v2867 = vsel %vm159, %v2864, 0
    %v2869 = vsel %vm159, %v2866, 0
    %2871 = vmatprep.subr.mxu0 0.0
    %2872 = vmatpush1.xpose.msra.mxu0 %v2869
    %2873 = vmatprep.subr.mxu0 0.0
    %2874 = vmatpush1.xpose.msra.mxu0 0.0
    %2875 = vmatprep.subr.mxu0 0.0
    %2876 = vmatpush1.xpose.msra.mxu0 0.0
    %2877 = vmatprep.subr.mxu0 0.0
    %2878 = vmatpush1.xpose.msra.mxu0 0.0
    %2879 = vmatprep.subr.mxu0 0.0
    %2880 = vmatpush1.xpose.msra.mxu0 0.0
    %2881 = vmatprep.subr.mxu0 0.0
    %2882 = vmatpush1.xpose.msra.mxu0 0.0
    %2883 = vmatprep.subr.mxu0 0.0
    %2884 = vmatpush1.xpose.msra.mxu0 0.0
    %2885 = vmatprep.subr.mxu0 0.0
    %2886 = vmatpush1.xpose.msra.mxu0 0.0
    %2887 = vmatprep.subr.mxu0 0.0
    %2888 = vmatpush1.xpose.msra.mxu0 0.0
    %2889 = vmatprep.subr.mxu0 0.0
    %2890 = vmatpush1.xpose.msra.mxu0 0.0
    %2891 = vmatprep.subr.mxu0 0.0
    %2892 = vmatpush1.xpose.msra.mxu0 0.0
    %2893 = vmatprep.subr.mxu0 0.0
    %2894 = vmatpush1.xpose.msra.mxu0 0.0
    %2895 = vmatprep.subr.mxu0 0.0
    %2896 = vmatpush1.xpose.msra.mxu0 0.0
    %2897 = vmatprep.subr.mxu0 0.0
    %2898 = vmatpush1.xpose.msra.mxu0 0.0
    %2899 = vmatprep.subr.mxu0 0.0
    %2900 = vmatpush1.xpose.msra.mxu0 0.0
    %2901 = vmatprep.subr.mxu0 0.0
    %2902 = vmatpush1.xpose.msra.mxu0 0.0
    %2903 = vmatprep.subr.mxu0 0.0
    %2904 = vmatpush1.xpose.msra.mxu0 0.0
    %2905 = vmatprep.subr.mxu0 0.0
    %2906 = vmatpush1.xpose.msra.mxu0 0.0
    %2907 = vmatprep.subr.mxu0 0.0
    %2908 = vmatpush1.xpose.msra.mxu0 0.0
    %2909 = vmatprep.subr.mxu0 0.0
    %2910 = vmatpush1.xpose.msra.mxu0 0.0
    %2911 = vmatprep.subr.mxu0 0.0
    %2912 = vmatpush1.xpose.msra.mxu0 0.0
    %2913 = vmatprep.subr.mxu0 0.0
    %2914 = vmatpush1.xpose.msra.mxu0 0.0
    %2915 = vmatprep.subr.mxu0 0.0
    %2916 = vmatpush1.xpose.msra.mxu0 0.0
    %2917 = vmatprep.subr.mxu0 0.0
    %2918 = vmatpush1.xpose.msra.mxu0 0.0
    %2919 = vmatprep.subr.mxu0 0.0
    %2920 = vmatpush1.xpose.msra.mxu0 0.0
    %2921 = vmatprep.subr.mxu0 0.0
    %2922 = vmatpush1.xpose.msra.mxu0 0.0
    %2923 = vmatprep.subr.mxu0 0.0
    %2924 = vmatpush1.xpose.msra.mxu0 0.0
    %2925 = vmatprep.subr.mxu0 0.0
    %2926 = vmatpush1.xpose.msra.mxu0 0.0
    %2927 = vmatprep.subr.mxu0 0.0
    %2928 = vmatpush1.xpose.msra.mxu0 0.0
    %2929 = vmatprep.subr.mxu0 0.0
    %2930 = vmatpush1.xpose.msra.mxu0 0.0
    %2931 = vmatprep.subr.mxu0 0.0
    %2932 = vmatpush1.xpose.msra.mxu0 0.0
    %2933 = vmatprep.subr.mxu0 0.0
    %2934 = vmatpush1.xpose.msra.mxu0 0.0
    %2935 = vmatprep.mubr.f32.mxu0 0.0
    %2936 = vmatmul.mubr.f32.gmra.mrb[0].mxu0 %v2867
    %v2937 = vpop.f32.mrb[0].mxu0
    %v2938 = vadd.f32 0.0, %v2937
    %v2939 = vpop.f32.mrb[0].mxu0
    %2940 = vdwg.mxu0
    %v2941 = vmul.f32 %v2860, 0.35355338
    %v2942 = vmul.f32 %v2938, 0.35355338
    %v2943 = vsel %vm159, %v2941, -inf
    %2944 = vmax.xlane.f32.xlu0 %v2943
    %v2945 = vpop.xlane.xlu0 %2944
    %v2946 = vsel %vm159, %v2942, -inf
    %2947 = vmax.xlane.f32.xlu0 %v2946
    %v2948 = vpop.xlane.xlu0 %2947
    %v2949 = vsub.f32 %v2941, %v2945
    %v2950 = vsub.f32 %v2942, %v2948
    %v2951 = vmul.f32 %v2949, 1.442695
    %v2952 = vpow.pop %v2951
    %v2953 = vmul.f32 %v2950, 1.442695
    %v2954 = vpow.pop %v2953
    %v2955 = vsel %vm159, %v2952, 0.0
    %2956 = vadd.xlane.f32.xlu0 %v2955
    %v2957 = vpop.xlane.xlu0 %2956
    %v2958 = vsel %vm159, %v2954, 0.0
    %2959 = vadd.xlane.f32.xlu0 %v2958
    %v2960 = vpop.xlane.xlu0 %2959
    %v2961 = vrcp.pop %v2957
    %v2962 = vrcp.pop %v2960
    %v2963 = vmul.f32 %v2952, %v2961
    %v2964 = vmul.f32 %v2954, %v2962
    %2965 = vrot.lane.b32.xlu0 %v1953, 48
    %v2966 = vpop.permute.xlu0 %2965
    %v2969 = vsel %vm159, %v2963, 0
    %2971 = vmatprep.subr.mxu0 0.0
    %2972 = vmatpush1.msra.mxu0 %v2966
    %2973 = vmatprep.subr.mxu0 0.0
    %2974 = vmatpush1.msra.mxu0 0.0
    %2975 = vmatprep.subr.mxu0 0.0
    %2976 = vmatpush1.msra.mxu0 0.0
    %2977 = vmatprep.subr.mxu0 0.0
    %2978 = vmatpush1.msra.mxu0 0.0
    %2979 = vmatprep.subr.mxu0 0.0
    %2980 = vmatpush1.msra.mxu0 0.0
    %2981 = vmatprep.subr.mxu0 0.0
    %2982 = vmatpush1.msra.mxu0 0.0
    %2983 = vmatprep.subr.mxu0 0.0
    %2984 = vmatpush1.msra.mxu0 0.0
    %2985 = vmatprep.subr.mxu0 0.0
    %2986 = vmatpush1.msra.mxu0 0.0
    %2987 = vmatprep.subr.mxu0 0.0
    %2988 = vmatpush1.msra.mxu0 0.0
    %2989 = vmatprep.subr.mxu0 0.0
    %2990 = vmatpush1.msra.mxu0 0.0
    %2991 = vmatprep.subr.mxu0 0.0
    %2992 = vmatpush1.msra.mxu0 0.0
    %2993 = vmatprep.subr.mxu0 0.0
    %2994 = vmatpush1.msra.mxu0 0.0
    %2995 = vmatprep.subr.mxu0 0.0
    %2996 = vmatpush1.msra.mxu0 0.0
    %2997 = vmatprep.subr.mxu0 0.0
    %2998 = vmatpush1.msra.mxu0 0.0
    %2999 = vmatprep.subr.mxu0 0.0
    %3000 = vmatpush1.msra.mxu0 0.0
    %3001 = vmatprep.subr.mxu0 0.0
    %3002 = vmatpush1.msra.mxu0 0.0
    %3003 = vmatprep.subr.mxu0 0.0
    %3004 = vmatpush1.msra.mxu0 0.0
    %3005 = vmatprep.subr.mxu0 0.0
    %3006 = vmatpush1.msra.mxu0 0.0
    %3007 = vmatprep.subr.mxu0 0.0
    %3008 = vmatpush1.msra.mxu0 0.0
    %3009 = vmatprep.subr.mxu0 0.0
    %3010 = vmatpush1.msra.mxu0 0.0
    %3011 = vmatprep.subr.mxu0 0.0
    %3012 = vmatpush1.msra.mxu0 0.0
    %3013 = vmatprep.subr.mxu0 0.0
    %3014 = vmatpush1.msra.mxu0 0.0
    %3015 = vmatprep.subr.mxu0 0.0
    %3016 = vmatpush1.msra.mxu0 0.0
    %3017 = vmatprep.subr.mxu0 0.0
    %3018 = vmatpush1.msra.mxu0 0.0
    %3019 = vmatprep.subr.mxu0 0.0
    %3020 = vmatpush1.msra.mxu0 0.0
    %3021 = vmatprep.subr.mxu0 0.0
    %3022 = vmatpush1.msra.mxu0 0.0
    %3023 = vmatprep.subr.mxu0 0.0
    %3024 = vmatpush1.msra.mxu0 0.0
    %3025 = vmatprep.subr.mxu0 0.0
    %3026 = vmatpush1.msra.mxu0 0.0
    %3027 = vmatprep.subr.mxu0 0.0
    %3028 = vmatpush1.msra.mxu0 0.0
    %3029 = vmatprep.subr.mxu0 0.0
    %3030 = vmatpush1.msra.mxu0 0.0
    %3031 = vmatprep.subr.mxu0 0.0
    %3032 = vmatpush1.msra.mxu0 0.0
    %3033 = vmatprep.subr.mxu0 0.0
    %3034 = vmatpush1.msra.mxu0 0.0
    %3035 = vmatprep.mubr.f32.mxu0 0.0
    %3036 = vmatmul.mubr.f32.gmra.mrb[0].mxu0 %v2969
    %v3037 = vpop.f32.mrb[0].mxu0
    %v3038 = vadd.f32 0.0, %v3037
    %v3039 = vpop.f32.mrb[0].mxu0
    %3040 = vdwg.mxu0
    %3041 = vrot.lane.b32.xlu0 %v1958, 48
    %v3042 = vpop.permute.xlu0 %3041
    %v3045 = vsel %vm159, %v2964, 0
    %3047 = vmatprep.subr.mxu0 0.0
    %3048 = vmatpush1.msra.mxu0 %v3042
    %3049 = vmatprep.subr.mxu0 0.0
    %3050 = vmatpush1.msra.mxu0 0.0
    %3051 = vmatprep.subr.mxu0 0.0
    %3052 = vmatpush1.msra.mxu0 0.0
    %3053 = vmatprep.subr.mxu0 0.0
    %3054 = vmatpush1.msra.mxu0 0.0
    %3055 = vmatprep.subr.mxu0 0.0
    %3056 = vmatpush1.msra.mxu0 0.0
    %3057 = vmatprep.subr.mxu0 0.0
    %3058 = vmatpush1.msra.mxu0 0.0
    %3059 = vmatprep.subr.mxu0 0.0
    %3060 = vmatpush1.msra.mxu0 0.0
    %3061 = vmatprep.subr.mxu0 0.0
    %3062 = vmatpush1.msra.mxu0 0.0
    %3063 = vmatprep.subr.mxu0 0.0
    %3064 = vmatpush1.msra.mxu0 0.0
    %3065 = vmatprep.subr.mxu0 0.0
    %3066 = vmatpush1.msra.mxu0 0.0
    %3067 = vmatprep.subr.mxu0 0.0
    %3068 = vmatpush1.msra.mxu0 0.0
    %3069 = vmatprep.subr.mxu0 0.0
    %3070 = vmatpush1.msra.mxu0 0.0
    %3071 = vmatprep.subr.mxu0 0.0
    %3072 = vmatpush1.msra.mxu0 0.0
    %3073 = vmatprep.subr.mxu0 0.0
    %3074 = vmatpush1.msra.mxu0 0.0
    %3075 = vmatprep.subr.mxu0 0.0
    %3076 = vmatpush1.msra.mxu0 0.0
    %3077 = vmatprep.subr.mxu0 0.0
    %3078 = vmatpush1.msra.mxu0 0.0
    %3079 = vmatprep.subr.mxu0 0.0
    %3080 = vmatpush1.msra.mxu0 0.0
    %3081 = vmatprep.subr.mxu0 0.0
    %3082 = vmatpush1.msra.mxu0 0.0
    %3083 = vmatprep.subr.mxu0 0.0
    %3084 = vmatpush1.msra.mxu0 0.0
    %3085 = vmatprep.subr.mxu0 0.0
    %3086 = vmatpush1.msra.mxu0 0.0
    %3087 = vmatprep.subr.mxu0 0.0
    %3088 = vmatpush1.msra.mxu0 0.0
    %3089 = vmatprep.subr.mxu0 0.0
    %3090 = vmatpush1.msra.mxu0 0.0
    %3091 = vmatprep.subr.mxu0 0.0
    %3092 = vmatpush1.msra.mxu0 0.0
    %3093 = vmatprep.subr.mxu0 0.0
    %3094 = vmatpush1.msra.mxu0 0.0
    %3095 = vmatprep.subr.mxu0 0.0
    %3096 = vmatpush1.msra.mxu0 0.0
    %3097 = vmatprep.subr.mxu0 0.0
    %3098 = vmatpush1.msra.mxu0 0.0
    %3099 = vmatprep.subr.mxu0 0.0
    %3100 = vmatpush1.msra.mxu0 0.0
    %3101 = vmatprep.subr.mxu0 0.0
    %3102 = vmatpush1.msra.mxu0 0.0
    %3103 = vmatprep.subr.mxu0 0.0
    %3104 = vmatpush1.msra.mxu0 0.0
    %3105 = vmatprep.subr.mxu0 0.0
    %3106 = vmatpush1.msra.mxu0 0.0
    %3107 = vmatprep.subr.mxu0 0.0
    %3108 = vmatpush1.msra.mxu0 0.0
    %3109 = vmatprep.subr.mxu0 0.0
    %3110 = vmatpush1.msra.mxu0 0.0
    %3111 = vmatprep.mubr.f32.mxu0 0.0
    %3112 = vmatmul.mubr.f32.gmra.mrb[0].mxu0 %v3045
    %v3113 = vpop.f32.mrb[0].mxu0
    %v3114 = vadd.f32 0.0, %v3113
    %v3115 = vpop.f32.mrb[0].mxu0
    %3116 = vdwg.mxu0
    %v3118 = vsel %vm159, %v3038, 0
    %v3121 = vsel %vm159, %v3114, 0
    %3123 = vmatprep.subr.mxu0 0.0
    %3124 = vmatpush1.msra.mxu0 %v1872
    %3125 = vmatprep.subr.mxu0 0.0
    %3126 = vmatpush1.msra.mxu0 0.0
    %3127 = vmatprep.subr.mxu0 0.0
    %3128 = vmatpush1.msra.mxu0 0.0
    %3129 = vmatprep.subr.mxu0 0.0
    %3130 = vmatpush1.msra.mxu0 0.0
    %3131 = vmatprep.subr.mxu0 0.0
    %3132 = vmatpush1.msra.mxu0 0.0
    %3133 = vmatprep.subr.mxu0 0.0
    %3134 = vmatpush1.msra.mxu0 0.0
    %3135 = vmatprep.subr.mxu0 0.0
    %3136 = vmatpush1.msra.mxu0 0.0
    %3137 = vmatprep.subr.mxu0 0.0
    %3138 = vmatpush1.msra.mxu0 0.0
    %3139 = vmatprep.subr.mxu0 0.0
    %3140 = vmatpush1.msra.mxu0 0.0
    %3141 = vmatprep.subr.mxu0 0.0
    %3142 = vmatpush1.msra.mxu0 0.0
    %3143 = vmatprep.subr.mxu0 0.0
    %3144 = vmatpush1.msra.mxu0 0.0
    %3145 = vmatprep.subr.mxu0 0.0
    %3146 = vmatpush1.msra.mxu0 0.0
    %3147 = vmatprep.subr.mxu0 0.0
    %3148 = vmatpush1.msra.mxu0 0.0
    %3149 = vmatprep.subr.mxu0 0.0
    %3150 = vmatpush1.msra.mxu0 0.0
    %3151 = vmatprep.subr.mxu0 0.0
    %3152 = vmatpush1.msra.mxu0 0.0
    %3153 = vmatprep.subr.mxu0 0.0
    %3154 = vmatpush1.msra.mxu0 0.0
    %3155 = vmatprep.subr.mxu0 0.0
    %3156 = vmatpush1.msra.mxu0 0.0
    %3157 = vmatprep.subr.mxu0 0.0
    %3158 = vmatpush1.msra.mxu0 0.0
    %3159 = vmatprep.subr.mxu0 0.0
    %3160 = vmatpush1.msra.mxu0 0.0
    %3161 = vmatprep.subr.mxu0 0.0
    %3162 = vmatpush1.msra.mxu0 0.0
    %3163 = vmatprep.subr.mxu0 0.0
    %3164 = vmatpush1.msra.mxu0 0.0
    %3165 = vmatprep.subr.mxu0 0.0
    %3166 = vmatpush1.msra.mxu0 0.0
    %3167 = vmatprep.subr.mxu0 0.0
    %3168 = vmatpush1.msra.mxu0 0.0
    %3169 = vmatprep.subr.mxu0 0.0
    %3170 = vmatpush1.msra.mxu0 0.0
    %3171 = vmatprep.subr.mxu0 0.0
    %3172 = vmatpush1.msra.mxu0 0.0
    %3173 = vmatprep.subr.mxu0 0.0
    %3174 = vmatpush1.msra.mxu0 0.0
    %3175 = vmatprep.subr.mxu0 0.0
    %3176 = vmatpush1.msra.mxu0 0.0
    %3177 = vmatprep.subr.mxu0 0.0
    %3178 = vmatpush1.msra.mxu0 0.0
    %3179 = vmatprep.subr.mxu0 0.0
    %3180 = vmatpush1.msra.mxu0 0.0
    %3181 = vmatprep.subr.mxu0 0.0
    %3182 = vmatpush1.msra.mxu0 0.0
    %3183 = vmatprep.subr.mxu0 0.0
    %3184 = vmatpush1.msra.mxu0 0.0
    %3185 = vmatprep.subr.mxu0 0.0
    %3186 = vmatpush1.msra.mxu0 0.0
    %3187 = vmatprep.mubr.f32.mxu0 0.0
    %3188 = vmatmul.mubr.f32.gmra.mrb[0].mxu0 %v3118
    %v3189 = vpop.f32.mrb[0].mxu0
    %v3190 = vadd.f32 0.0, %v3189
    %v3191 = vpop.f32.mrb[0].mxu0
    %3192 = vmatprep.mubr.f32.mxu0 0.0
    %3193 = vmatmul.mubr.f32.gmra.mrb[0].mxu0 %v3121
    %v3194 = vpop.f32.mrb[0].mxu0
    %v3195 = vadd.f32 0.0, %v3194
    %v3196 = vpop.f32.mrb[0].mxu0
    %3197 = vdwg.mxu0
    %v3198 = vadd.f32 %v2777, %v3190
    %v3199 = vadd.f32 %v2782, %v3195
    %3200 = vrot.lane.b32.xlu0 %v1953, 104
    %v3201 = vpop.permute.xlu0 %3200
    %3202 = vrot.lane.b32.xlu0 %v1953, 72
    %v3203 = vpop.permute.xlu0 %3202
    %v3204 = vsel %vm159, %v3201, 0
    %v3206 = vsel %vm159, %v3203, 0
    %3208 = vmatprep.subr.mxu0 0.0
    %3209 = vmatpush1.xpose.msra.mxu0 %v3206
    %3210 = vmatprep.subr.mxu0 0.0
    %3211 = vmatpush1.xpose.msra.mxu0 0.0
    %3212 = vmatprep.subr.mxu0 0.0
    %3213 = vmatpush1.xpose.msra.mxu0 0.0
    %3214 = vmatprep.subr.mxu0 0.0
    %3215 = vmatpush1.xpose.msra.mxu0 0.0
    %3216 = vmatprep.subr.mxu0 0.0
    %3217 = vmatpush1.xpose.msra.mxu0 0.0
    %3218 = vmatprep.subr.mxu0 0.0
    %3219 = vmatpush1.xpose.msra.mxu0 0.0
    %3220 = vmatprep.subr.mxu0 0.0
    %3221 = vmatpush1.xpose.msra.mxu0 0.0
    %3222 = vmatprep.subr.mxu0 0.0
    %3223 = vmatpush1.xpose.msra.mxu0 0.0
    %3224 = vmatprep.subr.mxu0 0.0
    %3225 = vmatpush1.xpose.msra.mxu0 0.0
    %3226 = vmatprep.subr.mxu0 0.0
    %3227 = vmatpush1.xpose.msra.mxu0 0.0
    %3228 = vmatprep.subr.mxu0 0.0
    %3229 = vmatpush1.xpose.msra.mxu0 0.0
    %3230 = vmatprep.subr.mxu0 0.0
    %3231 = vmatpush1.xpose.msra.mxu0 0.0
    %3232 = vmatprep.subr.mxu0 0.0
    %3233 = vmatpush1.xpose.msra.mxu0 0.0
    %3234 = vmatprep.subr.mxu0 0.0
    %3235 = vmatpush1.xpose.msra.mxu0 0.0
    %3236 = vmatprep.subr.mxu0 0.0
    %3237 = vmatpush1.xpose.msra.mxu0 0.0
    %3238 = vmatprep.subr.mxu0 0.0
    %3239 = vmatpush1.xpose.msra.mxu0 0.0
    %3240 = vmatprep.subr.mxu0 0.0
    %3241 = vmatpush1.xpose.msra.mxu0 0.0
    %3242 = vmatprep.subr.mxu0 0.0
    %3243 = vmatpush1.xpose.msra.mxu0 0.0
    %3244 = vmatprep.subr.mxu0 0.0
    %3245 = vmatpush1.xpose.msra.mxu0 0.0
    %3246 = vmatprep.subr.mxu0 0.0
    %3247 = vmatpush1.xpose.msra.mxu0 0.0
    %3248 = vmatprep.subr.mxu0 0.0
    %3249 = vmatpush1.xpose.msra.mxu0 0.0
    %3250 = vmatprep.subr.mxu0 0.0
    %3251 = vmatpush1.xpose.msra.mxu0 0.0
    %3252 = vmatprep.subr.mxu0 0.0
    %3253 = vmatpush1.xpose.msra.mxu0 0.0
    %3254 = vmatprep.subr.mxu0 0.0
    %3255 = vmatpush1.xpose.msra.mxu0 0.0
    %3256 = vmatprep.subr.mxu0 0.0
    %3257 = vmatpush1.xpose.msra.mxu0 0.0
    %3258 = vmatprep.subr.mxu0 0.0
    %3259 = vmatpush1.xpose.msra.mxu0 0.0
    %3260 = vmatprep.subr.mxu0 0.0
    %3261 = vmatpush1.xpose.msra.mxu0 0.0
    %3262 = vmatprep.subr.mxu0 0.0
    %3263 = vmatpush1.xpose.msra.mxu0 0.0
    %3264 = vmatprep.subr.mxu0 0.0
    %3265 = vmatpush1.xpose.msra.mxu0 0.0
    %3266 = vmatprep.subr.mxu0 0.0
    %3267 = vmatpush1.xpose.msra.mxu0 0.0
    %3268 = vmatprep.subr.mxu0 0.0
    %3269 = vmatpush1.xpose.msra.mxu0 0.0
    %3270 = vmatprep.subr.mxu0 0.0
    %3271 = vmatpush1.xpose.msra.mxu0 0.0
    %3272 = vmatprep.mubr.f32.mxu0 0.0
    %3273 = vmatmul.mubr.f32.gmra.mrb[0].mxu0 %v3204
    %v3274 = vpop.f32.mrb[0].mxu0
    %v3275 = vadd.f32 0.0, %v3274
    %v3276 = vpop.f32.mrb[0].mxu0
    %3277 = vdwg.mxu0
    %3278 = vrot.lane.b32.xlu0 %v1958, 104
    %v3279 = vpop.permute.xlu0 %3278
    %3280 = vrot.lane.b32.xlu0 %v1958, 72
    %v3281 = vpop.permute.xlu0 %3280
    %v3282 = vsel %vm159, %v3279, 0
    %v3284 = vsel %vm159, %v3281, 0
    %3286 = vmatprep.subr.mxu0 0.0
    %3287 = vmatpush1.xpose.msra.mxu0 %v3284
    %3288 = vmatprep.subr.mxu0 0.0
    %3289 = vmatpush1.xpose.msra.mxu0 0.0
    %3290 = vmatprep.subr.mxu0 0.0
    %3291 = vmatpush1.xpose.msra.mxu0 0.0
    %3292 = vmatprep.subr.mxu0 0.0
    %3293 = vmatpush1.xpose.msra.mxu0 0.0
    %3294 = vmatprep.subr.mxu0 0.0
    %3295 = vmatpush1.xpose.msra.mxu0 0.0
    %3296 = vmatprep.subr.mxu0 0.0
    %3297 = vmatpush1.xpose.msra.mxu0 0.0
    %3298 = vmatprep.subr.mxu0 0.0
    %3299 = vmatpush1.xpose.msra.mxu0 0.0
    %3300 = vmatprep.subr.mxu0 0.0
    %3301 = vmatpush1.xpose.msra.mxu0 0.0
    %3302 = vmatprep.subr.mxu0 0.0
    %3303 = vmatpush1.xpose.msra.mxu0 0.0
    %3304 = vmatprep.subr.mxu0 0.0
    %3305 = vmatpush1.xpose.msra.mxu0 0.0
    %3306 = vmatprep.subr.mxu0 0.0
    %3307 = vmatpush1.xpose.msra.mxu0 0.0
    %3308 = vmatprep.subr.mxu0 0.0
    %3309 = vmatpush1.xpose.msra.mxu0 0.0
    %3310 = vmatprep.subr.mxu0 0.0
    %3311 = vmatpush1.xpose.msra.mxu0 0.0
    %3312 = vmatprep.subr.mxu0 0.0
    %3313 = vmatpush1.xpose.msra.mxu0 0.0
    %3314 = vmatprep.subr.mxu0 0.0
    %3315 = vmatpush1.xpose.msra.mxu0 0.0
    %3316 = vmatprep.subr.mxu0 0.0
    %3317 = vmatpush1.xpose.msra.mxu0 0.0
    %3318 = vmatprep.subr.mxu0 0.0
    %3319 = vmatpush1.xpose.msra.mxu0 0.0
    %3320 = vmatprep.subr.mxu0 0.0
    %3321 = vmatpush1.xpose.msra.mxu0 0.0
    %3322 = vmatprep.subr.mxu0 0.0
    %3323 = vmatpush1.xpose.msra.mxu0 0.0
    %3324 = vmatprep.subr.mxu0 0.0
    %3325 = vmatpush1.xpose.msra.mxu0 0.0
    %3326 = vmatprep.subr.mxu0 0.0
    %3327 = vmatpush1.xpose.msra.mxu0 0.0
    %3328 = vmatprep.subr.mxu0 0.0
    %3329 = vmatpush1.xpose.msra.mxu0 0.0
    %3330 = vmatprep.subr.mxu0 0.0
    %3331 = vmatpush1.xpose.msra.mxu0 0.0
    %3332 = vmatprep.subr.mxu0 0.0
    %3333 = vmatpush1.xpose.msra.mxu0 0.0
    %3334 = vmatprep.subr.mxu0 0.0
    %3335 = vmatpush1.xpose.msra.mxu0 0.0
    %3336 = vmatprep.subr.mxu0 0.0
    %3337 = vmatpush1.xpose.msra.mxu0 0.0
    %3338 = vmatprep.subr.mxu0 0.0
    %3339 = vmatpush1.xpose.msra.mxu0 0.0
    %3340 = vmatprep.subr.mxu0 0.0
    %3341 = vmatpush1.xpose.msra.mxu0 0.0
    %3342 = vmatprep.subr.mxu0 0.0
    %3343 = vmatpush1.xpose.msra.mxu0 0.0
    %3344 = vmatprep.subr.mxu0 0.0
    %3345 = vmatpush1.xpose.msra.mxu0 0.0
    %3346 = vmatprep.subr.mxu0 0.0
    %3347 = vmatpush1.xpose.msra.mxu0 0.0
    %3348 = vmatprep.subr.mxu0 0.0
    %3349 = vmatpush1.xpose.msra.mxu0 0.0
    %3350 = vmatprep.mubr.f32.mxu0 0.0
    %3351 = vmatmul.mubr.f32.gmra.mrb[0].mxu0 %v3282
    %v3352 = vpop.f32.mrb[0].mxu0
    %v3353 = vadd.f32 0.0, %v3352
    %v3354 = vpop.f32.mrb[0].mxu0
    %3355 = vdwg.mxu0
    %v3356 = vmul.f32 %v3275, 0.35355338
    %v3357 = vmul.f32 %v3353, 0.35355338
    %v3358 = vsel %vm159, %v3356, -inf
    %3359 = vmax.xlane.f32.xlu0 %v3358
    %v3360 = vpop.xlane.xlu0 %3359
    %v3361 = vsel %vm159, %v3357, -inf
    %3362 = vmax.xlane.f32.xlu0 %v3361
    %v3363 = vpop.xlane.xlu0 %3362
    %v3364 = vsub.f32 %v3356, %v3360
    %v3365 = vsub.f32 %v3357, %v3363
    %v3366 = vmul.f32 %v3364, 1.442695
    %v3367 = vpow.pop %v3366
    %v3368 = vmul.f32 %v3365, 1.442695
    %v3369 = vpow.pop %v3368
    %v3370 = vsel %vm159, %v3367, 0.0
    %3371 = vadd.xlane.f32.xlu0 %v3370
    %v3372 = vpop.xlane.xlu0 %3371
    %v3373 = vsel %vm159, %v3369, 0.0
    %3374 = vadd.xlane.f32.xlu0 %v3373
    %v3375 = vpop.xlane.xlu0 %3374
    %v3376 = vrcp.pop %v3372
    %v3377 = vrcp.pop %v3375
    %v3378 = vmul.f32 %v3367, %v3376
    %v3379 = vmul.f32 %v3369, %v3377
    %3380 = vrot.lane.b32.xlu0 %v1953, 40
    %v3381 = vpop.permute.xlu0 %3380
    %v3384 = vsel %vm159, %v3378, 0
    %3386 = vmatprep.subr.mxu0 0.0
    %3387 = vmatpush1.msra.mxu0 %v3381
    %3388 = vmatprep.subr.mxu0 0.0
    %3389 = vmatpush1.msra.mxu0 0.0
    %3390 = vmatprep.subr.mxu0 0.0
    %3391 = vmatpush1.msra.mxu0 0.0
    %3392 = vmatprep.subr.mxu0 0.0
    %3393 = vmatpush1.msra.mxu0 0.0
    %3394 = vmatprep.subr.mxu0 0.0
    %3395 = vmatpush1.msra.mxu0 0.0
    %3396 = vmatprep.subr.mxu0 0.0
    %3397 = vmatpush1.msra.mxu0 0.0
    %3398 = vmatprep.subr.mxu0 0.0
    %3399 = vmatpush1.msra.mxu0 0.0
    %3400 = vmatprep.subr.mxu0 0.0
    %3401 = vmatpush1.msra.mxu0 0.0
    %3402 = vmatprep.subr.mxu0 0.0
    %3403 = vmatpush1.msra.mxu0 0.0
    %3404 = vmatprep.subr.mxu0 0.0
    %3405 = vmatpush1.msra.mxu0 0.0
    %3406 = vmatprep.subr.mxu0 0.0
    %3407 = vmatpush1.msra.mxu0 0.0
    %3408 = vmatprep.subr.mxu0 0.0
    %3409 = vmatpush1.msra.mxu0 0.0
    %3410 = vmatprep.subr.mxu0 0.0
    %3411 = vmatpush1.msra.mxu0 0.0
    %3412 = vmatprep.subr.mxu0 0.0
    %3413 = vmatpush1.msra.mxu0 0.0
    %3414 = vmatprep.subr.mxu0 0.0
    %3415 = vmatpush1.msra.mxu0 0.0
    %3416 = vmatprep.subr.mxu0 0.0
    %3417 = vmatpush1.msra.mxu0 0.0
    %3418 = vmatprep.subr.mxu0 0.0
    %3419 = vmatpush1.msra.mxu0 0.0
    %3420 = vmatprep.subr.mxu0 0.0
    %3421 = vmatpush1.msra.mxu0 0.0
    %3422 = vmatprep.subr.mxu0 0.0
    %3423 = vmatpush1.msra.mxu0 0.0
    %3424 = vmatprep.subr.mxu0 0.0
    %3425 = vmatpush1.msra.mxu0 0.0
    %3426 = vmatprep.subr.mxu0 0.0
    %3427 = vmatpush1.msra.mxu0 0.0
    %3428 = vmatprep.subr.mxu0 0.0
    %3429 = vmatpush1.msra.mxu0 0.0
    %3430 = vmatprep.subr.mxu0 0.0
    %3431 = vmatpush1.msra.mxu0 0.0
    %3432 = vmatprep.subr.mxu0 0.0
    %3433 = vmatpush1.msra.mxu0 0.0
    %3434 = vmatprep.subr.mxu0 0.0
    %3435 = vmatpush1.msra.mxu0 0.0
    %3436 = vmatprep.subr.mxu0 0.0
    %3437 = vmatpush1.msra.mxu0 0.0
    %3438 = vmatprep.subr.mxu0 0.0
    %3439 = vmatpush1.msra.mxu0 0.0
    %3440 = vmatprep.subr.mxu0 0.0
    %3441 = vmatpush1.msra.mxu0 0.0
    %3442 = vmatprep.subr.mxu0 0.0
    %3443 = vmatpush1.msra.mxu0 0.0
    %3444 = vmatprep.subr.mxu0 0.0
    %3445 = vmatpush1.msra.mxu0 0.0
    %3446 = vmatprep.subr.mxu0 0.0
    %3447 = vmatpush1.msra.mxu0 0.0
    %3448 = vmatprep.subr.mxu0 0.0
    %3449 = vmatpush1.msra.mxu0 0.0
    %3450 = vmatprep.mubr.f32.mxu0 0.0
    %3451 = vmatmul.mubr.f32.gmra.mrb[0].mxu0 %v3384
    %v3452 = vpop.f32.mrb[0].mxu0
    %v3453 = vadd.f32 0.0, %v3452
    %v3454 = vpop.f32.mrb[0].mxu0
    %3455 = vdwg.mxu0
    %3456 = vrot.lane.b32.xlu0 %v1958, 40
    %v3457 = vpop.permute.xlu0 %3456
    %v3460 = vsel %vm159, %v3379, 0
    %3462 = vmatprep.subr.mxu0 0.0
    %3463 = vmatpush1.msra.mxu0 %v3457
    %3464 = vmatprep.subr.mxu0 0.0
    %3465 = vmatpush1.msra.mxu0 0.0
    %3466 = vmatprep.subr.mxu0 0.0
    %3467 = vmatpush1.msra.mxu0 0.0
    %3468 = vmatprep.subr.mxu0 0.0
    %3469 = vmatpush1.msra.mxu0 0.0
    %3470 = vmatprep.subr.mxu0 0.0
    %3471 = vmatpush1.msra.mxu0 0.0
    %3472 = vmatprep.subr.mxu0 0.0
    %3473 = vmatpush1.msra.mxu0 0.0
    %3474 = vmatprep.subr.mxu0 0.0
    %3475 = vmatpush1.msra.mxu0 0.0
    %3476 = vmatprep.subr.mxu0 0.0
    %3477 = vmatpush1.msra.mxu0 0.0
    %3478 = vmatprep.subr.mxu0 0.0
    %3479 = vmatpush1.msra.mxu0 0.0
    %3480 = vmatprep.subr.mxu0 0.0
    %3481 = vmatpush1.msra.mxu0 0.0
    %3482 = vmatprep.subr.mxu0 0.0
    %3483 = vmatpush1.msra.mxu0 0.0
    %3484 = vmatprep.subr.mxu0 0.0
    %3485 = vmatpush1.msra.mxu0 0.0
    %3486 = vmatprep.subr.mxu0 0.0
    %3487 = vmatpush1.msra.mxu0 0.0
    %3488 = vmatprep.subr.mxu0 0.0
    %3489 = vmatpush1.msra.mxu0 0.0
    %3490 = vmatprep.subr.mxu0 0.0
    %3491 = vmatpush1.msra.mxu0 0.0
    %3492 = vmatprep.subr.mxu0 0.0
    %3493 = vmatpush1.msra.mxu0 0.0
    %3494 = vmatprep.subr.mxu0 0.0
    %3495 = vmatpush1.msra.mxu0 0.0
    %3496 = vmatprep.subr.mxu0 0.0
    %3497 = vmatpush1.msra.mxu0 0.0
    %3498 = vmatprep.subr.mxu0 0.0
    %3499 = vmatpush1.msra.mxu0 0.0
    %3500 = vmatprep.subr.mxu0 0.0
    %3501 = vmatpush1.msra.mxu0 0.0
    %3502 = vmatprep.subr.mxu0 0.0
    %3503 = vmatpush1.msra.mxu0 0.0
    %3504 = vmatprep.subr.mxu0 0.0
    %3505 = vmatpush1.msra.mxu0 0.0
    %3506 = vmatprep.subr.mxu0 0.0
    %3507 = vmatpush1.msra.mxu0 0.0
    %3508 = vmatprep.subr.mxu0 0.0
    %3509 = vmatpush1.msra.mxu0 0.0
    %3510 = vmatprep.subr.mxu0 0.0
    %3511 = vmatpush1.msra.mxu0 0.0
    %3512 = vmatprep.subr.mxu0 0.0
    %3513 = vmatpush1.msra.mxu0 0.0
    %3514 = vmatprep.subr.mxu0 0.0
    %3515 = vmatpush1.msra.mxu0 0.0
    %3516 = vmatprep.subr.mxu0 0.0
    %3517 = vmatpush1.msra.mxu0 0.0
    %3518 = vmatprep.subr.mxu0 0.0
    %3519 = vmatpush1.msra.mxu0 0.0
    %3520 = vmatprep.subr.mxu0 0.0
    %3521 = vmatpush1.msra.mxu0 0.0
    %3522 = vmatprep.subr.mxu0 0.0
    %3523 = vmatpush1.msra.mxu0 0.0
    %3524 = vmatprep.subr.mxu0 0.0
    %3525 = vmatpush1.msra.mxu0 0.0
    %3526 = vmatprep.mubr.f32.mxu0 0.0
    %3527 = vmatmul.mubr.f32.gmra.mrb[0].mxu0 %v3460
    %v3528 = vpop.f32.mrb[0].mxu0
    %v3529 = vadd.f32 0.0, %v3528
    %v3530 = vpop.f32.mrb[0].mxu0
    %3531 = vdwg.mxu0
    %v3533 = vsel %vm159, %v3453, 0
    %v3536 = vsel %vm159, %v3529, 0
    %3538 = vmatprep.subr.mxu0 0.0
    %3539 = vmatpush1.msra.mxu0 %v1873
    %3540 = vmatprep.subr.mxu0 0.0
    %3541 = vmatpush1.msra.mxu0 0.0
    %3542 = vmatprep.subr.mxu0 0.0
    %3543 = vmatpush1.msra.mxu0 0.0
    %3544 = vmatprep.subr.mxu0 0.0
    %3545 = vmatpush1.msra.mxu0 0.0
    %3546 = vmatprep.subr.mxu0 0.0
    %3547 = vmatpush1.msra.mxu0 0.0
    %3548 = vmatprep.subr.mxu0 0.0
    %3549 = vmatpush1.msra.mxu0 0.0
    %3550 = vmatprep.subr.mxu0 0.0
    %3551 = vmatpush1.msra.mxu0 0.0
    %3552 = vmatprep.subr.mxu0 0.0
    %3553 = vmatpush1.msra.mxu0 0.0
    %3554 = vmatprep.subr.mxu0 0.0
    %3555 = vmatpush1.msra.mxu0 0.0
    %3556 = vmatprep.subr.mxu0 0.0
    %3557 = vmatpush1.msra.mxu0 0.0
    %3558 = vmatprep.subr.mxu0 0.0
    %3559 = vmatpush1.msra.mxu0 0.0
    %3560 = vmatprep.subr.mxu0 0.0
    %3561 = vmatpush1.msra.mxu0 0.0
    %3562 = vmatprep.subr.mxu0 0.0
    %3563 = vmatpush1.msra.mxu0 0.0
    %3564 = vmatprep.subr.mxu0 0.0
    %3565 = vmatpush1.msra.mxu0 0.0
    %3566 = vmatprep.subr.mxu0 0.0
    %3567 = vmatpush1.msra.mxu0 0.0
    %3568 = vmatprep.subr.mxu0 0.0
    %3569 = vmatpush1.msra.mxu0 0.0
    %3570 = vmatprep.subr.mxu0 0.0
    %3571 = vmatpush1.msra.mxu0 0.0
    %3572 = vmatprep.subr.mxu0 0.0
    %3573 = vmatpush1.msra.mxu0 0.0
    %3574 = vmatprep.subr.mxu0 0.0
    %3575 = vmatpush1.msra.mxu0 0.0
    %3576 = vmatprep.subr.mxu0 0.0
    %3577 = vmatpush1.msra.mxu0 0.0
    %3578 = vmatprep.subr.mxu0 0.0
    %3579 = vmatpush1.msra.mxu0 0.0
    %3580 = vmatprep.subr.mxu0 0.0
    %3581 = vmatpush1.msra.mxu0 0.0
    %3582 = vmatprep.subr.mxu0 0.0
    %3583 = vmatpush1.msra.mxu0 0.0
    %3584 = vmatprep.subr.mxu0 0.0
    %3585 = vmatpush1.msra.mxu0 0.0
    %3586 = vmatprep.subr.mxu0 0.0
    %3587 = vmatpush1.msra.mxu0 0.0
    %3588 = vmatprep.subr.mxu0 0.0
    %3589 = vmatpush1.msra.mxu0 0.0
    %3590 = vmatprep.subr.mxu0 0.0
    %3591 = vmatpush1.msra.mxu0 0.0
    %3592 = vmatprep.subr.mxu0 0.0
    %3593 = vmatpush1.msra.mxu0 0.0
    %3594 = vmatprep.subr.mxu0 0.0
    %3595 = vmatpush1.msra.mxu0 0.0
    %3596 = vmatprep.subr.mxu0 0.0
    %3597 = vmatpush1.msra.mxu0 0.0
    %3598 = vmatprep.subr.mxu0 0.0
    %3599 = vmatpush1.msra.mxu0 0.0
    %3600 = vmatprep.subr.mxu0 0.0
    %3601 = vmatpush1.msra.mxu0 0.0
    %3602 = vmatprep.mubr.f32.mxu0 0.0
    %3603 = vmatmul.mubr.f32.gmra.mrb[0].mxu0 %v3533
    %v3604 = vpop.f32.mrb[0].mxu0
    %v3605 = vadd.f32 0.0, %v3604
    %v3606 = vpop.f32.mrb[0].mxu0
    %3607 = vmatprep.mubr.f32.mxu0 0.0
    %3608 = vmatmul.mubr.f32.gmra.mrb[0].mxu0 %v3536
    %v3609 = vpop.f32.mrb[0].mxu0
    %v3610 = vadd.f32 0.0, %v3609
    %v3611 = vpop.f32.mrb[0].mxu0
    %3612 = vdwg.mxu0
    %v3613 = vadd.f32 %v3198, %v3605
    %v3614 = vadd.f32 %v3199, %v3610
    %v3616 = vlaneseq
    %v3617 = vshrl.u32 %v3616, 7
    %v3618 = vsub.s32 0, %v3617
    %v3619 = vrot.slane %v1875, %v3618
    %v3621 = vadd.f32 %v3613, %v3619
    %v3622 = vadd.f32 %v3614, %v3619
    %v3623 = vadd.f32 %v1862, %v3621
    %v3624 = vadd.f32 %v1863, %v3622
    %v3625 = vsel %vm74, %v3623, 0.0
    %3626 = vadd.xlane.f32.xlu0 %v3625
    %v3627 = vpop.xlane.xlu0 %3626
    %v3628 = vsel %vm74, %v3624, 0.0
    %3629 = vadd.xlane.f32.xlu0 %v3628
    %v3630 = vpop.xlane.xlu0 %3629
    %v3631 = vmul.f32 %v3627, %v1827
    %v3632 = vmul.f32 %v3630, %v1827
    %v3633 = vsub.f32 %v3623, %v3631
    %v3634 = vsub.f32 %v3624, %v3632
    %v3635 = vmul.f32 %v3633, %v3633
    %v3636 = vmul.f32 %v3634, %v3634
    %v3637 = vsel %vm74, %v3635, 0.0
    %3638 = vadd.xlane.f32.xlu0 %v3637
    %v3639 = vpop.xlane.xlu0 %3638
    %v3640 = vsel %vm74, %v3636, 0.0
    %3641 = vadd.xlane.f32.xlu0 %v3640
    %v3642 = vpop.xlane.xlu0 %3641
    %v3643 = vmul.f32 %v3639, %v1827
    %v3644 = vmul.f32 %v3642, %v1827
    %v3645 = vadd.f32 %v3643, 1e-05
    %v3646 = vadd.f32 %v3644, 1e-05
    %v3647 = vrsqrt.pop %v3645
    %v3648 = vrsqrt.pop %v3646
    %v3649 = vmul.f32 %v3633, %v3647
    %v3650 = vmul.f32 %v3634, %v3648
    %v3652 = vlaneseq
    %v3653 = vshrl.u32 %v3652, 7
    %v3654 = vsub.s32 0, %v3653
    %v3655 = vrot.slane %v1877, %v3654
    %v3657 = vmul.f32 %v3649, %v3655
    %v3658 = vmul.f32 %v3650, %v3655
    %v3660 = vlaneseq
    %v3661 = vshrl.u32 %v3660, 7
    %v3662 = vsub.s32 0, %v3661
    %v3663 = vrot.slane %v1879, %v3662
    %v3665 = vadd.f32 %v3657, %v3663
    %v3666 = vadd.f32 %v3658, %v3663
    %v3667 = vld [vmem:[%s6] sm:$0x1]
    %v3668 = vld [vmem:[%s7] sm:$0x1]
    %v3669 = vsel %vm74, %v3665, 0.0
    %3670 = vadd.xlane.f32.xlu0 %v3669
    %v3671 = vpop.xlane.xlu0 %3670
    %v3672 = vsel %vm74, %v3666, 0.0
    %3673 = vadd.xlane.f32.xlu0 %v3672
    %v3674 = vpop.xlane.xlu0 %3673
    %v3675 = vmul.f32 %v3671, %v1827
    %v3676 = vmul.f32 %v3674, %v1827
    %v3677 = vsub.f32 %v3665, %v3675
    %v3678 = vsub.f32 %v3666, %v3676
    %v3679 = vmul.f32 %v3677, %v3677
    %v3680 = vmul.f32 %v3678, %v3678
    %v3681 = vsel %vm74, %v3679, 0.0
    %3682 = vadd.xlane.f32.xlu0 %v3681
    %v3683 = vpop.xlane.xlu0 %3682
    %v3684 = vsel %vm74, %v3680, 0.0
    %3685 = vadd.xlane.f32.xlu0 %v3684
    %v3686 = vpop.xlane.xlu0 %3685
    %v3687 = vmul.f32 %v3683, %v1827
    %v3688 = vmul.f32 %v3686, %v1827
    %v3689 = vadd.f32 %v3687, 1e-05
    %v3690 = vadd.f32 %v3688, 1e-05
    %v3691 = vrsqrt.pop %v3689
    %v3692 = vrsqrt.pop %v3690
    %v3693 = vmul.f32 %v3677, %v3691
    %v3694 = vmul.f32 %v3678, %v3692
    %v3696 = vlaneseq
    %v3697 = vshrl.u32 %v3696, 7
    %v3698 = vsub.s32 0, %v3697
    %v3699 = vrot.slane %v3667, %v3698
    %v3701 = vmul.f32 %v3693, %v3699
    %v3702 = vmul.f32 %v3694, %v3699
    %v3704 = vlaneseq
    %v3705 = vshrl.u32 %v3704, 7
    %v3706 = vsub.s32 0, %v3705
    %v3707 = vrot.slane %v3668, %v3706
    %v3709 = vadd.f32 %v3701, %v3707
    %v3710 = vadd.f32 %v3702, %v3707
    %v3711 = vsel %vm74, %v3709, 0.0
    %v3712 = vrot.slane %v3711, 4
    %v3713 = vadd.f32 %v3711, %v3712
    %v3714 = vrot.slane %v3713, 2
    %v3715 = vadd.f32 %v3713, %v3714
    %v3716 = vrot.slane %v3715, 1
    %v3717 = vadd.f32 %v3715, %v3716
    %v3718 = vsel %vm74, %v3710, 0.0
    %v3719 = vrot.slane %v3718, 4
    %v3720 = vadd.f32 %v3718, %v3719
    %v3721 = vrot.slane %v3720, 2
    %v3722 = vadd.f32 %v3720, %v3721
    %v3723 = vrot.slane %v3722, 1
    %v3724 = vadd.f32 %v3722, %v3723
    %v3725 = vrcp.pop 8.0
    %v3726 = vmul.f32 %v3717, %v3725
    %v3727 = vmul.f32 %v3724, %v3725
    %v3728 = vld [vmem:[%s8] sm:$0xff]
    %v3729 = vld [vmem:[%s8 + $0x8] sm:$0xff]
    %v3730 = vld [vmem:[%s8 + $0x10] sm:$0xff]
    %v3731 = vld [vmem:[%s8 + $0x18] sm:$0xff]
    %vm3734 = vcmask 1041409
    %v3735 = vsel %vm3734, %v3727, %v3726
    %v3736 = vsel %vm74, %v3735, 0
    %3738 = vmatprep.subr.mxu0 0.0
    %3739 = vmatpush1.msra.mxu0 %v3728
    %3740 = vmatprep.subr.mxu0 0.0
    %3741 = vmatpush1.msra.mxu0 %v3729
    %3742 = vmatprep.subr.mxu0 0.0
    %3743 = vmatpush1.msra.mxu0 %v3730
    %3744 = vmatprep.subr.mxu0 0.0
    %3745 = vmatpush1.msra.mxu0 %v3731
    %3746 = vmatprep.subr.mxu0 0.0
    %3747 = vmatpush1.msra.mxu0 0.0
    %3748 = vmatprep.subr.mxu0 0.0
    %3749 = vmatpush1.msra.mxu0 0.0
    %3750 = vmatprep.subr.mxu0 0.0
    %3751 = vmatpush1.msra.mxu0 0.0
    %3752 = vmatprep.subr.mxu0 0.0
    %3753 = vmatpush1.msra.mxu0 0.0
    %3754 = vmatprep.subr.mxu0 0.0
    %3755 = vmatpush1.msra.mxu0 0.0
    %3756 = vmatprep.subr.mxu0 0.0
    %3757 = vmatpush1.msra.mxu0 0.0
    %3758 = vmatprep.subr.mxu0 0.0
    %3759 = vmatpush1.msra.mxu0 0.0
    %3760 = vmatprep.subr.mxu0 0.0
    %3761 = vmatpush1.msra.mxu0 0.0
    %3762 = vmatprep.subr.mxu0 0.0
    %3763 = vmatpush1.msra.mxu0 0.0
    %3764 = vmatprep.subr.mxu0 0.0
    %3765 = vmatpush1.msra.mxu0 0.0
    %3766 = vmatprep.subr.mxu0 0.0
    %3767 = vmatpush1.msra.mxu0 0.0
    %3768 = vmatprep.subr.mxu0 0.0
    %3769 = vmatpush1.msra.mxu0 0.0
    %3770 = vmatprep.subr.mxu0 0.0
    %3771 = vmatpush1.msra.mxu0 0.0
    %3772 = vmatprep.subr.mxu0 0.0
    %3773 = vmatpush1.msra.mxu0 0.0
    %3774 = vmatprep.subr.mxu0 0.0
    %3775 = vmatpush1.msra.mxu0 0.0
    %3776 = vmatprep.subr.mxu0 0.0
    %3777 = vmatpush1.msra.mxu0 0.0
    %3778 = vmatprep.subr.mxu0 0.0
    %3779 = vmatpush1.msra.mxu0 0.0
    %3780 = vmatprep.subr.mxu0 0.0
    %3781 = vmatpush1.msra.mxu0 0.0
    %3782 = vmatprep.subr.mxu0 0.0
    %3783 = vmatpush1.msra.mxu0 0.0
    %3784 = vmatprep.subr.mxu0 0.0
    %3785 = vmatpush1.msra.mxu0 0.0
    %3786 = vmatprep.subr.mxu0 0.0
    %3787 = vmatpush1.msra.mxu0 0.0
    %3788 = vmatprep.subr.mxu0 0.0
    %3789 = vmatpush1.msra.mxu0 0.0
    %3790 = vmatprep.subr.mxu0 0.0
    %3791 = vmatpush1.msra.mxu0 0.0
    %3792 = vmatprep.subr.mxu0 0.0
    %3793 = vmatpush1.msra.mxu0 0.0
    %3794 = vmatprep.subr.mxu0 0.0
    %3795 = vmatpush1.msra.mxu0 0.0
    %3796 = vmatprep.subr.mxu0 0.0
    %3797 = vmatpush1.msra.mxu0 0.0
    %3798 = vmatprep.subr.mxu0 0.0
    %3799 = vmatpush1.msra.mxu0 0.0
    %3800 = vmatprep.subr.mxu0 0.0
    %3801 = vmatpush1.msra.mxu0 0.0
    %3802 = vmatprep.mubr.f32.mxu0 0.0
    %3803 = vmatmul.mubr.f32.gmra.mrb[0].mxu0 %v3736
    %v3804 = vpop.f32.mrb[0].mxu0
    %v3805 = vadd.f32 0.0, %v3804
    %v3806 = vpop.f32.mrb[0].mxu0
    %3807 = vdwg.mxu0
    %vm3808 = vcmask 123904
    %3809 = vst.msk [vmem:[#allocation7] sm:$0x3] %vm3808, %v3805
    // Predicated region
    $region46: #{tpu_custom_call.1} parent=1 // pred_check
      _
    $region47: #{tpu_custom_call.1} parent=1 // pred_check_branch
      %3811 = sbr.rel (0) target = $region49
    $region48: #{tpu_custom_call.1} parent=1 // pred_region
      %s3813 = ssub.s32 32, 32
      %3814 = vsyncadd [#allocation4], %s3813
      %s3816 = sshll.u32 [#allocation7], 4
      %s3817 = int_to_ptr.vmem [resolvable:$true] %s3816
      %3819 = dma.vmem_to_hbm [thread:$0]  %s3817, 32, %s9, [#allocation4]
    $region49: #{tpu_custom_call.1} parent=1 // pred_fallthru
      _
    // Predicated region
    $region50: #{tpu_custom_call.1} parent=1 // pred_check
      _
    $region51: #{tpu_custom_call.1} parent=1 // pred_check_branch
      %3821 = sbr.rel (0) target = $region53
    $region52: #{tpu_custom_call.1} parent=1 // pred_region
      %3822 = dma.done [#allocation4], 32
    $region53: #{tpu_custom_call.1} parent=1 // pred_fallthru
      _
    %3823 = vsyncpa [#allocation3], 1
    %3824 = vsyncpa [#allocation6], 1
    %3825 = vsyncpa [#allocation4], 1

</llo_original>
